<compile_context>
chip_gen: v6e
topology: v6e:2x2x1
jax: 0.10.0
libtpu: 0.0.40
codegen_flags: <defaults>
</compile_context>

<pallas_src>
import math

import jax
import jax.numpy as jnp
import numpy as np
from jax import lax
from jax.experimental import pallas as pl
from jax.experimental.pallas import tpu as pltpu


# ----------------------------- hyper-parameters (stand-in for `hp`) ----------
class hp:
    max_seq_len = 16
    variance_predictor_hidden = 32     # d_model / d_word_vec
    variance_predictor_head = 2        # n_head
    variance_predictor_layer = 2       # n_layers
    fft_conv1d_filter_size = 64        # d_inner
    fft_conv1d_kernel = (9, 1)         # FFT-block conv kernel sizes
    variance_predictor_dropout = 0.5   # eval mode -> dropout is identity


D = hp.variance_predictor_hidden
H = hp.variance_predictor_head
DK = D // H
DV = D // H
L = hp.variance_predictor_layer
DI = hp.fft_conv1d_filter_size
K1, K2 = hp.fft_conv1d_kernel
PAD1 = (K1 - 1) // 2
LN_EPS = 1e-5
NEG_BIG = -1e30


# ----------------------------- Pallas kernel ---------------------------------
def variance_predictor_kernel(
    enc_ref, len_ref, pos_ref,
    wqkv_ref, bqkv_ref, wo_ref, bo_ref, ln1g_ref, ln1b_ref,
    w1_ref, b1_ref, w2_ref, b2_ref, ln2g_ref, ln2b_ref,
    wlin_ref, blin_ref,
    out_ref,
    xp_ref,
):
    Bblk, T, Dm = enc_ref.shape
    BT = Bblk * T
    inv_sqrt_dk = jnp.float32(1.0 / math.sqrt(DK))

    # activations kept as (Bblk*T, D): batch*time folded onto the MXU M dimension
    x2 = (enc_ref[...] + pos_ref[...]).reshape(BT, Dm)

    # masks: built once from iota vs lengths, hoisted out of the unrolled loops
    len3 = len_ref[...]                                           # (Bblk, 1, 1) int32
    t_q = lax.broadcasted_iota(jnp.int32, (Bblk, T, 1), 1)
    t_k = lax.broadcasted_iota(jnp.int32, (Bblk, 1, T), 2)
    keep = (t_q < len3).astype(jnp.float32).reshape(BT, 1)        # 1.0 at valid rows
    neg_mask = jnp.where(t_k >= len3, jnp.float32(NEG_BIG),
                         jnp.float32(0.0))                        # (Bblk, 1, T) additive

    # zero-padded time buffer for the conv taps; pad rows stay zero for the whole step
    xp_ref[...] = jnp.zeros(xp_ref.shape, xp_ref.dtype)

    def layer_norm(y, g, b):
        mu = jnp.mean(y, axis=-1, keepdims=True)
        var = jnp.mean(jnp.square(y - mu), axis=-1, keepdims=True)
        return (y - mu) * lax.rsqrt(var + LN_EPS) * g + b

    for l in range(L):                                 # static unroll over layers
        # ------------- multi-head self-attention (fused QKV + fused out-proj) ----
        residual = x2
        qkv = jnp.dot(x2, wqkv_ref[l], preferred_element_type=jnp.float32) + bqkv_ref[l]
        heads = []
        for h in range(H):                             # static unroll over heads
            q_h = qkv[:, h * DK:(h + 1) * DK].reshape(Bblk, T, DK)
            k_h = qkv[:, H * DK + h * DK:H * DK + (h + 1) * DK].reshape(Bblk, T, DK)
            v_h = qkv[:, 2 * H * DK + h * DV:2 * H * DK + (h + 1) * DV].reshape(Bblk, T, DV)
            s = jnp.einsum("btd,bsd->bts", q_h, k_h,
                           preferred_element_type=jnp.float32) * inv_sqrt_dk
            s = s + neg_mask                           # additive key mask (finite)
            m = jnp.max(s, axis=-1, keepdims=True)
            p = jnp.exp(s - m)
            p = p * pl.reciprocal(jnp.sum(p, axis=-1, keepdims=True), approx=True)
            heads.append(jnp.einsum("bts,bsd->btd", p, v_h,
                                    preferred_element_type=jnp.float32))
        attn = jnp.concatenate(heads, axis=-1).reshape(BT, H * DV)
        attn = jnp.dot(attn, wo_ref[l], preferred_element_type=jnp.float32) + bo_ref[l]
        x2 = layer_norm(attn + residual, ln1g_ref[l], ln1b_ref[l]) * keep

        # ------------- position-wise conv FFN: im2col, single fused matmul -------
        residual = x2
        xp_ref[:, PAD1:PAD1 + T, :] = x2.reshape(Bblk, T, Dm)
        im2col = jnp.concatenate([xp_ref[:, k:k + T, :] for k in range(K1)], axis=-1)
        im2col = im2col.reshape(BT, K1 * Dm)
        h1 = jnp.dot(im2col, w1_ref[l], preferred_element_type=jnp.float32) + b1_ref[l]
        h1 = jnp.maximum(h1, 0.0)                                   # ReLU
        h2 = jnp.dot(h1, w2_ref[l], preferred_element_type=jnp.float32) + b2_ref[l]
        x2 = layer_norm(h2 + residual, ln2g_ref[l], ln2b_ref[l]) * keep

    # ------------- final Linear(hidden, 1), squeeze, masked_fill ------------------
    out = jnp.dot(x2, wlin_ref[...], preferred_element_type=jnp.float32) + blin_ref[...]
    out_ref[...] = (out * keep).reshape(Bblk, T, 1)


# ----------------------------- wrapper ---------------------------------------
def pack_params(p):
    """Repack per-head / per-tap weights into the fused layout the kernel uses."""
    wq = jnp.transpose(p["wq"], (0, 2, 1, 3)).reshape(L, D, H * DK)
    wk = jnp.transpose(p["wk"], (0, 2, 1, 3)).reshape(L, D, H * DK)
    wv = jnp.transpose(p["wv"], (0, 2, 1, 3)).reshape(L, D, H * DV)
    bq = jnp.transpose(p["bq"], (0, 2, 1, 3)).reshape(L, 1, H * DK)
    bk = jnp.transpose(p["bk"], (0, 2, 1, 3)).reshape(L, 1, H * DK)
    bv = jnp.transpose(p["bv"], (0, 2, 1, 3)).reshape(L, 1, H * DV)
    wqkv = jnp.concatenate([wq, wk, wv], axis=-1)        # (L, D, 3*H*DK)
    bqkv = jnp.concatenate([bq, bk, bv], axis=-1)        # (L, 1, 3*H*DK)
    wo = p["wo"].reshape(L, H * DV, D)                   # (L, H*DV, D)
    w1 = p["w1"].reshape(L, K1 * D, DI)                  # (L, K1*D, DI)  im2col weight
    w2 = p["w2"][:, 0]                                   # (L, DI, D)
    wlin = p["wlin"].T                                   # (D, 1)
    return [wqkv, bqkv, wo, p["bo"], p["ln1g"], p["ln1b"],
            w1, p["b1"], w2, p["b2"], p["ln2g"], p["ln2b"],
            wlin, p["blin"]]


def variance_predictor(enc, lengths, params, pos, *, block_b=4):
    B, T, D_ = enc.shape
    assert B % block_b == 0, "batch must be a multiple of the batch tile"
    lens3 = lengths.astype(jnp.int32).reshape(B, 1, 1)
    weights = pack_params(params)

    def const_spec(a):
        return pl.BlockSpec(a.shape, lambda b, n=a.ndim: (0,) * n)

    in_specs = [
        pl.BlockSpec((block_b, T, D_), lambda b: (b, 0, 0)),   # encoder_output tile
        pl.BlockSpec((block_b, 1, 1), lambda b: (b, 0, 0)),    # sequence lengths (int32)
        const_spec(pos),
    ] + [const_spec(a) for a in weights]

    out = pl.pallas_call(
        variance_predictor_kernel,
        out_shape=jax.ShapeDtypeStruct((B, T, 1), jnp.float32),
        grid=(B // block_b,),
        in_specs=in_specs,
        out_specs=pl.BlockSpec((block_b, T, 1), lambda b: (b, 0, 0)),
        scratch_shapes=[pltpu.VMEM((block_b, T + 2 * PAD1, D_), jnp.float32)],
        compiler_params=pltpu.CompilerParams(dimension_semantics=("parallel",)),
    )(enc, lens3, pos, *weights)
    return out[:, :, 0]                  # (B, T)


# ----------------------------- helpers ---------------------------------------
def sinusoid_table(n_position, d_hid):
    pos = np.arange(n_position)[:, None].astype(np.float64)
    i = np.arange(d_hid)[None, :]
    angle = pos / np.power(10000.0, 2.0 * (i // 2) / d_hid)
    table = np.zeros((n_position, d_hid), dtype=np.float32)
    table[:, 0::2] = np.sin(angle[:, 0::2])
    table[:, 1::2] = np.cos(angle[:, 1::2])
    return table


def init_params(key):
    p = {}
    state = {"key": key}

    def nrm(shape, scale):
        state["key"], sub = jax.random.split(state["key"])
        return jax.random.normal(sub, shape, dtype=jnp.float32) * scale

    p["wq"] = nrm((L, H, D, DK), 1.0 / math.sqrt(D))
    p["bq"] = nrm((L, H, 1, DK), 0.02)
    p["wk"] = nrm((L, H, D, DK), 1.0 / math.sqrt(D))
    p["bk"] = nrm((L, H, 1, DK), 0.02)
    p["wv"] = nrm((L, H, D, DV), 1.0 / math.sqrt(D))
    p["bv"] = nrm((L, H, 1, DV), 0.02)
    p["wo"] = nrm((L, H, DV, D), 1.0 / math.sqrt(H * DV))
    p["bo"] = nrm((L, 1, D), 0.02)
    p["ln1g"] = jnp.ones((L, 1, D), jnp.float32)
    p["ln1b"] = jnp.zeros((L, 1, D), jnp.float32)
    p["w1"] = nrm((L, K1, D, DI), 1.0 / math.sqrt(K1 * D))
    p["b1"] = nrm((L, 1, DI), 0.02)
    p["w2"] = nrm((L, K2, DI, D), 1.0 / math.sqrt(K2 * DI))
    p["b2"] = nrm((L, 1, D), 0.02)
    p["ln2g"] = jnp.ones((L, 1, D), jnp.float32)
    p["ln2b"] = jnp.zeros((L, 1, D), jnp.float32)
    p["wlin"] = nrm((1, D), 1.0 / math.sqrt(D))
    p["blin"] = jnp.zeros((1, 1), jnp.float32)
    return p


# ----------------------------- pure-JAX reference ----------------------------
def ref_forward(enc, mask, p, pos):
    x = enc + pos[None, :, :]
    mk = mask[:, None, :]
    mq = mask[:, :, None]

    def ln(y, g, b):
        mu = y.mean(-1, keepdims=True)
        var = ((y - mu) ** 2).mean(-1, keepdims=True)
        return (y - mu) / jnp.sqrt(var + LN_EPS) * g + b

    for l in range(L):
        res = x
        attn_out = jnp.zeros_like(x)
        for h in range(H):
            q = x @ p["wq"][l, h] + p["bq"][l, h]
            k = x @ p["wk"][l, h] + p["bk"][l, h]
            v = x @ p["wv"][l, h] + p["bv"][l, h]
            s = jnp.einsum("btd,bsd->bts", q, k) / math.sqrt(DK)
            s = jnp.where(mk, -jnp.inf, s)
            a = jax.nn.softmax(s, axis=-1)
            attn_out = attn_out + (a @ v) @ p["wo"][l, h]
        attn_out = attn_out + p["bo"][l]
        x = ln(attn_out + res, p["ln1g"][l], p["ln1b"][l])
        x = jnp.where(mq, 0.0, x)

        res = x
        xp = jnp.pad(x, ((0, 0), (PAD1, PAD1), (0, 0)))
        h1 = jnp.zeros(x.shape[:2] + (DI,), jnp.float32)
        for k in range(K1):
            h1 = h1 + xp[:, k:k + x.shape[1]] @ p["w1"][l, k]
        h1 = jax.nn.relu(h1 + p["b1"][l])
        h2 = h1 @ p["w2"][l, 0] + p["b2"][l]
        x = ln(h2 + res, p["ln2g"][l], p["ln2b"][l])
        x = jnp.where(mq, 0.0, x)

    out = jnp.einsum("btd,d->bt", x, p["wlin"][0]) + p["blin"][0, 0]
    out = jnp.where(mask, 0.0, out)
    return out


# ----------------------------- main -------------------------------------------
if __name__ == "__main__":
    B, T = 8, 8                      # batch tile = 4 -> grid of 2 parallel steps
    key = jax.random.PRNGKey(0)
    k_enc, k_par = jax.random.split(key)

    encoder_output = jax.random.normal(k_enc, (B, T, D), dtype=jnp.float32)
    lengths = jnp.array([8, 5, 3, 8, 1, 7, 2, 6], dtype=jnp.int32)
    mask = jnp.arange(T)[None, :] >= lengths[:, None]          # (B, T) bool, True = pad

    params = init_params(k_par)
    pos = jnp.asarray(sinusoid_table(hp.max_seq_len + 1, D)[:T])

    out = variance_predictor(encoder_output, lengths, params, pos, block_b=4)
    out = jax.block_until_ready(out)

    ref = jax.block_until_ready(ref_forward(encoder_output, mask, params, pos))

    assert out.shape == (B, T), out.shape
    assert np.all(np.isfinite(np.asarray(out)))
    assert np.all(np.asarray(out)[np.asarray(mask)] == 0.0)
    # tolerance accounts for the approximate EUP reciprocal used in the in-kernel softmax
    np.testing.assert_allclose(np.asarray(out), np.asarray(ref), rtol=5e-3, atol=5e-3)

    print("KERNEL_OK")
</pallas_src>

<mosaic_0001>
module attributes {stable_mosaic.version = 11 : i64} {
  func.func @variance_predictor_kernel(%arg0: i32, %arg1: memref<4x8x32xf32, #tpu.memory_space<vmem>>, %arg2: memref<4x1x1xi32, #tpu.memory_space<vmem>>, %arg3: memref<8x32xf32, #tpu.memory_space<vmem>>, %arg4: memref<2x32x96xf32, #tpu.memory_space<vmem>>, %arg5: memref<2x1x96xf32, #tpu.memory_space<vmem>>, %arg6: memref<2x32x32xf32, #tpu.memory_space<vmem>>, %arg7: memref<2x1x32xf32, #tpu.memory_space<vmem>>, %arg8: memref<2x1x32xf32, #tpu.memory_space<vmem>>, %arg9: memref<2x1x32xf32, #tpu.memory_space<vmem>>, %arg10: memref<2x288x64xf32, #tpu.memory_space<vmem>>, %arg11: memref<2x1x64xf32, #tpu.memory_space<vmem>>, %arg12: memref<2x64x32xf32, #tpu.memory_space<vmem>>, %arg13: memref<2x1x32xf32, #tpu.memory_space<vmem>>, %arg14: memref<2x1x32xf32, #tpu.memory_space<vmem>>, %arg15: memref<2x1x32xf32, #tpu.memory_space<vmem>>, %arg16: memref<32x1xf32, #tpu.memory_space<vmem>>, %arg17: memref<1x1xf32, #tpu.memory_space<vmem>>, %arg18: memref<4x8x1xf32, #tpu.memory_space<vmem>>, %arg19: memref<4x16x32xf32, #tpu.memory_space<vmem>>) attributes {dimension_semantics = [#tpu.dimension_semantics<parallel>], iteration_bounds = array<i64: 2>, scalar_prefetch = 0 : i64, scratch_operands = 1 : i64, tpu.core_type = #tpu.core_type<tc>, window_params = [{transform_indices = @transform_0, window_bounds = array<i64: 4, 8, 32>}, {transform_indices = @transform_1, window_bounds = array<i64: 4, 1, 1>}, {pipeline_mode = #tpu.pipeline_mode<synchronous>, transform_indices = @transform_2, window_bounds = array<i64: 8, 32>}, {pipeline_mode = #tpu.pipeline_mode<synchronous>, transform_indices = @transform_3, window_bounds = array<i64: 2, 32, 96>}, {pipeline_mode = #tpu.pipeline_mode<synchronous>, transform_indices = @transform_4, window_bounds = array<i64: 2, 1, 96>}, {pipeline_mode = #tpu.pipeline_mode<synchronous>, transform_indices = @transform_5, window_bounds = array<i64: 2, 32, 32>}, {pipeline_mode = #tpu.pipeline_mode<synchronous>, transform_indices = @transform_6, window_bounds = array<i64: 2, 1, 32>}, {pipeline_mode = #tpu.pipeline_mode<synchronous>, transform_indices = @transform_7, window_bounds = array<i64: 2, 1, 32>}, {pipeline_mode = #tpu.pipeline_mode<synchronous>, transform_indices = @transform_8, window_bounds = array<i64: 2, 1, 32>}, {pipeline_mode = #tpu.pipeline_mode<synchronous>, transform_indices = @transform_9, window_bounds = array<i64: 2, 288, 64>}, {pipeline_mode = #tpu.pipeline_mode<synchronous>, transform_indices = @transform_10, window_bounds = array<i64: 2, 1, 64>}, {pipeline_mode = #tpu.pipeline_mode<synchronous>, transform_indices = @transform_11, window_bounds = array<i64: 2, 64, 32>}, {pipeline_mode = #tpu.pipeline_mode<synchronous>, transform_indices = @transform_12, window_bounds = array<i64: 2, 1, 32>}, {pipeline_mode = #tpu.pipeline_mode<synchronous>, transform_indices = @transform_13, window_bounds = array<i64: 2, 1, 32>}, {pipeline_mode = #tpu.pipeline_mode<synchronous>, transform_indices = @transform_14, window_bounds = array<i64: 2, 1, 32>}, {pipeline_mode = #tpu.pipeline_mode<synchronous>, transform_indices = @transform_15, window_bounds = array<i64: 32, 1>}, {pipeline_mode = #tpu.pipeline_mode<synchronous>, transform_indices = @transform_16, window_bounds = array<i64: 1, 1>}, {transform_indices = @transform_17, window_bounds = array<i64: 4, 8, 1>}]} {
    %c0 = arith.constant 0 : index
    %c0_0 = arith.constant 0 : index
    %c0_1 = arith.constant 0 : index
    %0 = vector.load %arg1[%c0, %c0_0, %c0_1] : memref<4x8x32xf32, #tpu.memory_space<vmem>>, vector<4x8x32xf32>
    %c0_2 = arith.constant 0 : index
    %c0_3 = arith.constant 0 : index
    %1 = vector.load %arg3[%c0_2, %c0_3] : memref<8x32xf32, #tpu.memory_space<vmem>>, vector<8x32xf32>
    %2 = vector.shape_cast %1 : vector<8x32xf32> to vector<1x8x32xf32>
    %3 = vector.broadcast %2 : vector<1x8x32xf32> to vector<4x8x32xf32>
    %4 = arith.addf %0, %3 : vector<4x8x32xf32>
    %5 = vector.shape_cast %4 : vector<4x8x32xf32> to vector<32x32xf32>
    %c0_4 = arith.constant 0 : index
    %c0_5 = arith.constant 0 : index
    %c0_6 = arith.constant 0 : index
    %6 = vector.load %arg2[%c0_4, %c0_5, %c0_6] : memref<4x1x1xi32, #tpu.memory_space<vmem>>, vector<4x1x1xi32>
    %7 = tpu.iota {dimensions = array<i32: 1>} : vector<4x8x1xi32>
    %8 = tpu.iota {dimensions = array<i32: 2>} : vector<4x1x8xi32>
    %9 = vector.broadcast %6 : vector<4x1x1xi32> to vector<4x8x1xi32>
    %10 = arith.cmpi slt, %7, %9 : vector<4x8x1xi32>
    %11 = arith.extui %10 : vector<4x8x1xi1> to vector<4x8x1xi32>
    %12 = arith.sitofp %11 : vector<4x8x1xi32> to vector<4x8x1xf32>
    %13 = vector.shape_cast %12 : vector<4x8x1xf32> to vector<32x1xf32>
    %14 = vector.broadcast %6 : vector<4x1x1xi32> to vector<4x1x8xi32>
    %15 = arith.cmpi sge, %8, %14 : vector<4x1x8xi32>
    %cst = arith.constant -1.000000e+30 : f32
    %cst_7 = arith.constant 0.000000e+00 : f32
    %16 = vector.broadcast %cst : f32 to vector<4x1x8xf32>
    %17 = vector.broadcast %cst_7 : f32 to vector<4x1x8xf32>
    %18 = arith.select %15, %16, %17 : vector<4x1x8xi1>, vector<4x1x8xf32>
    %cst_8 = arith.constant 0.000000e+00 : f32
    %19 = vector.broadcast %cst_8 : f32 to vector<4x16x32xf32>
    %c0_9 = arith.constant 0 : index
    %c0_10 = arith.constant 0 : index
    %c0_11 = arith.constant 0 : index
    %20 = vector.load %arg19[%c0_9, %c0_10, %c0_11] : memref<4x16x32xf32, #tpu.memory_space<vmem>>, vector<4x16x32xf32>
    tpu.vector_store %arg19[%c0_9, %c0_10, %c0_11], %19 {strides = array<i32>} : memref<4x16x32xf32, #tpu.memory_space<vmem>>, vector<4x16x32xf32>,
    %c0_12 = arith.constant 0 : index
    %c0_13 = arith.constant 0 : index
    %c0_14 = arith.constant 0 : index
    %21 = vector.load %arg4[%c0_12, %c0_13, %c0_14] : memref<2x32x96xf32, #tpu.memory_space<vmem>>, vector<1x32x96xf32>
    %22 = vector.shape_cast %21 : vector<1x32x96xf32> to vector<32x96xf32>
    %cst_15 = arith.constant dense<0.000000e+00> : vector<32x96xf32>
    %23 = tpu.matmul %5, %22, %cst_15 {dimension_numbers = #tpu.dot_dimension_numbers<[1], [0], [0], [1], [0, 0, 1, 1], [], []>} : vector<32x32xf32>, vector<32x96xf32>, vector<32x96xf32> -> vector<32x96xf32>
    %c0_16 = arith.constant 0 : index
    %c0_17 = arith.constant 0 : index
    %c0_18 = arith.constant 0 : index
    %24 = vector.load %arg5[%c0_16, %c0_17, %c0_18] : memref<2x1x96xf32, #tpu.memory_space<vmem>>, vector<1x1x96xf32>
    %25 = vector.shape_cast %24 : vector<1x1x96xf32> to vector<1x96xf32>
    %26 = vector.broadcast %25 : vector<1x96xf32> to vector<32x96xf32>
    %27 = arith.addf %23, %26 : vector<32x96xf32>
    %28 = vector.extract_strided_slice %27 {offsets = [0, 0], sizes = [32, 16], strides = [1, 1]} : vector<32x96xf32> to vector<32x16xf32>
    %29 = vector.shape_cast %28 : vector<32x16xf32> to vector<4x8x16xf32>
    %30 = vector.extract_strided_slice %27 {offsets = [0, 32], sizes = [32, 16], strides = [1, 1]} : vector<32x96xf32> to vector<32x16xf32>
    %31 = vector.shape_cast %30 : vector<32x16xf32> to vector<4x8x16xf32>
    %32 = vector.extract_strided_slice %27 {offsets = [0, 64], sizes = [32, 16], strides = [1, 1]} : vector<32x96xf32> to vector<32x16xf32>
    %33 = vector.shape_cast %32 : vector<32x16xf32> to vector<4x8x16xf32>
    "tpu.trace_start"() <{level = 10 : i32, message = "btd,bsd->bts"}> : () -> ()
    %cst_19 = arith.constant dense<0.000000e+00> : vector<4x8x8xf32>
    %34 = tpu.matmul %29, %31, %cst_19 {dimension_numbers = #tpu.dot_dimension_numbers<[2], [2], [1], [1], [0, 0, 0, 1, 1, 1], [0], [0]>} : vector<4x8x16xf32>, vector<4x8x16xf32>, vector<4x8x8xf32> -> vector<4x8x8xf32>
    "tpu.trace_stop"() : () -> ()
    %cst_20 = arith.constant 2.500000e-01 : f32
    %35 = vector.broadcast %cst_20 : f32 to vector<4x8x8xf32>
    %36 = arith.mulf %34, %35 : vector<4x8x8xf32>
    %37 = vector.broadcast %18 : vector<4x1x8xf32> to vector<4x8x8xf32>
    %38 = arith.addf %36, %37 : vector<4x8x8xf32>
    %cst_21 = arith.constant dense<0xFF800000> : vector<4x8xf32>
    %39 = vector.multi_reduction <maximumf>, %38, %cst_21 [2] : vector<4x8x8xf32> to vector<4x8xf32>
    %40 = vector.shape_cast %39 : vector<4x8xf32> to vector<4x8x1xf32>
    %41 = vector.broadcast %40 : vector<4x8x1xf32> to vector<4x8x8xf32>
    %42 = arith.subf %38, %41 : vector<4x8x8xf32>
    %43 = math.exp %42 : vector<4x8x8xf32>
    %cst_22 = arith.constant dense<0.000000e+00> : vector<4x8xf32>
    %44 = vector.multi_reduction <add>, %43, %cst_22 [2] : vector<4x8x8xf32> to vector<4x8xf32>
    %45 = vector.shape_cast %44 : vector<4x8xf32> to vector<4x8x1xf32>
    %46 = tpu.reciprocal %45 {approx = true} : vector<4x8x1xf32> -> vector<4x8x1xf32>
    %47 = vector.broadcast %46 : vector<4x8x1xf32> to vector<4x8x8xf32>
    %48 = arith.mulf %43, %47 : vector<4x8x8xf32>
    "tpu.trace_start"() <{level = 10 : i32, message = "bts,bsd->btd"}> : () -> ()
    %cst_23 = arith.constant dense<0.000000e+00> : vector<4x8x16xf32>
    %49 = tpu.matmul %48, %33, %cst_23 {dimension_numbers = #tpu.dot_dimension_numbers<[2], [1], [1], [2], [0, 0, 0, 1, 1, 2], [0], [0]>} : vector<4x8x8xf32>, vector<4x8x16xf32>, vector<4x8x16xf32> -> vector<4x8x16xf32>
    "tpu.trace_stop"() : () -> ()
    %50 = vector.extract_strided_slice %27 {offsets = [0, 16], sizes = [32, 16], strides = [1, 1]} : vector<32x96xf32> to vector<32x16xf32>
    %51 = vector.shape_cast %50 : vector<32x16xf32> to vector<4x8x16xf32>
    %52 = vector.extract_strided_slice %27 {offsets = [0, 48], sizes = [32, 16], strides = [1, 1]} : vector<32x96xf32> to vector<32x16xf32>
    %53 = vector.shape_cast %52 : vector<32x16xf32> to vector<4x8x16xf32>
    %54 = vector.extract_strided_slice %27 {offsets = [0, 80], sizes = [32, 16], strides = [1, 1]} : vector<32x96xf32> to vector<32x16xf32>
    %55 = vector.shape_cast %54 : vector<32x16xf32> to vector<4x8x16xf32>
    "tpu.trace_start"() <{level = 10 : i32, message = "btd,bsd->bts"}> : () -> ()
    %cst_24 = arith.constant dense<0.000000e+00> : vector<4x8x8xf32>
    %56 = tpu.matmul %51, %53, %cst_24 {dimension_numbers = #tpu.dot_dimension_numbers<[2], [2], [1], [1], [0, 0, 0, 1, 1, 1], [0], [0]>} : vector<4x8x16xf32>, vector<4x8x16xf32>, vector<4x8x8xf32> -> vector<4x8x8xf32>
    "tpu.trace_stop"() : () -> ()
    %cst_25 = arith.constant 2.500000e-01 : f32
    %57 = vector.broadcast %cst_25 : f32 to vector<4x8x8xf32>
    %58 = arith.mulf %56, %57 : vector<4x8x8xf32>
    %59 = vector.broadcast %18 : vector<4x1x8xf32> to vector<4x8x8xf32>
    %60 = arith.addf %58, %59 : vector<4x8x8xf32>
    %cst_26 = arith.constant dense<0xFF800000> : vector<4x8xf32>
    %61 = vector.multi_reduction <maximumf>, %60, %cst_26 [2] : vector<4x8x8xf32> to vector<4x8xf32>
    %62 = vector.shape_cast %61 : vector<4x8xf32> to vector<4x8x1xf32>
    %63 = vector.broadcast %62 : vector<4x8x1xf32> to vector<4x8x8xf32>
    %64 = arith.subf %60, %63 : vector<4x8x8xf32>
    %65 = math.exp %64 : vector<4x8x8xf32>
    %cst_27 = arith.constant dense<0.000000e+00> : vector<4x8xf32>
    %66 = vector.multi_reduction <add>, %65, %cst_27 [2] : vector<4x8x8xf32> to vector<4x8xf32>
    %67 = vector.shape_cast %66 : vector<4x8xf32> to vector<4x8x1xf32>
    %68 = tpu.reciprocal %67 {approx = true} : vector<4x8x1xf32> -> vector<4x8x1xf32>
    %69 = vector.broadcast %68 : vector<4x8x1xf32> to vector<4x8x8xf32>
    %70 = arith.mulf %65, %69 : vector<4x8x8xf32>
    "tpu.trace_start"() <{level = 10 : i32, message = "bts,bsd->btd"}> : () -> ()
    %cst_28 = arith.constant dense<0.000000e+00> : vector<4x8x16xf32>
    %71 = tpu.matmul %70, %55, %cst_28 {dimension_numbers = #tpu.dot_dimension_numbers<[2], [1], [1], [2], [0, 0, 0, 1, 1, 2], [0], [0]>} : vector<4x8x8xf32>, vector<4x8x16xf32>, vector<4x8x16xf32> -> vector<4x8x16xf32>
    "tpu.trace_stop"() : () -> ()
    %72 = tpu.concatenate %49, %71 in 2 : vector<4x8x16xf32>, vector<4x8x16xf32> -> vector<4x8x32xf32>
    %73 = vector.shape_cast %72 : vector<4x8x32xf32> to vector<32x32xf32>
    %c0_29 = arith.constant 0 : index
    %c0_30 = arith.constant 0 : index
    %c0_31 = arith.constant 0 : index
    %74 = vector.load %arg6[%c0_29, %c0_30, %c0_31] : memref<2x32x32xf32, #tpu.memory_space<vmem>>, vector<1x32x32xf32>
    %75 = vector.shape_cast %74 : vector<1x32x32xf32> to vector<32x32xf32>
    %cst_32 = arith.constant dense<0.000000e+00> : vector<32x32xf32>
    %76 = tpu.matmul %73, %75, %cst_32 {dimension_numbers = #tpu.dot_dimension_numbers<[1], [0], [0], [1], [0, 0, 1, 1], [], []>} : vector<32x32xf32>, vector<32x32xf32>, vector<32x32xf32> -> vector<32x32xf32>
    %c0_33 = arith.constant 0 : index
    %c0_34 = arith.constant 0 : index
    %c0_35 = arith.constant 0 : index
    %77 = vector.load %arg7[%c0_33, %c0_34, %c0_35] : memref<2x1x32xf32, #tpu.memory_space<vmem>>, vector<1x1x32xf32>
    %78 = vector.shape_cast %77 : vector<1x1x32xf32> to vector<1x32xf32>
    %79 = vector.broadcast %78 : vector<1x32xf32> to vector<32x32xf32>
    %80 = arith.addf %76, %79 : vector<32x32xf32>
    %81 = arith.addf %80, %5 : vector<32x32xf32>
    %c0_36 = arith.constant 0 : index
    %c0_37 = arith.constant 0 : index
    %c0_38 = arith.constant 0 : index
    %82 = vector.load %arg8[%c0_36, %c0_37, %c0_38] : memref<2x1x32xf32, #tpu.memory_space<vmem>>, vector<1x1x32xf32>
    %83 = vector.shape_cast %82 : vector<1x1x32xf32> to vector<1x32xf32>
    %c0_39 = arith.constant 0 : index
    %c0_40 = arith.constant 0 : index
    %c0_41 = arith.constant 0 : index
    %84 = vector.load %arg9[%c0_39, %c0_40, %c0_41] : memref<2x1x32xf32, #tpu.memory_space<vmem>>, vector<1x1x32xf32>
    %85 = vector.shape_cast %84 : vector<1x1x32xf32> to vector<1x32xf32>
    %cst_42 = arith.constant dense<0.000000e+00> : vector<32xf32>
    %86 = vector.multi_reduction <add>, %81, %cst_42 [1] : vector<32x32xf32> to vector<32xf32>
    %87 = vector.shape_cast %86 : vector<32xf32> to vector<32x1xf32>
    %cst_43 = arith.constant 3.200000e+01 : f32
    %88 = vector.broadcast %cst_43 : f32 to vector<32x1xf32>
    %89 = arith.divf %87, %88 : vector<32x1xf32>
    %90 = vector.broadcast %89 : vector<32x1xf32> to vector<32x32xf32>
    %91 = arith.subf %81, %90 : vector<32x32xf32>
    %92 = arith.mulf %91, %91 : vector<32x32xf32>
    %cst_44 = arith.constant dense<0.000000e+00> : vector<32xf32>
    %93 = vector.multi_reduction <add>, %92, %cst_44 [1] : vector<32x32xf32> to vector<32xf32>
    %94 = vector.shape_cast %93 : vector<32xf32> to vector<32x1xf32>
    %cst_45 = arith.constant 3.200000e+01 : f32
    %95 = vector.broadcast %cst_45 : f32 to vector<32x1xf32>
    %96 = arith.divf %94, %95 : vector<32x1xf32>
    %97 = vector.broadcast %89 : vector<32x1xf32> to vector<32x32xf32>
    %98 = arith.subf %81, %97 : vector<32x32xf32>
    %cst_46 = arith.constant 9.99999974E-6 : f32
    %99 = vector.broadcast %cst_46 : f32 to vector<32x1xf32>
    %100 = arith.addf %96, %99 : vector<32x1xf32>
    %101 = math.rsqrt %100 : vector<32x1xf32>
    %102 = vector.broadcast %101 : vector<32x1xf32> to vector<32x32xf32>
    %103 = arith.mulf %98, %102 : vector<32x32xf32>
    %104 = vector.broadcast %83 : vector<1x32xf32> to vector<32x32xf32>
    %105 = arith.mulf %103, %104 : vector<32x32xf32>
    %106 = vector.broadcast %85 : vector<1x32xf32> to vector<32x32xf32>
    %107 = arith.addf %105, %106 : vector<32x32xf32>
    %108 = vector.broadcast %13 : vector<32x1xf32> to vector<32x32xf32>
    %109 = arith.mulf %107, %108 : vector<32x32xf32>
    %110 = vector.shape_cast %109 : vector<32x32xf32> to vector<4x8x32xf32>
    %c0_47 = arith.constant 0 : index
    %c4 = arith.constant 4 : index
    %c0_48 = arith.constant 0 : index
    %111 = vector.load %arg19[%c0_47, %c4, %c0_48] : memref<4x16x32xf32, #tpu.memory_space<vmem>>, vector<4x8x32xf32>
    tpu.vector_store %arg19[%c0_47, %c4, %c0_48], %110 {strides = array<i32>} : memref<4x16x32xf32, #tpu.memory_space<vmem>>, vector<4x8x32xf32>,
    %c0_49 = arith.constant 0 : index
    %c0_50 = arith.constant 0 : index
    %c0_51 = arith.constant 0 : index
    %112 = vector.load %arg19[%c0_49, %c0_50, %c0_51] : memref<4x16x32xf32, #tpu.memory_space<vmem>>, vector<4x8x32xf32>
    %c0_52 = arith.constant 0 : index
    %c1 = arith.constant 1 : index
    %c0_53 = arith.constant 0 : index
    %113 = vector.load %arg19[%c0_52, %c1, %c0_53] : memref<4x16x32xf32, #tpu.memory_space<vmem>>, vector<4x8x32xf32>
    %c0_54 = arith.constant 0 : index
    %c2 = arith.constant 2 : index
    %c0_55 = arith.constant 0 : index
    %114 = vector.load %arg19[%c0_54, %c2, %c0_55] : memref<4x16x32xf32, #tpu.memory_space<vmem>>, vector<4x8x32xf32>
    %c0_56 = arith.constant 0 : index
    %c3 = arith.constant 3 : index
    %c0_57 = arith.constant 0 : index
    %115 = vector.load %arg19[%c0_56, %c3, %c0_57] : memref<4x16x32xf32, #tpu.memory_space<vmem>>, vector<4x8x32xf32>
    %c0_58 = arith.constant 0 : index
    %c4_59 = arith.constant 4 : index
    %c0_60 = arith.constant 0 : index
    %116 = vector.load %arg19[%c0_58, %c4_59, %c0_60] : memref<4x16x32xf32, #tpu.memory_space<vmem>>, vector<4x8x32xf32>
    %c0_61 = arith.constant 0 : index
    %c5 = arith.constant 5 : index
    %c0_62 = arith.constant 0 : index
    %117 = vector.load %arg19[%c0_61, %c5, %c0_62] : memref<4x16x32xf32, #tpu.memory_space<vmem>>, vector<4x8x32xf32>
    %c0_63 = arith.constant 0 : index
    %c6 = arith.constant 6 : index
    %c0_64 = arith.constant 0 : index
    %118 = vector.load %arg19[%c0_63, %c6, %c0_64] : memref<4x16x32xf32, #tpu.memory_space<vmem>>, vector<4x8x32xf32>
    %c0_65 = arith.constant 0 : index
    %c7 = arith.constant 7 : index
    %c0_66 = arith.constant 0 : index
    %119 = vector.load %arg19[%c0_65, %c7, %c0_66] : memref<4x16x32xf32, #tpu.memory_space<vmem>>, vector<4x8x32xf32>
    %c0_67 = arith.constant 0 : index
    %c8 = arith.constant 8 : index
    %c0_68 = arith.constant 0 : index
    %120 = vector.load %arg19[%c0_67, %c8, %c0_68] : memref<4x16x32xf32, #tpu.memory_space<vmem>>, vector<4x8x32xf32>
    %121 = tpu.concatenate %112, %113, %114, %115, %116, %117, %118, %119, %120 in 2 : vector<4x8x32xf32>, vector<4x8x32xf32>, vector<4x8x32xf32>, vector<4x8x32xf32>, vector<4x8x32xf32>, vector<4x8x32xf32>, vector<4x8x32xf32>, vector<4x8x32xf32>, vector<4x8x32xf32> -> vector<4x8x288xf32>
    %122 = vector.shape_cast %121 : vector<4x8x288xf32> to vector<32x288xf32>
    %c0_69 = arith.constant 0 : index
    %c0_70 = arith.constant 0 : index
    %c0_71 = arith.constant 0 : index
    %123 = vector.load %arg10[%c0_69, %c0_70, %c0_71] : memref<2x288x64xf32, #tpu.memory_space<vmem>>, vector<1x288x64xf32>
    %124 = vector.shape_cast %123 : vector<1x288x64xf32> to vector<288x64xf32>
    %cst_72 = arith.constant dense<0.000000e+00> : vector<32x64xf32>
    %125 = tpu.matmul %122, %124, %cst_72 {dimension_numbers = #tpu.dot_dimension_numbers<[1], [0], [0], [1], [0, 0, 1, 1], [], []>} : vector<32x288xf32>, vector<288x64xf32>, vector<32x64xf32> -> vector<32x64xf32>
    %c0_73 = arith.constant 0 : index
    %c0_74 = arith.constant 0 : index
    %c0_75 = arith.constant 0 : index
    %126 = vector.load %arg11[%c0_73, %c0_74, %c0_75] : memref<2x1x64xf32, #tpu.memory_space<vmem>>, vector<1x1x64xf32>
    %127 = vector.shape_cast %126 : vector<1x1x64xf32> to vector<1x64xf32>
    %128 = vector.broadcast %127 : vector<1x64xf32> to vector<32x64xf32>
    %129 = arith.addf %125, %128 : vector<32x64xf32>
    %cst_76 = arith.constant 0.000000e+00 : f32
    %130 = vector.broadcast %cst_76 : f32 to vector<32x64xf32>
    %131 = arith.maximumf %129, %130 : vector<32x64xf32>
    %c0_77 = arith.constant 0 : index
    %c0_78 = arith.constant 0 : index
    %c0_79 = arith.constant 0 : index
    %132 = vector.load %arg12[%c0_77, %c0_78, %c0_79] : memref<2x64x32xf32, #tpu.memory_space<vmem>>, vector<1x64x32xf32>
    %133 = vector.shape_cast %132 : vector<1x64x32xf32> to vector<64x32xf32>
    %cst_80 = arith.constant dense<0.000000e+00> : vector<32x32xf32>
    %134 = tpu.matmul %131, %133, %cst_80 {dimension_numbers = #tpu.dot_dimension_numbers<[1], [0], [0], [1], [0, 0, 1, 1], [], []>} : vector<32x64xf32>, vector<64x32xf32>, vector<32x32xf32> -> vector<32x32xf32>
    %c0_81 = arith.constant 0 : index
    %c0_82 = arith.constant 0 : index
    %c0_83 = arith.constant 0 : index
    %135 = vector.load %arg13[%c0_81, %c0_82, %c0_83] : memref<2x1x32xf32, #tpu.memory_space<vmem>>, vector<1x1x32xf32>
    %136 = vector.shape_cast %135 : vector<1x1x32xf32> to vector<1x32xf32>
    %137 = vector.broadcast %136 : vector<1x32xf32> to vector<32x32xf32>
    %138 = arith.addf %134, %137 : vector<32x32xf32>
    %139 = arith.addf %138, %109 : vector<32x32xf32>
    %c0_84 = arith.constant 0 : index
    %c0_85 = arith.constant 0 : index
    %c0_86 = arith.constant 0 : index
    %140 = vector.load %arg14[%c0_84, %c0_85, %c0_86] : memref<2x1x32xf32, #tpu.memory_space<vmem>>, vector<1x1x32xf32>
    %141 = vector.shape_cast %140 : vector<1x1x32xf32> to vector<1x32xf32>
    %c0_87 = arith.constant 0 : index
    %c0_88 = arith.constant 0 : index
    %c0_89 = arith.constant 0 : index
    %142 = vector.load %arg15[%c0_87, %c0_88, %c0_89] : memref<2x1x32xf32, #tpu.memory_space<vmem>>, vector<1x1x32xf32>
    %143 = vector.shape_cast %142 : vector<1x1x32xf32> to vector<1x32xf32>
    %cst_90 = arith.constant dense<0.000000e+00> : vector<32xf32>
    %144 = vector.multi_reduction <add>, %139, %cst_90 [1] : vector<32x32xf32> to vector<32xf32>
    %145 = vector.shape_cast %144 : vector<32xf32> to vector<32x1xf32>
    %cst_91 = arith.constant 3.200000e+01 : f32
    %146 = vector.broadcast %cst_91 : f32 to vector<32x1xf32>
    %147 = arith.divf %145, %146 : vector<32x1xf32>
    %148 = vector.broadcast %147 : vector<32x1xf32> to vector<32x32xf32>
    %149 = arith.subf %139, %148 : vector<32x32xf32>
    %150 = arith.mulf %149, %149 : vector<32x32xf32>
    %cst_92 = arith.constant dense<0.000000e+00> : vector<32xf32>
    %151 = vector.multi_reduction <add>, %150, %cst_92 [1] : vector<32x32xf32> to vector<32xf32>
    %152 = vector.shape_cast %151 : vector<32xf32> to vector<32x1xf32>
    %cst_93 = arith.constant 3.200000e+01 : f32
    %153 = vector.broadcast %cst_93 : f32 to vector<32x1xf32>
    %154 = arith.divf %152, %153 : vector<32x1xf32>
    %155 = vector.broadcast %147 : vector<32x1xf32> to vector<32x32xf32>
    %156 = arith.subf %139, %155 : vector<32x32xf32>
    %cst_94 = arith.constant 9.99999974E-6 : f32
    %157 = vector.broadcast %cst_94 : f32 to vector<32x1xf32>
    %158 = arith.addf %154, %157 : vector<32x1xf32>
    %159 = math.rsqrt %158 : vector<32x1xf32>
    %160 = vector.broadcast %159 : vector<32x1xf32> to vector<32x32xf32>
    %161 = arith.mulf %156, %160 : vector<32x32xf32>
    %162 = vector.broadcast %141 : vector<1x32xf32> to vector<32x32xf32>
    %163 = arith.mulf %161, %162 : vector<32x32xf32>
    %164 = vector.broadcast %143 : vector<1x32xf32> to vector<32x32xf32>
    %165 = arith.addf %163, %164 : vector<32x32xf32>
    %166 = vector.broadcast %13 : vector<32x1xf32> to vector<32x32xf32>
    %167 = arith.mulf %165, %166 : vector<32x32xf32>
    %c1_95 = arith.constant 1 : index
    %c0_96 = arith.constant 0 : index
    %c0_97 = arith.constant 0 : index
    %168 = vector.load %arg4[%c1_95, %c0_96, %c0_97] : memref<2x32x96xf32, #tpu.memory_space<vmem>>, vector<1x32x96xf32>
    %169 = vector.shape_cast %168 : vector<1x32x96xf32> to vector<32x96xf32>
    %cst_98 = arith.constant dense<0.000000e+00> : vector<32x96xf32>
    %170 = tpu.matmul %167, %169, %cst_98 {dimension_numbers = #tpu.dot_dimension_numbers<[1], [0], [0], [1], [0, 0, 1, 1], [], []>} : vector<32x32xf32>, vector<32x96xf32>, vector<32x96xf32> -> vector<32x96xf32>
    %c1_99 = arith.constant 1 : index
    %c0_100 = arith.constant 0 : index
    %c0_101 = arith.constant 0 : index
    %171 = vector.load %arg5[%c1_99, %c0_100, %c0_101] : memref<2x1x96xf32, #tpu.memory_space<vmem>>, vector<1x1x96xf32>
    %172 = vector.shape_cast %171 : vector<1x1x96xf32> to vector<1x96xf32>
    %173 = vector.broadcast %172 : vector<1x96xf32> to vector<32x96xf32>
    %174 = arith.addf %170, %173 : vector<32x96xf32>
    %175 = vector.extract_strided_slice %174 {offsets = [0, 0], sizes = [32, 16], strides = [1, 1]} : vector<32x96xf32> to vector<32x16xf32>
    %176 = vector.shape_cast %175 : vector<32x16xf32> to vector<4x8x16xf32>
    %177 = vector.extract_strided_slice %174 {offsets = [0, 32], sizes = [32, 16], strides = [1, 1]} : vector<32x96xf32> to vector<32x16xf32>
    %178 = vector.shape_cast %177 : vector<32x16xf32> to vector<4x8x16xf32>
    %179 = vector.extract_strided_slice %174 {offsets = [0, 64], sizes = [32, 16], strides = [1, 1]} : vector<32x96xf32> to vector<32x16xf32>
    %180 = vector.shape_cast %179 : vector<32x16xf32> to vector<4x8x16xf32>
    "tpu.trace_start"() <{level = 10 : i32, message = "btd,bsd->bts"}> : () -> ()
    %cst_102 = arith.constant dense<0.000000e+00> : vector<4x8x8xf32>
    %181 = tpu.matmul %176, %178, %cst_102 {dimension_numbers = #tpu.dot_dimension_numbers<[2], [2], [1], [1], [0, 0, 0, 1, 1, 1], [0], [0]>} : vector<4x8x16xf32>, vector<4x8x16xf32>, vector<4x8x8xf32> -> vector<4x8x8xf32>
    "tpu.trace_stop"() : () -> ()
    %cst_103 = arith.constant 2.500000e-01 : f32
    %182 = vector.broadcast %cst_103 : f32 to vector<4x8x8xf32>
    %183 = arith.mulf %181, %182 : vector<4x8x8xf32>
    %184 = vector.broadcast %18 : vector<4x1x8xf32> to vector<4x8x8xf32>
    %185 = arith.addf %183, %184 : vector<4x8x8xf32>
    %cst_104 = arith.constant dense<0xFF800000> : vector<4x8xf32>
    %186 = vector.multi_reduction <maximumf>, %185, %cst_104 [2] : vector<4x8x8xf32> to vector<4x8xf32>
    %187 = vector.shape_cast %186 : vector<4x8xf32> to vector<4x8x1xf32>
    %188 = vector.broadcast %187 : vector<4x8x1xf32> to vector<4x8x8xf32>
    %189 = arith.subf %185, %188 : vector<4x8x8xf32>
    %190 = math.exp %189 : vector<4x8x8xf32>
    %cst_105 = arith.constant dense<0.000000e+00> : vector<4x8xf32>
    %191 = vector.multi_reduction <add>, %190, %cst_105 [2] : vector<4x8x8xf32> to vector<4x8xf32>
    %192 = vector.shape_cast %191 : vector<4x8xf32> to vector<4x8x1xf32>
    %193 = tpu.reciprocal %192 {approx = true} : vector<4x8x1xf32> -> vector<4x8x1xf32>
    %194 = vector.broadcast %193 : vector<4x8x1xf32> to vector<4x8x8xf32>
    %195 = arith.mulf %190, %194 : vector<4x8x8xf32>
    "tpu.trace_start"() <{level = 10 : i32, message = "bts,bsd->btd"}> : () -> ()
    %cst_106 = arith.constant dense<0.000000e+00> : vector<4x8x16xf32>
    %196 = tpu.matmul %195, %180, %cst_106 {dimension_numbers = #tpu.dot_dimension_numbers<[2], [1], [1], [2], [0, 0, 0, 1, 1, 2], [0], [0]>} : vector<4x8x8xf32>, vector<4x8x16xf32>, vector<4x8x16xf32> -> vector<4x8x16xf32>
    "tpu.trace_stop"() : () -> ()
    %197 = vector.extract_strided_slice %174 {offsets = [0, 16], sizes = [32, 16], strides = [1, 1]} : vector<32x96xf32> to vector<32x16xf32>
    %198 = vector.shape_cast %197 : vector<32x16xf32> to vector<4x8x16xf32>
    %199 = vector.extract_strided_slice %174 {offsets = [0, 48], sizes = [32, 16], strides = [1, 1]} : vector<32x96xf32> to vector<32x16xf32>
    %200 = vector.shape_cast %199 : vector<32x16xf32> to vector<4x8x16xf32>
    %201 = vector.extract_strided_slice %174 {offsets = [0, 80], sizes = [32, 16], strides = [1, 1]} : vector<32x96xf32> to vector<32x16xf32>
    %202 = vector.shape_cast %201 : vector<32x16xf32> to vector<4x8x16xf32>
    "tpu.trace_start"() <{level = 10 : i32, message = "btd,bsd->bts"}> : () -> ()
    %cst_107 = arith.constant dense<0.000000e+00> : vector<4x8x8xf32>
    %203 = tpu.matmul %198, %200, %cst_107 {dimension_numbers = #tpu.dot_dimension_numbers<[2], [2], [1], [1], [0, 0, 0, 1, 1, 1], [0], [0]>} : vector<4x8x16xf32>, vector<4x8x16xf32>, vector<4x8x8xf32> -> vector<4x8x8xf32>
    "tpu.trace_stop"() : () -> ()
    %cst_108 = arith.constant 2.500000e-01 : f32
    %204 = vector.broadcast %cst_108 : f32 to vector<4x8x8xf32>
    %205 = arith.mulf %203, %204 : vector<4x8x8xf32>
    %206 = vector.broadcast %18 : vector<4x1x8xf32> to vector<4x8x8xf32>
    %207 = arith.addf %205, %206 : vector<4x8x8xf32>
    %cst_109 = arith.constant dense<0xFF800000> : vector<4x8xf32>
    %208 = vector.multi_reduction <maximumf>, %207, %cst_109 [2] : vector<4x8x8xf32> to vector<4x8xf32>
    %209 = vector.shape_cast %208 : vector<4x8xf32> to vector<4x8x1xf32>
    %210 = vector.broadcast %209 : vector<4x8x1xf32> to vector<4x8x8xf32>
    %211 = arith.subf %207, %210 : vector<4x8x8xf32>
    %212 = math.exp %211 : vector<4x8x8xf32>
    %cst_110 = arith.constant dense<0.000000e+00> : vector<4x8xf32>
    %213 = vector.multi_reduction <add>, %212, %cst_110 [2] : vector<4x8x8xf32> to vector<4x8xf32>
    %214 = vector.shape_cast %213 : vector<4x8xf32> to vector<4x8x1xf32>
    %215 = tpu.reciprocal %214 {approx = true} : vector<4x8x1xf32> -> vector<4x8x1xf32>
    %216 = vector.broadcast %215 : vector<4x8x1xf32> to vector<4x8x8xf32>
    %217 = arith.mulf %212, %216 : vector<4x8x8xf32>
    "tpu.trace_start"() <{level = 10 : i32, message = "bts,bsd->btd"}> : () -> ()
    %cst_111 = arith.constant dense<0.000000e+00> : vector<4x8x16xf32>
    %218 = tpu.matmul %217, %202, %cst_111 {dimension_numbers = #tpu.dot_dimension_numbers<[2], [1], [1], [2], [0, 0, 0, 1, 1, 2], [0], [0]>} : vector<4x8x8xf32>, vector<4x8x16xf32>, vector<4x8x16xf32> -> vector<4x8x16xf32>
    "tpu.trace_stop"() : () -> ()
    %219 = tpu.concatenate %196, %218 in 2 : vector<4x8x16xf32>, vector<4x8x16xf32> -> vector<4x8x32xf32>
    %220 = vector.shape_cast %219 : vector<4x8x32xf32> to vector<32x32xf32>
    %c1_112 = arith.constant 1 : index
    %c0_113 = arith.constant 0 : index
    %c0_114 = arith.constant 0 : index
    %221 = vector.load %arg6[%c1_112, %c0_113, %c0_114] : memref<2x32x32xf32, #tpu.memory_space<vmem>>, vector<1x32x32xf32>
    %222 = vector.shape_cast %221 : vector<1x32x32xf32> to vector<32x32xf32>
    %cst_115 = arith.constant dense<0.000000e+00> : vector<32x32xf32>
    %223 = tpu.matmul %220, %222, %cst_115 {dimension_numbers = #tpu.dot_dimension_numbers<[1], [0], [0], [1], [0, 0, 1, 1], [], []>} : vector<32x32xf32>, vector<32x32xf32>, vector<32x32xf32> -> vector<32x32xf32>
    %c1_116 = arith.constant 1 : index
    %c0_117 = arith.constant 0 : index
    %c0_118 = arith.constant 0 : index
    %224 = vector.load %arg7[%c1_116, %c0_117, %c0_118] : memref<2x1x32xf32, #tpu.memory_space<vmem>>, vector<1x1x32xf32>
    %225 = vector.shape_cast %224 : vector<1x1x32xf32> to vector<1x32xf32>
    %226 = vector.broadcast %225 : vector<1x32xf32> to vector<32x32xf32>
    %227 = arith.addf %223, %226 : vector<32x32xf32>
    %228 = arith.addf %227, %167 : vector<32x32xf32>
    %c1_119 = arith.constant 1 : index
    %c0_120 = arith.constant 0 : index
    %c0_121 = arith.constant 0 : index
    %229 = vector.load %arg8[%c1_119, %c0_120, %c0_121] : memref<2x1x32xf32, #tpu.memory_space<vmem>>, vector<1x1x32xf32>
    %230 = vector.shape_cast %229 : vector<1x1x32xf32> to vector<1x32xf32>
    %c1_122 = arith.constant 1 : index
    %c0_123 = arith.constant 0 : index
    %c0_124 = arith.constant 0 : index
    %231 = vector.load %arg9[%c1_122, %c0_123, %c0_124] : memref<2x1x32xf32, #tpu.memory_space<vmem>>, vector<1x1x32xf32>
    %232 = vector.shape_cast %231 : vector<1x1x32xf32> to vector<1x32xf32>
    %cst_125 = arith.constant dense<0.000000e+00> : vector<32xf32>
    %233 = vector.multi_reduction <add>, %228, %cst_125 [1] : vector<32x32xf32> to vector<32xf32>
    %234 = vector.shape_cast %233 : vector<32xf32> to vector<32x1xf32>
    %cst_126 = arith.constant 3.200000e+01 : f32
    %235 = vector.broadcast %cst_126 : f32 to vector<32x1xf32>
    %236 = arith.divf %234, %235 : vector<32x1xf32>
    %237 = vector.broadcast %236 : vector<32x1xf32> to vector<32x32xf32>
    %238 = arith.subf %228, %237 : vector<32x32xf32>
    %239 = arith.mulf %238, %238 : vector<32x32xf32>
    %cst_127 = arith.constant dense<0.000000e+00> : vector<32xf32>
    %240 = vector.multi_reduction <add>, %239, %cst_127 [1] : vector<32x32xf32> to vector<32xf32>
    %241 = vector.shape_cast %240 : vector<32xf32> to vector<32x1xf32>
    %cst_128 = arith.constant 3.200000e+01 : f32
    %242 = vector.broadcast %cst_128 : f32 to vector<32x1xf32>
    %243 = arith.divf %241, %242 : vector<32x1xf32>
    %244 = vector.broadcast %236 : vector<32x1xf32> to vector<32x32xf32>
    %245 = arith.subf %228, %244 : vector<32x32xf32>
    %cst_129 = arith.constant 9.99999974E-6 : f32
    %246 = vector.broadcast %cst_129 : f32 to vector<32x1xf32>
    %247 = arith.addf %243, %246 : vector<32x1xf32>
    %248 = math.rsqrt %247 : vector<32x1xf32>
    %249 = vector.broadcast %248 : vector<32x1xf32> to vector<32x32xf32>
    %250 = arith.mulf %245, %249 : vector<32x32xf32>
    %251 = vector.broadcast %230 : vector<1x32xf32> to vector<32x32xf32>
    %252 = arith.mulf %250, %251 : vector<32x32xf32>
    %253 = vector.broadcast %232 : vector<1x32xf32> to vector<32x32xf32>
    %254 = arith.addf %252, %253 : vector<32x32xf32>
    %255 = vector.broadcast %13 : vector<32x1xf32> to vector<32x32xf32>
    %256 = arith.mulf %254, %255 : vector<32x32xf32>
    %257 = vector.shape_cast %256 : vector<32x32xf32> to vector<4x8x32xf32>
    %c0_130 = arith.constant 0 : index
    %c4_131 = arith.constant 4 : index
    %c0_132 = arith.constant 0 : index
    %258 = vector.load %arg19[%c0_130, %c4_131, %c0_132] : memref<4x16x32xf32, #tpu.memory_space<vmem>>, vector<4x8x32xf32>
    tpu.vector_store %arg19[%c0_130, %c4_131, %c0_132], %257 {strides = array<i32>} : memref<4x16x32xf32, #tpu.memory_space<vmem>>, vector<4x8x32xf32>,
    %c0_133 = arith.constant 0 : index
    %c0_134 = arith.constant 0 : index
    %c0_135 = arith.constant 0 : index
    %259 = vector.load %arg19[%c0_133, %c0_134, %c0_135] : memref<4x16x32xf32, #tpu.memory_space<vmem>>, vector<4x8x32xf32>
    %c0_136 = arith.constant 0 : index
    %c1_137 = arith.constant 1 : index
    %c0_138 = arith.constant 0 : index
    %260 = vector.load %arg19[%c0_136, %c1_137, %c0_138] : memref<4x16x32xf32, #tpu.memory_space<vmem>>, vector<4x8x32xf32>
    %c0_139 = arith.constant 0 : index
    %c2_140 = arith.constant 2 : index
    %c0_141 = arith.constant 0 : index
    %261 = vector.load %arg19[%c0_139, %c2_140, %c0_141] : memref<4x16x32xf32, #tpu.memory_space<vmem>>, vector<4x8x32xf32>
    %c0_142 = arith.constant 0 : index
    %c3_143 = arith.constant 3 : index
    %c0_144 = arith.constant 0 : index
    %262 = vector.load %arg19[%c0_142, %c3_143, %c0_144] : memref<4x16x32xf32, #tpu.memory_space<vmem>>, vector<4x8x32xf32>
    %c0_145 = arith.constant 0 : index
    %c4_146 = arith.constant 4 : index
    %c0_147 = arith.constant 0 : index
    %263 = vector.load %arg19[%c0_145, %c4_146, %c0_147] : memref<4x16x32xf32, #tpu.memory_space<vmem>>, vector<4x8x32xf32>
    %c0_148 = arith.constant 0 : index
    %c5_149 = arith.constant 5 : index
    %c0_150 = arith.constant 0 : index
    %264 = vector.load %arg19[%c0_148, %c5_149, %c0_150] : memref<4x16x32xf32, #tpu.memory_space<vmem>>, vector<4x8x32xf32>
    %c0_151 = arith.constant 0 : index
    %c6_152 = arith.constant 6 : index
    %c0_153 = arith.constant 0 : index
    %265 = vector.load %arg19[%c0_151, %c6_152, %c0_153] : memref<4x16x32xf32, #tpu.memory_space<vmem>>, vector<4x8x32xf32>
    %c0_154 = arith.constant 0 : index
    %c7_155 = arith.constant 7 : index
    %c0_156 = arith.constant 0 : index
    %266 = vector.load %arg19[%c0_154, %c7_155, %c0_156] : memref<4x16x32xf32, #tpu.memory_space<vmem>>, vector<4x8x32xf32>
    %c0_157 = arith.constant 0 : index
    %c8_158 = arith.constant 8 : index
    %c0_159 = arith.constant 0 : index
    %267 = vector.load %arg19[%c0_157, %c8_158, %c0_159] : memref<4x16x32xf32, #tpu.memory_space<vmem>>, vector<4x8x32xf32>
    %268 = tpu.concatenate %259, %260, %261, %262, %263, %264, %265, %266, %267 in 2 : vector<4x8x32xf32>, vector<4x8x32xf32>, vector<4x8x32xf32>, vector<4x8x32xf32>, vector<4x8x32xf32>, vector<4x8x32xf32>, vector<4x8x32xf32>, vector<4x8x32xf32>, vector<4x8x32xf32> -> vector<4x8x288xf32>
    %269 = vector.shape_cast %268 : vector<4x8x288xf32> to vector<32x288xf32>
    %c1_160 = arith.constant 1 : index
    %c0_161 = arith.constant 0 : index
    %c0_162 = arith.constant 0 : index
    %270 = vector.load %arg10[%c1_160, %c0_161, %c0_162] : memref<2x288x64xf32, #tpu.memory_space<vmem>>, vector<1x288x64xf32>
    %271 = vector.shape_cast %270 : vector<1x288x64xf32> to vector<288x64xf32>
    %cst_163 = arith.constant dense<0.000000e+00> : vector<32x64xf32>
    %272 = tpu.matmul %269, %271, %cst_163 {dimension_numbers = #tpu.dot_dimension_numbers<[1], [0], [0], [1], [0, 0, 1, 1], [], []>} : vector<32x288xf32>, vector<288x64xf32>, vector<32x64xf32> -> vector<32x64xf32>
    %c1_164 = arith.constant 1 : index
    %c0_165 = arith.constant 0 : index
    %c0_166 = arith.constant 0 : index
    %273 = vector.load %arg11[%c1_164, %c0_165, %c0_166] : memref<2x1x64xf32, #tpu.memory_space<vmem>>, vector<1x1x64xf32>
    %274 = vector.shape_cast %273 : vector<1x1x64xf32> to vector<1x64xf32>
    %275 = vector.broadcast %274 : vector<1x64xf32> to vector<32x64xf32>
    %276 = arith.addf %272, %275 : vector<32x64xf32>
    %cst_167 = arith.constant 0.000000e+00 : f32
    %277 = vector.broadcast %cst_167 : f32 to vector<32x64xf32>
    %278 = arith.maximumf %276, %277 : vector<32x64xf32>
    %c1_168 = arith.constant 1 : index
    %c0_169 = arith.constant 0 : index
    %c0_170 = arith.constant 0 : index
    %279 = vector.load %arg12[%c1_168, %c0_169, %c0_170] : memref<2x64x32xf32, #tpu.memory_space<vmem>>, vector<1x64x32xf32>
    %280 = vector.shape_cast %279 : vector<1x64x32xf32> to vector<64x32xf32>
    %cst_171 = arith.constant dense<0.000000e+00> : vector<32x32xf32>
    %281 = tpu.matmul %278, %280, %cst_171 {dimension_numbers = #tpu.dot_dimension_numbers<[1], [0], [0], [1], [0, 0, 1, 1], [], []>} : vector<32x64xf32>, vector<64x32xf32>, vector<32x32xf32> -> vector<32x32xf32>
    %c1_172 = arith.constant 1 : index
    %c0_173 = arith.constant 0 : index
    %c0_174 = arith.constant 0 : index
    %282 = vector.load %arg13[%c1_172, %c0_173, %c0_174] : memref<2x1x32xf32, #tpu.memory_space<vmem>>, vector<1x1x32xf32>
    %283 = vector.shape_cast %282 : vector<1x1x32xf32> to vector<1x32xf32>
    %284 = vector.broadcast %283 : vector<1x32xf32> to vector<32x32xf32>
    %285 = arith.addf %281, %284 : vector<32x32xf32>
    %286 = arith.addf %285, %256 : vector<32x32xf32>
    %c1_175 = arith.constant 1 : index
    %c0_176 = arith.constant 0 : index
    %c0_177 = arith.constant 0 : index
    %287 = vector.load %arg14[%c1_175, %c0_176, %c0_177] : memref<2x1x32xf32, #tpu.memory_space<vmem>>, vector<1x1x32xf32>
    %288 = vector.shape_cast %287 : vector<1x1x32xf32> to vector<1x32xf32>
    %c1_178 = arith.constant 1 : index
    %c0_179 = arith.constant 0 : index
    %c0_180 = arith.constant 0 : index
    %289 = vector.load %arg15[%c1_178, %c0_179, %c0_180] : memref<2x1x32xf32, #tpu.memory_space<vmem>>, vector<1x1x32xf32>
    %290 = vector.shape_cast %289 : vector<1x1x32xf32> to vector<1x32xf32>
    %cst_181 = arith.constant dense<0.000000e+00> : vector<32xf32>
    %291 = vector.multi_reduction <add>, %286, %cst_181 [1] : vector<32x32xf32> to vector<32xf32>
    %292 = vector.shape_cast %291 : vector<32xf32> to vector<32x1xf32>
    %cst_182 = arith.constant 3.200000e+01 : f32
    %293 = vector.broadcast %cst_182 : f32 to vector<32x1xf32>
    %294 = arith.divf %292, %293 : vector<32x1xf32>
    %295 = vector.broadcast %294 : vector<32x1xf32> to vector<32x32xf32>
    %296 = arith.subf %286, %295 : vector<32x32xf32>
    %297 = arith.mulf %296, %296 : vector<32x32xf32>
    %cst_183 = arith.constant dense<0.000000e+00> : vector<32xf32>
    %298 = vector.multi_reduction <add>, %297, %cst_183 [1] : vector<32x32xf32> to vector<32xf32>
    %299 = vector.shape_cast %298 : vector<32xf32> to vector<32x1xf32>
    %cst_184 = arith.constant 3.200000e+01 : f32
    %300 = vector.broadcast %cst_184 : f32 to vector<32x1xf32>
    %301 = arith.divf %299, %300 : vector<32x1xf32>
    %302 = vector.broadcast %294 : vector<32x1xf32> to vector<32x32xf32>
    %303 = arith.subf %286, %302 : vector<32x32xf32>
    %cst_185 = arith.constant 9.99999974E-6 : f32
    %304 = vector.broadcast %cst_185 : f32 to vector<32x1xf32>
    %305 = arith.addf %301, %304 : vector<32x1xf32>
    %306 = math.rsqrt %305 : vector<32x1xf32>
    %307 = vector.broadcast %306 : vector<32x1xf32> to vector<32x32xf32>
    %308 = arith.mulf %303, %307 : vector<32x32xf32>
    %309 = vector.broadcast %288 : vector<1x32xf32> to vector<32x32xf32>
    %310 = arith.mulf %308, %309 : vector<32x32xf32>
    %311 = vector.broadcast %290 : vector<1x32xf32> to vector<32x32xf32>
    %312 = arith.addf %310, %311 : vector<32x32xf32>
    %313 = vector.broadcast %13 : vector<32x1xf32> to vector<32x32xf32>
    %314 = arith.mulf %312, %313 : vector<32x32xf32>
    %c0_186 = arith.constant 0 : index
    %c0_187 = arith.constant 0 : index
    %315 = vector.load %arg16[%c0_186, %c0_187] : memref<32x1xf32, #tpu.memory_space<vmem>>, vector<32x1xf32>
    %cst_188 = arith.constant dense<0.000000e+00> : vector<32x1xf32>
    %316 = tpu.matmul %314, %315, %cst_188 {dimension_numbers = #tpu.dot_dimension_numbers<[1], [0], [0], [1], [0, 0, 1, 1], [], []>} : vector<32x32xf32>, vector<32x1xf32>, vector<32x1xf32> -> vector<32x1xf32>
    %c0_189 = arith.constant 0 : index
    %c0_190 = arith.constant 0 : index
    %317 = vector.load %arg17[%c0_189, %c0_190] : memref<1x1xf32, #tpu.memory_space<vmem>>, vector<1x1xf32>
    %318 = vector.broadcast %317 : vector<1x1xf32> to vector<32x1xf32>
    %319 = arith.addf %316, %318 : vector<32x1xf32>
    %320 = arith.mulf %319, %13 : vector<32x1xf32>
    %321 = vector.shape_cast %320 : vector<32x1xf32> to vector<4x8x1xf32>
    %c0_191 = arith.constant 0 : index
    %c0_192 = arith.constant 0 : index
    %c0_193 = arith.constant 0 : index
    %322 = vector.load %arg18[%c0_191, %c0_192, %c0_193] : memref<4x8x1xf32, #tpu.memory_space<vmem>>, vector<4x8x1xf32>
    tpu.vector_store %arg18[%c0_191, %c0_192, %c0_193], %321 {strides = array<i32>} : memref<4x8x1xf32, #tpu.memory_space<vmem>>, vector<4x8x1xf32>,
    return
  }
  func.func @transform_0(%arg0: i32) -> (i32, i32, i32) {
    %c0_i32 = arith.constant 0 : i32
    %c0_i32_0 = arith.constant 0 : i32
    %c0_i32_1 = arith.constant 0 : i32
    return %arg0, %c0_i32, %c0_i32_0 : i32, i32, i32
  }
  func.func @transform_1(%arg0: i32) -> (i32, i32, i32) {
    %c0_i32 = arith.constant 0 : i32
    %c0_i32_0 = arith.constant 0 : i32
    %c0_i32_1 = arith.constant 0 : i32
    return %arg0, %c0_i32, %c0_i32_0 : i32, i32, i32
  }
  func.func @transform_2(%arg0: i32) -> (i32, i32) {
    %c0_i32 = arith.constant 0 : i32
    %c0_i32_0 = arith.constant 0 : i32
    %c0_i32_1 = arith.constant 0 : i32
    return %c0_i32, %c0_i32_0 : i32, i32
  }
  func.func @transform_3(%arg0: i32) -> (i32, i32, i32) {
    %c0_i32 = arith.constant 0 : i32
    %c0_i32_0 = arith.constant 0 : i32
    %c0_i32_1 = arith.constant 0 : i32
    %c0_i32_2 = arith.constant 0 : i32
    return %c0_i32, %c0_i32_0, %c0_i32_1 : i32, i32, i32
  }
  func.func @transform_4(%arg0: i32) -> (i32, i32, i32) {
    %c0_i32 = arith.constant 0 : i32
    %c0_i32_0 = arith.constant 0 : i32
    %c0_i32_1 = arith.constant 0 : i32
    %c0_i32_2 = arith.constant 0 : i32
    return %c0_i32, %c0_i32_0, %c0_i32_1 : i32, i32, i32
  }
  func.func @transform_5(%arg0: i32) -> (i32, i32, i32) {
    %c0_i32 = arith.constant 0 : i32
    %c0_i32_0 = arith.constant 0 : i32
    %c0_i32_1 = arith.constant 0 : i32
    %c0_i32_2 = arith.constant 0 : i32
    return %c0_i32, %c0_i32_0, %c0_i32_1 : i32, i32, i32
  }
  func.func @transform_6(%arg0: i32) -> (i32, i32, i32) {
    %c0_i32 = arith.constant 0 : i32
    %c0_i32_0 = arith.constant 0 : i32
    %c0_i32_1 = arith.constant 0 : i32
    %c0_i32_2 = arith.constant 0 : i32
    return %c0_i32, %c0_i32_0, %c0_i32_1 : i32, i32, i32
  }
  func.func @transform_7(%arg0: i32) -> (i32, i32, i32) {
    %c0_i32 = arith.constant 0 : i32
    %c0_i32_0 = arith.constant 0 : i32
    %c0_i32_1 = arith.constant 0 : i32
    %c0_i32_2 = arith.constant 0 : i32
    return %c0_i32, %c0_i32_0, %c0_i32_1 : i32, i32, i32
  }
  func.func @transform_8(%arg0: i32) -> (i32, i32, i32) {
    %c0_i32 = arith.constant 0 : i32
    %c0_i32_0 = arith.constant 0 : i32
    %c0_i32_1 = arith.constant 0 : i32
    %c0_i32_2 = arith.constant 0 : i32
    return %c0_i32, %c0_i32_0, %c0_i32_1 : i32, i32, i32
  }
  func.func @transform_9(%arg0: i32) -> (i32, i32, i32) {
    %c0_i32 = arith.constant 0 : i32
    %c0_i32_0 = arith.constant 0 : i32
    %c0_i32_1 = arith.constant 0 : i32
    %c0_i32_2 = arith.constant 0 : i32
    return %c0_i32, %c0_i32_0, %c0_i32_1 : i32, i32, i32
  }
  func.func @transform_10(%arg0: i32) -> (i32, i32, i32) {
    %c0_i32 = arith.constant 0 : i32
    %c0_i32_0 = arith.constant 0 : i32
    %c0_i32_1 = arith.constant 0 : i32
    %c0_i32_2 = arith.constant 0 : i32
    return %c0_i32, %c0_i32_0, %c0_i32_1 : i32, i32, i32
  }
  func.func @transform_11(%arg0: i32) -> (i32, i32, i32) {
    %c0_i32 = arith.constant 0 : i32
    %c0_i32_0 = arith.constant 0 : i32
    %c0_i32_1 = arith.constant 0 : i32
    %c0_i32_2 = arith.constant 0 : i32
    return %c0_i32, %c0_i32_0, %c0_i32_1 : i32, i32, i32
  }
  func.func @transform_12(%arg0: i32) -> (i32, i32, i32) {
    %c0_i32 = arith.constant 0 : i32
    %c0_i32_0 = arith.constant 0 : i32
    %c0_i32_1 = arith.constant 0 : i32
    %c0_i32_2 = arith.constant 0 : i32
    return %c0_i32, %c0_i32_0, %c0_i32_1 : i32, i32, i32
  }
  func.func @transform_13(%arg0: i32) -> (i32, i32, i32) {
    %c0_i32 = arith.constant 0 : i32
    %c0_i32_0 = arith.constant 0 : i32
    %c0_i32_1 = arith.constant 0 : i32
    %c0_i32_2 = arith.constant 0 : i32
    return %c0_i32, %c0_i32_0, %c0_i32_1 : i32, i32, i32
  }
  func.func @transform_14(%arg0: i32) -> (i32, i32, i32) {
    %c0_i32 = arith.constant 0 : i32
    %c0_i32_0 = arith.constant 0 : i32
    %c0_i32_1 = arith.constant 0 : i32
    %c0_i32_2 = arith.constant 0 : i32
    return %c0_i32, %c0_i32_0, %c0_i32_1 : i32, i32, i32
  }
  func.func @transform_15(%arg0: i32) -> (i32, i32) {
    %c0_i32 = arith.constant 0 : i32
    %c0_i32_0 = arith.constant 0 : i32
    %c0_i32_1 = arith.constant 0 : i32
    return %c0_i32, %c0_i32_0 : i32, i32
  }
  func.func @transform_16(%arg0: i32) -> (i32, i32) {
    %c0_i32 = arith.constant 0 : i32
    %c0_i32_0 = arith.constant 0 : i32
    %c0_i32_1 = arith.constant 0 : i32
    return %c0_i32, %c0_i32_0 : i32, i32
  }
  func.func @transform_17(%arg0: i32) -> (i32, i32, i32) {
    %c0_i32 = arith.constant 0 : i32
    %c0_i32_0 = arith.constant 0 : i32
    %c0_i32_1 = arith.constant 0 : i32
    return %arg0, %c0_i32, %c0_i32_0 : i32, i32, i32
  }
}

</mosaic_0001>

<llo_original>
// kernel: tpu_custom_call.1
$region0: #{tpu_custom_call.1}
  #allocation0 [shape = 'u32[]', space=smem, size = 0x4, offset = 0x4, fixed_abs, tag = 'smem constant byte address 0x4 - core index']
  #allocation1 [shape = 'u32[144,128]{1,0:T(1,128)}', space=vmem, size = 0x12000, scoped, tag = 'internal scratch']
  #allocation2 [shape = 'f32[4,16,32]{2,1,0:T(8,128)}', space=vmem, size = 0x8000, scoped, tag = 'scratch operand']
  #allocation3 [shape = 'f32[1,1]{1,0:T(1,128)S(1)}', space=vmem, size = 0x200, scoped, tag = 'scoped memory for tpu_custom_call.1']
  %s0 = inlined_call_operand.vmem [shape: f32[8,8,32], index: 0, kind: input, shape index: {}]
  %s1 = inlined_call_operand.vmem [shape: s32[8,1,1], index: 1, kind: input, shape index: {}]
  %s2 = inlined_call_operand.vmem [shape: f32[8,32], index: 2, kind: input, shape index: {}]
  %s3 = inlined_call_operand.vmem [shape: f32[2,32,96], index: 3, kind: input, shape index: {}]
  %s4 = inlined_call_operand.vmem [shape: f32[2,1,96], index: 4, kind: input, shape index: {}]
  %s5 = inlined_call_operand.vmem [shape: f32[2,32,32], index: 5, kind: input, shape index: {}]
  %s6 = inlined_call_operand.vmem [shape: f32[2,1,32], index: 6, kind: input, shape index: {}]
  %s7 = inlined_call_operand.vmem [shape: f32[2,1,32], index: 7, kind: input, shape index: {}]
  %s8 = inlined_call_operand.vmem [shape: f32[2,1,32], index: 8, kind: input, shape index: {}]
  %s9 = inlined_call_operand.vmem [shape: f32[2,288,64], index: 9, kind: input, shape index: {}]
  %s10 = inlined_call_operand.vmem [shape: f32[2,1,64], index: 10, kind: input, shape index: {}]
  %s11 = inlined_call_operand.vmem [shape: f32[2,64,32], index: 11, kind: input, shape index: {}]
  %s12 = inlined_call_operand.vmem [shape: f32[2,1,32], index: 12, kind: input, shape index: {}]
  %s13 = inlined_call_operand.vmem [shape: f32[2,1,32], index: 13, kind: input, shape index: {}]
  %s14 = inlined_call_operand.vmem [shape: f32[2,1,32], index: 14, kind: input, shape index: {}]
  %s15 = inlined_call_operand.vmem [shape: f32[32,1], index: 15, kind: input, shape index: {}]
  %s16 = inlined_call_operand.<no memory space> [shape: f32[1,1], index: 16, kind: input, shape index: {}]
  %s17 = inlined_call_operand.vmem [shape: f32[8,8,1], index: 17, kind: output, shape index: {}]
  %s18 = sld [smem:[#allocation0]]
  $region101: #{tpu_custom_call.1} parent=0
    _
  %s20 = ssub.s32 1, %s18
  %s21 = scalar_select 0, %s20, %s18
  %v22 = vstv %s16
  %23 = vst [vmem:[#allocation3] sm:$0x1] %v22
  loop: start=0, step=1, limit=4
  $region2: #{tpu_custom_call.1} parent=0 // loop_pre_header
    _
  $region3: #{tpu_custom_call.1} parent=0 // loop_header
    %s25 = sphi 0, %s29
    %p26 = scmp.ge.s32.totalorder %s25, 4
    %s35 = sphi 0, %s37
    %s38 = sphi 0, %s35
    %s39 = sphi 0, %s38
    %s55 = sphi 0, %s39
    %s61 = sphi 0, %s63
    %s64 = sphi 0, %s61
    %s65 = sphi 0, %s64
    %s81 = sphi 0, %s65
    %s85 = sphi 0, %s85
    %s87 = sphi 0, %s85
    %s88 = sphi 0, %s87
    %s102 = sphi 0, %s88
    %s106 = sphi 0, %s106
    %s108 = sphi 0, %s106
    %s109 = sphi 0, %s108
    %s123 = sphi 0, %s109
    %s127 = sphi 0, %s127
    %s129 = sphi 0, %s127
    %s130 = sphi 0, %s129
    %s144 = sphi 0, %s130
    %s148 = sphi 0, %s148
    %s150 = sphi 0, %s148
    %s151 = sphi 0, %s150
    %s165 = sphi 0, %s151
    %s169 = sphi 0, %s169
    %s171 = sphi 0, %s169
    %s172 = sphi 0, %s171
    %s186 = sphi 0, %s172
    %s190 = sphi 0, %s190
    %s192 = sphi 0, %s190
    %s193 = sphi 0, %s192
    %s207 = sphi 0, %s193
    %s211 = sphi 0, %s211
    %s213 = sphi 0, %s211
    %s214 = sphi 0, %s213
    %s228 = sphi 0, %s214
    %s232 = sphi 0, %s232
    %s234 = sphi 0, %s232
    %s235 = sphi 0, %s234
    %s249 = sphi 0, %s235
    %s253 = sphi 0, %s253
    %s255 = sphi 0, %s253
    %s256 = sphi 0, %s255
    %s270 = sphi 0, %s256
    %s274 = sphi 0, %s274
    %s276 = sphi 0, %s274
    %s277 = sphi 0, %s276
    %s291 = sphi 0, %s277
    %s295 = sphi 0, %s295
    %s297 = sphi 0, %s295
    %s298 = sphi 0, %s297
    %s312 = sphi 0, %s298
    %s316 = sphi 0, %s316
    %s318 = sphi 0, %s316
    %s319 = sphi 0, %s318
    %s333 = sphi 0, %s319
    %s337 = sphi 0, %s337
    %s339 = sphi 0, %s337
    %s340 = sphi 0, %s339
    %s354 = sphi 0, %s340
    %s358 = sphi 0, %s358
    %s360 = sphi 0, %s358
    %s361 = sphi 0, %s360
    %s375 = sphi 0, %s361
    %s379 = sphi 0, %s379
    %s381 = sphi 0, %s379
    %s382 = sphi 0, %s381
    %s396 = sphi 0, %s382
    %s402 = sphi 0, %s404
    %s405 = sphi 0, %s402
    %s406 = sphi 0, %s405
    %s422 = sphi 0, %s406
  $region4: #{tpu_custom_call.1} parent=0 // loop_header_branch
    %28 = sbr.rel (%p26) target = $region8
  $region5: #{tpu_custom_call.1} parent=0 // loop_body
    %s30 = ssub.s32 %s25, 1
    %s31 = ssub.s32 %s25, 2
    %s32 = sadd.s32 %s25, 1
    %s33 = ssub.s32 %s25, %s32
    %p34 = scmp.eq.s32.totalorder %s33, 0
    %s36 = sadd.s32 %s35, 1
    %s37 = scalar_select %p34, %s35, %s36
    %p40 = pneg %p34
    %p41 = scmp.eq.s32.totalorder %s25, 1
    %p42 = por %p40, %p41
    %p43 = scmp.ne.s32.totalorder %s35, %s38
    %p44 = scmp.eq.s32.totalorder %s25, 0
    %p45 = por %p43, %p44
    %p46 = scmp.ne.s32.totalorder %s35, %s38
    %p47 = scmp.eq.s32.totalorder %s30, 1
    %p48 = por %p46, %p47
    %p49 = scmp.ne.s32.totalorder %s38, %s39
    %p50 = scmp.eq.s32.totalorder %s30, 0
    %p51 = por %p49, %p50
    %p52 = scmp.ne.s32.totalorder %s38, %s39
    %p53 = scmp.eq.s32.totalorder %s31, 1
    %p54 = por %p52, %p53
    %p56 = scmp.ne.s32.totalorder %s39, %s55
    %p57 = scmp.eq.s32.totalorder %s31, 0
    %p58 = por %p56, %p57
    %s59 = ssub.s32 %s25, %s32
    %p60 = scmp.eq.s32.totalorder %s59, 0
    %s62 = sadd.s32 %s61, 1
    %s63 = scalar_select %p60, %s61, %s62
    %p66 = pneg %p60
    %p67 = scmp.eq.s32.totalorder %s25, 1
    %p68 = por %p66, %p67
    %p69 = scmp.ne.s32.totalorder %s61, %s64
    %p70 = scmp.eq.s32.totalorder %s25, 0
    %p71 = por %p69, %p70
    %p72 = scmp.ne.s32.totalorder %s61, %s64
    %p73 = scmp.eq.s32.totalorder %s30, 1
    %p74 = por %p72, %p73
    %p75 = scmp.ne.s32.totalorder %s64, %s65
    %p76 = scmp.eq.s32.totalorder %s30, 0
    %p77 = por %p75, %p76
    %p78 = scmp.ne.s32.totalorder %s64, %s65
    %p79 = scmp.eq.s32.totalorder %s31, 1
    %p80 = por %p78, %p79
    %p82 = scmp.ne.s32.totalorder %s65, %s81
    %p83 = scmp.eq.s32.totalorder %s31, 0
    %p84 = por %p82, %p83
    %s86 = sadd.s32 %s85, 1
    %p89 = scmp.eq.s32.totalorder %s25, 1
    %p90 = scmp.ne.s32.totalorder %s85, %s87
    %p91 = scmp.eq.s32.totalorder %s25, 0
    %p92 = por %p90, %p91
    %p93 = scmp.ne.s32.totalorder %s85, %s87
    %p94 = scmp.eq.s32.totalorder %s30, 1
    %p95 = por %p93, %p94
    %p96 = scmp.ne.s32.totalorder %s87, %s88
    %p97 = scmp.eq.s32.totalorder %s30, 0
    %p98 = por %p96, %p97
    %p99 = scmp.ne.s32.totalorder %s87, %s88
    %p100 = scmp.eq.s32.totalorder %s31, 1
    %p101 = por %p99, %p100
    %p103 = scmp.ne.s32.totalorder %s88, %s102
    %p104 = scmp.eq.s32.totalorder %s31, 0
    %p105 = por %p103, %p104
    %s107 = sadd.s32 %s106, 1
    %p110 = scmp.eq.s32.totalorder %s25, 1
    %p111 = scmp.ne.s32.totalorder %s106, %s108
    %p112 = scmp.eq.s32.totalorder %s25, 0
    %p113 = por %p111, %p112
    %p114 = scmp.ne.s32.totalorder %s106, %s108
    %p115 = scmp.eq.s32.totalorder %s30, 1
    %p116 = por %p114, %p115
    %p117 = scmp.ne.s32.totalorder %s108, %s109
    %p118 = scmp.eq.s32.totalorder %s30, 0
    %p119 = por %p117, %p118
    %p120 = scmp.ne.s32.totalorder %s108, %s109
    %p121 = scmp.eq.s32.totalorder %s31, 1
    %p122 = por %p120, %p121
    %p124 = scmp.ne.s32.totalorder %s109, %s123
    %p125 = scmp.eq.s32.totalorder %s31, 0
    %p126 = por %p124, %p125
    %s128 = sadd.s32 %s127, 1
    %p131 = scmp.eq.s32.totalorder %s25, 1
    %p132 = scmp.ne.s32.totalorder %s127, %s129
    %p133 = scmp.eq.s32.totalorder %s25, 0
    %p134 = por %p132, %p133
    %p135 = scmp.ne.s32.totalorder %s127, %s129
    %p136 = scmp.eq.s32.totalorder %s30, 1
    %p137 = por %p135, %p136
    %p138 = scmp.ne.s32.totalorder %s129, %s130
    %p139 = scmp.eq.s32.totalorder %s30, 0
    %p140 = por %p138, %p139
    %p141 = scmp.ne.s32.totalorder %s129, %s130
    %p142 = scmp.eq.s32.totalorder %s31, 1
    %p143 = por %p141, %p142
    %p145 = scmp.ne.s32.totalorder %s130, %s144
    %p146 = scmp.eq.s32.totalorder %s31, 0
    %p147 = por %p145, %p146
    %s149 = sadd.s32 %s148, 1
    %p152 = scmp.eq.s32.totalorder %s25, 1
    %p153 = scmp.ne.s32.totalorder %s148, %s150
    %p154 = scmp.eq.s32.totalorder %s25, 0
    %p155 = por %p153, %p154
    %p156 = scmp.ne.s32.totalorder %s148, %s150
    %p157 = scmp.eq.s32.totalorder %s30, 1
    %p158 = por %p156, %p157
    %p159 = scmp.ne.s32.totalorder %s150, %s151
    %p160 = scmp.eq.s32.totalorder %s30, 0
    %p161 = por %p159, %p160
    %p162 = scmp.ne.s32.totalorder %s150, %s151
    %p163 = scmp.eq.s32.totalorder %s31, 1
    %p164 = por %p162, %p163
    %p166 = scmp.ne.s32.totalorder %s151, %s165
    %p167 = scmp.eq.s32.totalorder %s31, 0
    %p168 = por %p166, %p167
    %s170 = sadd.s32 %s169, 1
    %p173 = scmp.eq.s32.totalorder %s25, 1
    %p174 = scmp.ne.s32.totalorder %s169, %s171
    %p175 = scmp.eq.s32.totalorder %s25, 0
    %p176 = por %p174, %p175
    %p177 = scmp.ne.s32.totalorder %s169, %s171
    %p178 = scmp.eq.s32.totalorder %s30, 1
    %p179 = por %p177, %p178
    %p180 = scmp.ne.s32.totalorder %s171, %s172
    %p181 = scmp.eq.s32.totalorder %s30, 0
    %p182 = por %p180, %p181
    %p183 = scmp.ne.s32.totalorder %s171, %s172
    %p184 = scmp.eq.s32.totalorder %s31, 1
    %p185 = por %p183, %p184
    %p187 = scmp.ne.s32.totalorder %s172, %s186
    %p188 = scmp.eq.s32.totalorder %s31, 0
    %p189 = por %p187, %p188
    %s191 = sadd.s32 %s190, 1
    %p194 = scmp.eq.s32.totalorder %s25, 1
    %p195 = scmp.ne.s32.totalorder %s190, %s192
    %p196 = scmp.eq.s32.totalorder %s25, 0
    %p197 = por %p195, %p196
    %p198 = scmp.ne.s32.totalorder %s190, %s192
    %p199 = scmp.eq.s32.totalorder %s30, 1
    %p200 = por %p198, %p199
    %p201 = scmp.ne.s32.totalorder %s192, %s193
    %p202 = scmp.eq.s32.totalorder %s30, 0
    %p203 = por %p201, %p202
    %p204 = scmp.ne.s32.totalorder %s192, %s193
    %p205 = scmp.eq.s32.totalorder %s31, 1
    %p206 = por %p204, %p205
    %p208 = scmp.ne.s32.totalorder %s193, %s207
    %p209 = scmp.eq.s32.totalorder %s31, 0
    %p210 = por %p208, %p209
    %s212 = sadd.s32 %s211, 1
    %p215 = scmp.eq.s32.totalorder %s25, 1
    %p216 = scmp.ne.s32.totalorder %s211, %s213
    %p217 = scmp.eq.s32.totalorder %s25, 0
    %p218 = por %p216, %p217
    %p219 = scmp.ne.s32.totalorder %s211, %s213
    %p220 = scmp.eq.s32.totalorder %s30, 1
    %p221 = por %p219, %p220
    %p222 = scmp.ne.s32.totalorder %s213, %s214
    %p223 = scmp.eq.s32.totalorder %s30, 0
    %p224 = por %p222, %p223
    %p225 = scmp.ne.s32.totalorder %s213, %s214
    %p226 = scmp.eq.s32.totalorder %s31, 1
    %p227 = por %p225, %p226
    %p229 = scmp.ne.s32.totalorder %s214, %s228
    %p230 = scmp.eq.s32.totalorder %s31, 0
    %p231 = por %p229, %p230
    %s233 = sadd.s32 %s232, 1
    %p236 = scmp.eq.s32.totalorder %s25, 1
    %p237 = scmp.ne.s32.totalorder %s232, %s234
    %p238 = scmp.eq.s32.totalorder %s25, 0
    %p239 = por %p237, %p238
    %p240 = scmp.ne.s32.totalorder %s232, %s234
    %p241 = scmp.eq.s32.totalorder %s30, 1
    %p242 = por %p240, %p241
    %p243 = scmp.ne.s32.totalorder %s234, %s235
    %p244 = scmp.eq.s32.totalorder %s30, 0
    %p245 = por %p243, %p244
    %p246 = scmp.ne.s32.totalorder %s234, %s235
    %p247 = scmp.eq.s32.totalorder %s31, 1
    %p248 = por %p246, %p247
    %p250 = scmp.ne.s32.totalorder %s235, %s249
    %p251 = scmp.eq.s32.totalorder %s31, 0
    %p252 = por %p250, %p251
    %s254 = sadd.s32 %s253, 1
    %p257 = scmp.eq.s32.totalorder %s25, 1
    %p258 = scmp.ne.s32.totalorder %s253, %s255
    %p259 = scmp.eq.s32.totalorder %s25, 0
    %p260 = por %p258, %p259
    %p261 = scmp.ne.s32.totalorder %s253, %s255
    %p262 = scmp.eq.s32.totalorder %s30, 1
    %p263 = por %p261, %p262
    %p264 = scmp.ne.s32.totalorder %s255, %s256
    %p265 = scmp.eq.s32.totalorder %s30, 0
    %p266 = por %p264, %p265
    %p267 = scmp.ne.s32.totalorder %s255, %s256
    %p268 = scmp.eq.s32.totalorder %s31, 1
    %p269 = por %p267, %p268
    %p271 = scmp.ne.s32.totalorder %s256, %s270
    %p272 = scmp.eq.s32.totalorder %s31, 0
    %p273 = por %p271, %p272
    %s275 = sadd.s32 %s274, 1
    %p278 = scmp.eq.s32.totalorder %s25, 1
    %p279 = scmp.ne.s32.totalorder %s274, %s276
    %p280 = scmp.eq.s32.totalorder %s25, 0
    %p281 = por %p279, %p280
    %p282 = scmp.ne.s32.totalorder %s274, %s276
    %p283 = scmp.eq.s32.totalorder %s30, 1
    %p284 = por %p282, %p283
    %p285 = scmp.ne.s32.totalorder %s276, %s277
    %p286 = scmp.eq.s32.totalorder %s30, 0
    %p287 = por %p285, %p286
    %p288 = scmp.ne.s32.totalorder %s276, %s277
    %p289 = scmp.eq.s32.totalorder %s31, 1
    %p290 = por %p288, %p289
    %p292 = scmp.ne.s32.totalorder %s277, %s291
    %p293 = scmp.eq.s32.totalorder %s31, 0
    %p294 = por %p292, %p293
    %s296 = sadd.s32 %s295, 1
    %p299 = scmp.eq.s32.totalorder %s25, 1
    %p300 = scmp.ne.s32.totalorder %s295, %s297
    %p301 = scmp.eq.s32.totalorder %s25, 0
    %p302 = por %p300, %p301
    %p303 = scmp.ne.s32.totalorder %s295, %s297
    %p304 = scmp.eq.s32.totalorder %s30, 1
    %p305 = por %p303, %p304
    %p306 = scmp.ne.s32.totalorder %s297, %s298
    %p307 = scmp.eq.s32.totalorder %s30, 0
    %p308 = por %p306, %p307
    %p309 = scmp.ne.s32.totalorder %s297, %s298
    %p310 = scmp.eq.s32.totalorder %s31, 1
    %p311 = por %p309, %p310
    %p313 = scmp.ne.s32.totalorder %s298, %s312
    %p314 = scmp.eq.s32.totalorder %s31, 0
    %p315 = por %p313, %p314
    %s317 = sadd.s32 %s316, 1
    %p320 = scmp.eq.s32.totalorder %s25, 1
    %p321 = scmp.ne.s32.totalorder %s316, %s318
    %p322 = scmp.eq.s32.totalorder %s25, 0
    %p323 = por %p321, %p322
    %p324 = scmp.ne.s32.totalorder %s316, %s318
    %p325 = scmp.eq.s32.totalorder %s30, 1
    %p326 = por %p324, %p325
    %p327 = scmp.ne.s32.totalorder %s318, %s319
    %p328 = scmp.eq.s32.totalorder %s30, 0
    %p329 = por %p327, %p328
    %p330 = scmp.ne.s32.totalorder %s318, %s319
    %p331 = scmp.eq.s32.totalorder %s31, 1
    %p332 = por %p330, %p331
    %p334 = scmp.ne.s32.totalorder %s319, %s333
    %p335 = scmp.eq.s32.totalorder %s31, 0
    %p336 = por %p334, %p335
    %s338 = sadd.s32 %s337, 1
    %p341 = scmp.eq.s32.totalorder %s25, 1
    %p342 = scmp.ne.s32.totalorder %s337, %s339
    %p343 = scmp.eq.s32.totalorder %s25, 0
    %p344 = por %p342, %p343
    %p345 = scmp.ne.s32.totalorder %s337, %s339
    %p346 = scmp.eq.s32.totalorder %s30, 1
    %p347 = por %p345, %p346
    %p348 = scmp.ne.s32.totalorder %s339, %s340
    %p349 = scmp.eq.s32.totalorder %s30, 0
    %p350 = por %p348, %p349
    %p351 = scmp.ne.s32.totalorder %s339, %s340
    %p352 = scmp.eq.s32.totalorder %s31, 1
    %p353 = por %p351, %p352
    %p355 = scmp.ne.s32.totalorder %s340, %s354
    %p356 = scmp.eq.s32.totalorder %s31, 0
    %p357 = por %p355, %p356
    %s359 = sadd.s32 %s358, 1
    %p362 = scmp.eq.s32.totalorder %s25, 1
    %p363 = scmp.ne.s32.totalorder %s358, %s360
    %p364 = scmp.eq.s32.totalorder %s25, 0
    %p365 = por %p363, %p364
    %p366 = scmp.ne.s32.totalorder %s358, %s360
    %p367 = scmp.eq.s32.totalorder %s30, 1
    %p368 = por %p366, %p367
    %p369 = scmp.ne.s32.totalorder %s360, %s361
    %p370 = scmp.eq.s32.totalorder %s30, 0
    %p371 = por %p369, %p370
    %p372 = scmp.ne.s32.totalorder %s360, %s361
    %p373 = scmp.eq.s32.totalorder %s31, 1
    %p374 = por %p372, %p373
    %p376 = scmp.ne.s32.totalorder %s361, %s375
    %p377 = scmp.eq.s32.totalorder %s31, 0
    %p378 = por %p376, %p377
    %s380 = sadd.s32 %s379, 1
    %p383 = scmp.eq.s32.totalorder %s25, 1
    %p384 = scmp.ne.s32.totalorder %s379, %s381
    %p385 = scmp.eq.s32.totalorder %s25, 0
    %p386 = por %p384, %p385
    %p387 = scmp.ne.s32.totalorder %s379, %s381
    %p388 = scmp.eq.s32.totalorder %s30, 1
    %p389 = por %p387, %p388
    %p390 = scmp.ne.s32.totalorder %s381, %s382
    %p391 = scmp.eq.s32.totalorder %s30, 0
    %p392 = por %p390, %p391
    %p393 = scmp.ne.s32.totalorder %s381, %s382
    %p394 = scmp.eq.s32.totalorder %s31, 1
    %p395 = por %p393, %p394
    %p397 = scmp.ne.s32.totalorder %s382, %s396
    %p398 = scmp.eq.s32.totalorder %s31, 0
    %p399 = por %p397, %p398
    %s400 = ssub.s32 %s25, %s32
    %p401 = scmp.eq.s32.totalorder %s400, 0
    %s403 = sadd.s32 %s402, 1
    %s404 = scalar_select %p401, %s402, %s403
    %p407 = pneg %p401
    %p408 = scmp.eq.s32.totalorder %s25, 1
    %p409 = por %p407, %p408
    %p410 = scmp.ne.s32.totalorder %s402, %s405
    %p411 = scmp.eq.s32.totalorder %s25, 0
    %p412 = por %p410, %p411
    %p413 = scmp.ne.s32.totalorder %s402, %s405
    %p414 = scmp.eq.s32.totalorder %s30, 1
    %p415 = por %p413, %p414
    %p416 = scmp.ne.s32.totalorder %s405, %s406
    %p417 = scmp.eq.s32.totalorder %s30, 0
    %p418 = por %p416, %p417
    %p419 = scmp.ne.s32.totalorder %s405, %s406
    %p420 = scmp.eq.s32.totalorder %s31, 1
    %p421 = por %p419, %p420
    %p423 = scmp.ne.s32.totalorder %s406, %s422
    %p424 = scmp.eq.s32.totalorder %s31, 0
    %p425 = por %p423, %p424
    %p426 = scmp.le.s32.totalorder 1, %s25
    %p427 = scmp.lt.s32.totalorder %s25, 3
    %p428 = pnand %p426, %p427
    %p429 = pneg %p428
    // Predicated region
    $region9: #{tpu_custom_call.1} parent=5 // pred_check
      _
    $region10: #{tpu_custom_call.1} parent=5 // pred_check_branch
      %431 = sbr.rel (%p428) target = $region12
    $region11: #{tpu_custom_call.1} parent=5 // pred_region
      %s432 = ssub.s32 %s25, 1
      // Predicated region
      $region13: #{tpu_custom_call.1} parent=11 // pred_check
        %p433 = pneg %p98
      $region14: #{tpu_custom_call.1} parent=11 // pred_check_branch
        %435 = sbr.rel (%p433) target = $region16
      $region15: #{tpu_custom_call.1} parent=11 // pred_region
        _
      $region16: #{tpu_custom_call.1} parent=11 // pred_fallthru
        _
      // Predicated region
      $region17: #{tpu_custom_call.1} parent=11 // pred_check
        %p436 = pneg %p119
      $region18: #{tpu_custom_call.1} parent=11 // pred_check_branch
        %438 = sbr.rel (%p436) target = $region20
      $region19: #{tpu_custom_call.1} parent=11 // pred_region
        _
      $region20: #{tpu_custom_call.1} parent=11 // pred_fallthru
        _
      // Predicated region
      $region21: #{tpu_custom_call.1} parent=11 // pred_check
        %p439 = pneg %p140
      $region22: #{tpu_custom_call.1} parent=11 // pred_check_branch
        %441 = sbr.rel (%p439) target = $region24
      $region23: #{tpu_custom_call.1} parent=11 // pred_region
        _
      $region24: #{tpu_custom_call.1} parent=11 // pred_fallthru
        _
      // Predicated region
      $region25: #{tpu_custom_call.1} parent=11 // pred_check
        %p442 = pneg %p161
      $region26: #{tpu_custom_call.1} parent=11 // pred_check_branch
        %444 = sbr.rel (%p442) target = $region28
      $region27: #{tpu_custom_call.1} parent=11 // pred_region
        _
      $region28: #{tpu_custom_call.1} parent=11 // pred_fallthru
        _
      // Predicated region
      $region29: #{tpu_custom_call.1} parent=11 // pred_check
        %p445 = pneg %p182
      $region30: #{tpu_custom_call.1} parent=11 // pred_check_branch
        %447 = sbr.rel (%p445) target = $region32
      $region31: #{tpu_custom_call.1} parent=11 // pred_region
        _
      $region32: #{tpu_custom_call.1} parent=11 // pred_fallthru
        _
      // Predicated region
      $region33: #{tpu_custom_call.1} parent=11 // pred_check
        %p448 = pneg %p203
      $region34: #{tpu_custom_call.1} parent=11 // pred_check_branch
        %450 = sbr.rel (%p448) target = $region36
      $region35: #{tpu_custom_call.1} parent=11 // pred_region
        _
      $region36: #{tpu_custom_call.1} parent=11 // pred_fallthru
        _
      // Predicated region
      $region37: #{tpu_custom_call.1} parent=11 // pred_check
        %p451 = pneg %p224
      $region38: #{tpu_custom_call.1} parent=11 // pred_check_branch
        %453 = sbr.rel (%p451) target = $region40
      $region39: #{tpu_custom_call.1} parent=11 // pred_region
        _
      $region40: #{tpu_custom_call.1} parent=11 // pred_fallthru
        _
      // Predicated region
      $region41: #{tpu_custom_call.1} parent=11 // pred_check
        %p454 = pneg %p245
      $region42: #{tpu_custom_call.1} parent=11 // pred_check_branch
        %456 = sbr.rel (%p454) target = $region44
      $region43: #{tpu_custom_call.1} parent=11 // pred_region
        _
      $region44: #{tpu_custom_call.1} parent=11 // pred_fallthru
        _
      // Predicated region
      $region45: #{tpu_custom_call.1} parent=11 // pred_check
        %p457 = pneg %p266
      $region46: #{tpu_custom_call.1} parent=11 // pred_check_branch
        %459 = sbr.rel (%p457) target = $region48
      $region47: #{tpu_custom_call.1} parent=11 // pred_region
        _
      $region48: #{tpu_custom_call.1} parent=11 // pred_fallthru
        _
      // Predicated region
      $region49: #{tpu_custom_call.1} parent=11 // pred_check
        %p460 = pneg %p287
      $region50: #{tpu_custom_call.1} parent=11 // pred_check_branch
        %462 = sbr.rel (%p460) target = $region52
      $region51: #{tpu_custom_call.1} parent=11 // pred_region
        _
      $region52: #{tpu_custom_call.1} parent=11 // pred_fallthru
        _
      // Predicated region
      $region53: #{tpu_custom_call.1} parent=11 // pred_check
        %p463 = pneg %p308
      $region54: #{tpu_custom_call.1} parent=11 // pred_check_branch
        %465 = sbr.rel (%p463) target = $region56
      $region55: #{tpu_custom_call.1} parent=11 // pred_region
        _
      $region56: #{tpu_custom_call.1} parent=11 // pred_fallthru
        _
      // Predicated region
      $region57: #{tpu_custom_call.1} parent=11 // pred_check
        %p466 = pneg %p329
      $region58: #{tpu_custom_call.1} parent=11 // pred_check_branch
        %468 = sbr.rel (%p466) target = $region60
      $region59: #{tpu_custom_call.1} parent=11 // pred_region
        _
      $region60: #{tpu_custom_call.1} parent=11 // pred_fallthru
        _
      // Predicated region
      $region61: #{tpu_custom_call.1} parent=11 // pred_check
        %p469 = pneg %p350
      $region62: #{tpu_custom_call.1} parent=11 // pred_check_branch
        %471 = sbr.rel (%p469) target = $region64
      $region63: #{tpu_custom_call.1} parent=11 // pred_region
        _
      $region64: #{tpu_custom_call.1} parent=11 // pred_fallthru
        _
      // Predicated region
      $region65: #{tpu_custom_call.1} parent=11 // pred_check
        %p472 = pneg %p371
      $region66: #{tpu_custom_call.1} parent=11 // pred_check_branch
        %474 = sbr.rel (%p472) target = $region68
      $region67: #{tpu_custom_call.1} parent=11 // pred_region
        _
      $region68: #{tpu_custom_call.1} parent=11 // pred_fallthru
        _
      // Predicated region
      $region69: #{tpu_custom_call.1} parent=11 // pred_check
        %p475 = pneg %p392
      $region70: #{tpu_custom_call.1} parent=11 // pred_check_branch
        %477 = sbr.rel (%p475) target = $region72
      $region71: #{tpu_custom_call.1} parent=11 // pred_region
        _
      $region72: #{tpu_custom_call.1} parent=11 // pred_fallthru
        _
    $region12: #{tpu_custom_call.1} parent=5 // pred_fallthru
      _
    %p478 = scmp.lt.s32.totalorder %s25, 2
    // Predicated region
    $region73: #{tpu_custom_call.1} parent=5 // pred_check
      %p479 = pneg %p478
    $region74: #{tpu_custom_call.1} parent=5 // pred_check_branch
      %481 = sbr.rel (%p479) target = $region76
    $region75: #{tpu_custom_call.1} parent=5 // pred_region
      // Predicated region
      $region77: #{tpu_custom_call.1} parent=75 // pred_check
        %p482 = pneg %p45
      $region78: #{tpu_custom_call.1} parent=75 // pred_check_branch
        %484 = sbr.rel (%p482) target = $region80
      $region79: #{tpu_custom_call.1} parent=75 // pred_region
        %s485 = smul.u32 4, %s25
        %p486 = scmp.lt.s32.totalorder %s485, 7
        %s487 = scalar_select %p486, %s485, 7
        %s488 = smul.addr %s487, 8
        %s489 = scalar_lea.vmem %s0, %s488
        %s490 = smul.u32 4, %s25
      $region80: #{tpu_custom_call.1} parent=75 // pred_fallthru
        _
      // Predicated region
      $region81: #{tpu_custom_call.1} parent=75 // pred_check
        %p491 = pneg %p71
      $region82: #{tpu_custom_call.1} parent=75 // pred_check_branch
        %493 = sbr.rel (%p491) target = $region84
      $region83: #{tpu_custom_call.1} parent=75 // pred_region
        %s494 = smul.u32 4, %s25
        %p495 = scmp.lt.s32.totalorder %s494, 7
        %s496 = scalar_select %p495, %s494, 7
        %s497 = scalar_lea.vmem %s1, %s496
        %s498 = smul.u32 4, %s25
      $region84: #{tpu_custom_call.1} parent=75 // pred_fallthru
        _
    $region76: #{tpu_custom_call.1} parent=5 // pred_fallthru
      _
    %p499 = scmp.le.s32.totalorder 1, %s25
    %p500 = scmp.lt.s32.totalorder %s25, 3
    %p501 = pnand %p499, %p500
    %p502 = pneg %p501
    // Predicated region
    $region85: #{tpu_custom_call.1} parent=5 // pred_check
      _
    $region86: #{tpu_custom_call.1} parent=5 // pred_check_branch
      %504 = sbr.rel (%p501) target = $region88
    $region87: #{tpu_custom_call.1} parent=5 // pred_region
      %s505 = ssub.s32 %s25, 1
      %s506 = smul.u32 4, %s30
      %p507 = scmp.lt.s32.totalorder %s506, 7
      %s508 = scalar_select %p507, %s506, 7
      %s509 = smul.addr %s508, 8
      %s510 = scalar_lea.vmem %s0, %s509
      %p511 = pneg %p51
      %p512 = pneg %p48
      %s513 = smul.u32 4, %s30
      %p514 = scmp.lt.s32.totalorder %s513, 7
      %s515 = scalar_select %p514, %s513, 7
      %s516 = scalar_lea.vmem %s1, %s515
      %p517 = pneg %p77
      %p518 = pneg %p74
      %p519 = pneg %p98
      %p520 = pneg %p95
      %p521 = pneg %p119
      %p522 = pneg %p116
      %p523 = pneg %p140
      %p524 = pneg %p137
      %p525 = pneg %p161
      %p526 = pneg %p158
      %p527 = pneg %p182
      %p528 = pneg %p179
      %p529 = pneg %p203
      %p530 = pneg %p200
      %p531 = pneg %p224
      %p532 = pneg %p221
      %p533 = pneg %p245
      %p534 = pneg %p242
      %p535 = pneg %p266
      %p536 = pneg %p263
      %p537 = pneg %p287
      %p538 = pneg %p284
      %p539 = pneg %p308
      %p540 = pneg %p305
      %p541 = pneg %p329
      %p542 = pneg %p326
      %p543 = pneg %p350
      %p544 = pneg %p347
      %p545 = pneg %p371
      %p546 = pneg %p368
      %p547 = pneg %p392
      %p548 = pneg %p389
      %p549 = pneg %p418
      %p550 = pneg %p415
      %s551 = smul.u32 4, %s30
      %p552 = scmp.lt.s32.totalorder %s551, 7
      %s553 = scalar_select %p552, %s551, 7
      %s554 = smul.addr %s553, 8
      %s555 = scalar_lea.vmem %s17, %s554
      %s556 = smul.u32 4, %s30
      %p557 = scmp.lt.s32.totalorder %s556, 7
      %s558 = scalar_select %p557, %s556, 7
      %s559 = smul.addr %s558, 8
      %s560 = scalar_lea.vmem %s0, %s559
      %s561 = smul.u32 4, %s30
      %s562 = smul.u32 4, %s30
      %p563 = scmp.lt.s32.totalorder %s562, 7
      %s564 = scalar_select %p563, %s562, 7
      %s565 = scalar_lea.vmem %s1, %s564
      %s566 = smul.u32 4, %s30
      %s567 = smul.u32 4, %s30
      %p568 = scmp.lt.s32.totalorder %s567, 7
      %s569 = scalar_select %p568, %s567, 7
      %s570 = smul.addr %s569, 8
      %s571 = scalar_lea.vmem %s17, %s570
      %s572 = smul.u32 4, %s30
      %v573 = vld [vmem:[%s560] sm:$0xff]
      %v574 = vld [vmem:[%s560 + $0x8] sm:$0xff]
      %v575 = vld [vmem:[%s560 + $0x10] sm:$0xff]
      %v576 = vld [vmem:[%s560 + $0x18] sm:$0xff]
      %v577 = vld [vmem:[%s2] sm:$0xff]
      %v578 = vadd.f32 %v573, %v577
      %v579 = vadd.f32 %v574, %v577
      %v580 = vadd.f32 %v575, %v577
      %v581 = vadd.f32 %v576, %v577
      %v582 = vld [vmem:[%s565] sm:$0x1]
      %v583 = vld [vmem:[%s565 + $0x1] sm:$0x1]
      %v584 = vld [vmem:[%s565 + $0x2] sm:$0x1]
      %v585 = vld [vmem:[%s565 + $0x3] sm:$0x1]
      %v586 = vlaneseq
      %v587 = vshrl.u32 %v586, 7
      %v588 = vlaneseq
      %v589 = vand.u32 %v588, 127
      %v590 = vlaneseq
      %v591 = vshrl.u32 %v590, 7
      %v592 = vsub.s32 0, %v591
      %v593 = vrot.slane %v582, %v592
      %v594 = vlaneseq
      %v595 = vshrl.u32 %v594, 7
      %v596 = vsub.s32 0, %v595
      %v597 = vrot.slane %v583, %v596
      %v598 = vlaneseq
      %v599 = vshrl.u32 %v598, 7
      %v600 = vsub.s32 0, %v599
      %v601 = vrot.slane %v584, %v600
      %v602 = vlaneseq
      %v603 = vshrl.u32 %v602, 7
      %v604 = vsub.s32 0, %v603
      %v605 = vrot.slane %v585, %v604
      %vm606 = vcmp.lt.s32.totalorder %v587, %v593
      %vm607 = vcmp.lt.s32.totalorder %v587, %v597
      %vm608 = vcmp.lt.s32.totalorder %v587, %v601
      %vm609 = vcmp.lt.s32.totalorder %v587, %v605
      %v610 = vsel %vm606, 1, 0
      %v611 = vsel %vm607, 1, 0
      %v612 = vsel %vm608, 1, 0
      %v613 = vsel %vm609, 1, 0
      %v614 = vcvt.s32.f32 %v610
      %v615 = vcvt.s32.f32 %v611
      %v616 = vcvt.s32.f32 %v612
      %v617 = vcvt.s32.f32 %v613
      %618 = vset.pattern.permute.xlu0 0
      %619 = vperm.xlu0 %618, %v582
      %v620 = vpop.permute.xlu0 %619
      %v621 = vlaneseq
      %v622 = vshrl.u32 %v621, 7
      %v623 = vsub.s32 0, %v622
      %v624 = vrot.slane %v620, %v623
      %625 = vset.pattern.permute.xlu0 0
      %626 = vperm.xlu0 %625, %v583
      %v627 = vpop.permute.xlu0 %626
      %v628 = vlaneseq
      %v629 = vshrl.u32 %v628, 7
      %v630 = vsub.s32 0, %v629
      %v631 = vrot.slane %v627, %v630
      %632 = vset.pattern.permute.xlu0 0
      %633 = vperm.xlu0 %632, %v584
      %v634 = vpop.permute.xlu0 %633
      %v635 = vlaneseq
      %v636 = vshrl.u32 %v635, 7
      %v637 = vsub.s32 0, %v636
      %v638 = vrot.slane %v634, %v637
      %639 = vset.pattern.permute.xlu0 0
      %640 = vperm.xlu0 %639, %v585
      %v641 = vpop.permute.xlu0 %640
      %v642 = vlaneseq
      %v643 = vshrl.u32 %v642, 7
      %v644 = vsub.s32 0, %v643
      %v645 = vrot.slane %v641, %v644
      %vm646 = vcmp.ge.s32.totalorder %v589, %v624
      %vm647 = vcmp.ge.s32.totalorder %v589, %v631
      %vm648 = vcmp.ge.s32.totalorder %v589, %v638
      %vm649 = vcmp.ge.s32.totalorder %v589, %v645
      %v650 = vsel %vm646, -1e+30, 0.0
      %v651 = vsel %vm647, -1e+30, 0.0
      %v652 = vsel %vm648, -1e+30, 0.0
      %v653 = vsel %vm649, -1e+30, 0.0
      %vm654 = vcmask 261120
      %655 = vst.msk [vmem:[#allocation2] sm:$0xff] %vm654, 0.0
      %656 = vst.msk [vmem:[#allocation2 + $0x8] sm:$0xff] %vm654, 0.0
      %657 = vst.msk [vmem:[#allocation2 + $0x10] sm:$0xff] %vm654, 0.0
      %658 = vst.msk [vmem:[#allocation2 + $0x18] sm:$0xff] %vm654, 0.0
      %659 = vst.msk [vmem:[#allocation2 + $0x20] sm:$0xff] %vm654, 0.0
      %660 = vst.msk [vmem:[#allocation2 + $0x28] sm:$0xff] %vm654, 0.0
      %661 = vst.msk [vmem:[#allocation2 + $0x30] sm:$0xff] %vm654, 0.0
      %662 = vst.msk [vmem:[#allocation2 + $0x38] sm:$0xff] %vm654, 0.0
      %v663 = vld [vmem:[%s3] sm:$0xff]
      %v664 = vld [vmem:[%s3 + $0x8] sm:$0xff]
      %v665 = vld [vmem:[%s3 + $0x10] sm:$0xff]
      %v666 = vld [vmem:[%s3 + $0x18] sm:$0xff]
      %v667 = vld [vmem:[%s4] sm:$0x1]
      %v669 = vlaneseq
      %v670 = vshrl.u32 %v669, 7
      %v671 = vsub.s32 0, %v670
      %v672 = vrot.slane %v667, %v671
      %v675 = vsel %vm654, %v578, 0
      %v678 = vsel %vm654, %v579, 0
      %v681 = vsel %vm654, %v580, 0
      %v684 = vsel %vm654, %v581, 0
      %686 = vmatprep.subr.mxu0 0.0
      %687 = vmatpush1.msra.mxu0 0.0
      %688 = vmatprep.subr.mxu0 0.0
      %689 = vmatpush1.msra.mxu0 0.0
      %690 = vmatprep.subr.mxu0 0.0
      %691 = vmatpush1.msra.mxu0 0.0
      %692 = vmatprep.subr.mxu0 0.0
      %693 = vmatpush1.msra.mxu0 0.0
      %694 = vmatprep.subr.mxu0 0.0
      %695 = vmatpush1.msra.mxu0 0.0
      %696 = vmatprep.subr.mxu0 0.0
      %697 = vmatpush1.msra.mxu0 0.0
      %698 = vmatprep.subr.mxu0 0.0
      %699 = vmatpush1.msra.mxu0 0.0
      %700 = vmatprep.subr.mxu0 0.0
      %701 = vmatpush1.msra.mxu0 0.0
      %702 = vmatprep.subr.mxu0 0.0
      %703 = vmatpush1.msra.mxu0 0.0
      %704 = vmatprep.subr.mxu0 0.0
      %705 = vmatpush1.msra.mxu0 0.0
      %706 = vmatprep.subr.mxu0 0.0
      %707 = vmatpush1.msra.mxu0 0.0
      %708 = vmatprep.subr.mxu0 0.0
      %709 = vmatpush1.msra.mxu0 0.0
      %710 = vmatprep.subr.mxu0 0.0
      %711 = vmatpush1.msra.mxu0 %v666
      %712 = vmatprep.subr.mxu0 0.0
      %713 = vmatpush1.msra.mxu0 %v665
      %714 = vmatprep.subr.mxu0 0.0
      %715 = vmatpush1.msra.mxu0 %v664
      %716 = vmatprep.subr.mxu0 0.0
      %717 = vmatpush1.msra.mxu0 %v663
      %718 = vmatprep.subr.mxu0 0.0
      %719 = vmatpush2.msra.mxu0 0.0
      %720 = vmatprep.subr.mxu0 0.0
      %721 = vmatpush2.msra.mxu0 0.0
      %722 = vmatprep.subr.mxu0 0.0
      %723 = vmatpush2.msra.mxu0 0.0
      %724 = vmatprep.subr.mxu0 0.0
      %725 = vmatpush2.msra.mxu0 0.0
      %726 = vmatprep.subr.mxu0 0.0
      %727 = vmatpush2.msra.mxu0 0.0
      %728 = vmatprep.subr.mxu0 0.0
      %729 = vmatpush2.msra.mxu0 0.0
      %730 = vmatprep.subr.mxu0 0.0
      %731 = vmatpush2.msra.mxu0 0.0
      %732 = vmatprep.subr.mxu0 0.0
      %733 = vmatpush2.msra.mxu0 0.0
      %734 = vmatprep.subr.mxu0 0.0
      %735 = vmatpush2.msra.mxu0 0.0
      %736 = vmatprep.subr.mxu0 0.0
      %737 = vmatpush2.msra.mxu0 0.0
      %738 = vmatprep.subr.mxu0 0.0
      %739 = vmatpush2.msra.mxu0 0.0
      %740 = vmatprep.subr.mxu0 0.0
      %741 = vmatpush2.msra.mxu0 0.0
      %742 = vmatprep.subr.mxu0 0.0
      %743 = vmatpush2.msra.mxu0 0.0
      %744 = vmatprep.subr.mxu0 0.0
      %745 = vmatpush2.msra.mxu0 0.0
      %746 = vmatprep.subr.mxu0 0.0
      %747 = vmatpush2.msra.mxu0 0.0
      %748 = vmatprep.subr.mxu0 0.0
      %749 = vmatpush2.msra.mxu0 0.0
      %750 = vmatprep.mubr.f32.mxu0 0.0
      %751 = vmatmul.mubr.f32.gmra.mxu0 %v675
      %v752 = vpop.f32.mrf.mxu0
      %v753 = vadd.f32 %v672, %v752
      %v754 = vpop.f32.mrf.mxu0
      %755 = vmatprep.mubr.f32.mxu0 0.0
      %756 = vmatmul.mubr.f32.gmra.mxu0 %v678
      %v757 = vpop.f32.mrf.mxu0
      %v758 = vadd.f32 %v672, %v757
      %v759 = vpop.f32.mrf.mxu0
      %760 = vmatprep.mubr.f32.mxu0 0.0
      %761 = vmatmul.mubr.f32.gmra.mxu0 %v681
      %v762 = vpop.f32.mrf.mxu0
      %v763 = vadd.f32 %v672, %v762
      %v764 = vpop.f32.mrf.mxu0
      %765 = vmatprep.mubr.f32.mxu0 0.0
      %766 = vmatmul.mubr.f32.gmra.mxu0 %v684
      %v767 = vpop.f32.mrf.mxu0
      %v768 = vadd.f32 %v672, %v767
      %v769 = vpop.f32.mrf.mxu0
      %770 = vdwg.mxu0
      %772 = vrot.lane.b32.xlu0 %v753, 96
      %v773 = vpop.permute.xlu0 %772
      %vm774 = vcmask 130048
      %v775 = vsel %vm774, %v753, 0
      %v777 = vsel %vm774, %v773, 0
      %779 = vmatprep.subr.mxu0 0.0
      %780 = vmatpush1.xpose.msra.mxu0 0.0
      %781 = vmatprep.subr.mxu0 0.0
      %782 = vmatpush1.xpose.msra.mxu0 0.0
      %783 = vmatprep.subr.mxu0 0.0
      %784 = vmatpush1.xpose.msra.mxu0 0.0
      %785 = vmatprep.subr.mxu0 0.0
      %786 = vmatpush1.xpose.msra.mxu0 0.0
      %787 = vmatprep.subr.mxu0 0.0
      %788 = vmatpush1.xpose.msra.mxu0 0.0
      %789 = vmatprep.subr.mxu0 0.0
      %790 = vmatpush1.xpose.msra.mxu0 0.0
      %791 = vmatprep.subr.mxu0 0.0
      %792 = vmatpush1.xpose.msra.mxu0 0.0
      %793 = vmatprep.subr.mxu0 0.0
      %794 = vmatpush1.xpose.msra.mxu0 0.0
      %795 = vmatprep.subr.mxu0 0.0
      %796 = vmatpush1.xpose.msra.mxu0 0.0
      %797 = vmatprep.subr.mxu0 0.0
      %798 = vmatpush1.xpose.msra.mxu0 0.0
      %799 = vmatprep.subr.mxu0 0.0
      %800 = vmatpush1.xpose.msra.mxu0 0.0
      %801 = vmatprep.subr.mxu0 0.0
      %802 = vmatpush1.xpose.msra.mxu0 0.0
      %803 = vmatprep.subr.mxu0 0.0
      %804 = vmatpush1.xpose.msra.mxu0 0.0
      %805 = vmatprep.subr.mxu0 0.0
      %806 = vmatpush1.xpose.msra.mxu0 0.0
      %807 = vmatprep.subr.mxu0 0.0
      %808 = vmatpush1.xpose.msra.mxu0 0.0
      %809 = vmatprep.subr.mxu0 0.0
      %810 = vmatpush1.xpose.msra.mxu0 %v777
      %811 = vmatprep.subr.mxu0 0.0
      %812 = vmatpush2.xpose.msra.mxu0 0.0
      %813 = vmatprep.subr.mxu0 0.0
      %814 = vmatpush2.xpose.msra.mxu0 0.0
      %815 = vmatprep.subr.mxu0 0.0
      %816 = vmatpush2.xpose.msra.mxu0 0.0
      %817 = vmatprep.subr.mxu0 0.0
      %818 = vmatpush2.xpose.msra.mxu0 0.0
      %819 = vmatprep.subr.mxu0 0.0
      %820 = vmatpush2.xpose.msra.mxu0 0.0
      %821 = vmatprep.subr.mxu0 0.0
      %822 = vmatpush2.xpose.msra.mxu0 0.0
      %823 = vmatprep.subr.mxu0 0.0
      %824 = vmatpush2.xpose.msra.mxu0 0.0
      %825 = vmatprep.subr.mxu0 0.0
      %826 = vmatpush2.xpose.msra.mxu0 0.0
      %827 = vmatprep.subr.mxu0 0.0
      %828 = vmatpush2.xpose.msra.mxu0 0.0
      %829 = vmatprep.subr.mxu0 0.0
      %830 = vmatpush2.xpose.msra.mxu0 0.0
      %831 = vmatprep.subr.mxu0 0.0
      %832 = vmatpush2.xpose.msra.mxu0 0.0
      %833 = vmatprep.subr.mxu0 0.0
      %834 = vmatpush2.xpose.msra.mxu0 0.0
      %835 = vmatprep.subr.mxu0 0.0
      %836 = vmatpush2.xpose.msra.mxu0 0.0
      %837 = vmatprep.subr.mxu0 0.0
      %838 = vmatpush2.xpose.msra.mxu0 0.0
      %839 = vmatprep.subr.mxu0 0.0
      %840 = vmatpush2.xpose.msra.mxu0 0.0
      %841 = vmatprep.subr.mxu0 0.0
      %842 = vmatpush2.xpose.msra.mxu0 0.0
      %843 = vmatprep.mubr.f32.mxu0 0.0
      %844 = vmatmul.mubr.f32.gmra.mxu0 %v775
      %v845 = vpop.f32.mrf.mxu0
      %v846 = vadd.f32 0.0, %v845
      %v847 = vpop.f32.mrf.mxu0
      %848 = vdwg.mxu0
      %850 = vrot.lane.b32.xlu0 %v758, 96
      %v851 = vpop.permute.xlu0 %850
      %v852 = vsel %vm774, %v758, 0
      %v854 = vsel %vm774, %v851, 0
      %856 = vmatprep.subr.mxu0 0.0
      %857 = vmatpush1.xpose.msra.mxu0 0.0
      %858 = vmatprep.subr.mxu0 0.0
      %859 = vmatpush1.xpose.msra.mxu0 0.0
      %860 = vmatprep.subr.mxu0 0.0
      %861 = vmatpush1.xpose.msra.mxu0 0.0
      %862 = vmatprep.subr.mxu0 0.0
      %863 = vmatpush1.xpose.msra.mxu0 0.0
      %864 = vmatprep.subr.mxu0 0.0
      %865 = vmatpush1.xpose.msra.mxu0 0.0
      %866 = vmatprep.subr.mxu0 0.0
      %867 = vmatpush1.xpose.msra.mxu0 0.0
      %868 = vmatprep.subr.mxu0 0.0
      %869 = vmatpush1.xpose.msra.mxu0 0.0
      %870 = vmatprep.subr.mxu0 0.0
      %871 = vmatpush1.xpose.msra.mxu0 0.0
      %872 = vmatprep.subr.mxu0 0.0
      %873 = vmatpush1.xpose.msra.mxu0 0.0
      %874 = vmatprep.subr.mxu0 0.0
      %875 = vmatpush1.xpose.msra.mxu0 0.0
      %876 = vmatprep.subr.mxu0 0.0
      %877 = vmatpush1.xpose.msra.mxu0 0.0
      %878 = vmatprep.subr.mxu0 0.0
      %879 = vmatpush1.xpose.msra.mxu0 0.0
      %880 = vmatprep.subr.mxu0 0.0
      %881 = vmatpush1.xpose.msra.mxu0 0.0
      %882 = vmatprep.subr.mxu0 0.0
      %883 = vmatpush1.xpose.msra.mxu0 0.0
      %884 = vmatprep.subr.mxu0 0.0
      %885 = vmatpush1.xpose.msra.mxu0 0.0
      %886 = vmatprep.subr.mxu0 0.0
      %887 = vmatpush1.xpose.msra.mxu0 %v854
      %888 = vmatprep.subr.mxu0 0.0
      %889 = vmatpush2.xpose.msra.mxu0 0.0
      %890 = vmatprep.subr.mxu0 0.0
      %891 = vmatpush2.xpose.msra.mxu0 0.0
      %892 = vmatprep.subr.mxu0 0.0
      %893 = vmatpush2.xpose.msra.mxu0 0.0
      %894 = vmatprep.subr.mxu0 0.0
      %895 = vmatpush2.xpose.msra.mxu0 0.0
      %896 = vmatprep.subr.mxu0 0.0
      %897 = vmatpush2.xpose.msra.mxu0 0.0
      %898 = vmatprep.subr.mxu0 0.0
      %899 = vmatpush2.xpose.msra.mxu0 0.0
      %900 = vmatprep.subr.mxu0 0.0
      %901 = vmatpush2.xpose.msra.mxu0 0.0
      %902 = vmatprep.subr.mxu0 0.0
      %903 = vmatpush2.xpose.msra.mxu0 0.0
      %904 = vmatprep.subr.mxu0 0.0
      %905 = vmatpush2.xpose.msra.mxu0 0.0
      %906 = vmatprep.subr.mxu0 0.0
      %907 = vmatpush2.xpose.msra.mxu0 0.0
      %908 = vmatprep.subr.mxu0 0.0
      %909 = vmatpush2.xpose.msra.mxu0 0.0
      %910 = vmatprep.subr.mxu0 0.0
      %911 = vmatpush2.xpose.msra.mxu0 0.0
      %912 = vmatprep.subr.mxu0 0.0
      %913 = vmatpush2.xpose.msra.mxu0 0.0
      %914 = vmatprep.subr.mxu0 0.0
      %915 = vmatpush2.xpose.msra.mxu0 0.0
      %916 = vmatprep.subr.mxu0 0.0
      %917 = vmatpush2.xpose.msra.mxu0 0.0
      %918 = vmatprep.subr.mxu0 0.0
      %919 = vmatpush2.xpose.msra.mxu0 0.0
      %920 = vmatprep.mubr.f32.mxu0 0.0
      %921 = vmatmul.mubr.f32.gmra.mxu0 %v852
      %v922 = vpop.f32.mrf.mxu0
      %v923 = vadd.f32 0.0, %v922
      %v924 = vpop.f32.mrf.mxu0
      %925 = vdwg.mxu0
      %927 = vrot.lane.b32.xlu0 %v763, 96
      %v928 = vpop.permute.xlu0 %927
      %v929 = vsel %vm774, %v763, 0
      %v931 = vsel %vm774, %v928, 0
      %933 = vmatprep.subr.mxu0 0.0
      %934 = vmatpush1.xpose.msra.mxu0 0.0
      %935 = vmatprep.subr.mxu0 0.0
      %936 = vmatpush1.xpose.msra.mxu0 0.0
      %937 = vmatprep.subr.mxu0 0.0
      %938 = vmatpush1.xpose.msra.mxu0 0.0
      %939 = vmatprep.subr.mxu0 0.0
      %940 = vmatpush1.xpose.msra.mxu0 0.0
      %941 = vmatprep.subr.mxu0 0.0
      %942 = vmatpush1.xpose.msra.mxu0 0.0
      %943 = vmatprep.subr.mxu0 0.0
      %944 = vmatpush1.xpose.msra.mxu0 0.0
      %945 = vmatprep.subr.mxu0 0.0
      %946 = vmatpush1.xpose.msra.mxu0 0.0
      %947 = vmatprep.subr.mxu0 0.0
      %948 = vmatpush1.xpose.msra.mxu0 0.0
      %949 = vmatprep.subr.mxu0 0.0
      %950 = vmatpush1.xpose.msra.mxu0 0.0
      %951 = vmatprep.subr.mxu0 0.0
      %952 = vmatpush1.xpose.msra.mxu0 0.0
      %953 = vmatprep.subr.mxu0 0.0
      %954 = vmatpush1.xpose.msra.mxu0 0.0
      %955 = vmatprep.subr.mxu0 0.0
      %956 = vmatpush1.xpose.msra.mxu0 0.0
      %957 = vmatprep.subr.mxu0 0.0
      %958 = vmatpush1.xpose.msra.mxu0 0.0
      %959 = vmatprep.subr.mxu0 0.0
      %960 = vmatpush1.xpose.msra.mxu0 0.0
      %961 = vmatprep.subr.mxu0 0.0
      %962 = vmatpush1.xpose.msra.mxu0 0.0
      %963 = vmatprep.subr.mxu0 0.0
      %964 = vmatpush1.xpose.msra.mxu0 %v931
      %965 = vmatprep.subr.mxu0 0.0
      %966 = vmatpush2.xpose.msra.mxu0 0.0
      %967 = vmatprep.subr.mxu0 0.0
      %968 = vmatpush2.xpose.msra.mxu0 0.0
      %969 = vmatprep.subr.mxu0 0.0
      %970 = vmatpush2.xpose.msra.mxu0 0.0
      %971 = vmatprep.subr.mxu0 0.0
      %972 = vmatpush2.xpose.msra.mxu0 0.0
      %973 = vmatprep.subr.mxu0 0.0
      %974 = vmatpush2.xpose.msra.mxu0 0.0
      %975 = vmatprep.subr.mxu0 0.0
      %976 = vmatpush2.xpose.msra.mxu0 0.0
      %977 = vmatprep.subr.mxu0 0.0
      %978 = vmatpush2.xpose.msra.mxu0 0.0
      %979 = vmatprep.subr.mxu0 0.0
      %980 = vmatpush2.xpose.msra.mxu0 0.0
      %981 = vmatprep.subr.mxu0 0.0
      %982 = vmatpush2.xpose.msra.mxu0 0.0
      %983 = vmatprep.subr.mxu0 0.0
      %984 = vmatpush2.xpose.msra.mxu0 0.0
      %985 = vmatprep.subr.mxu0 0.0
      %986 = vmatpush2.xpose.msra.mxu0 0.0
      %987 = vmatprep.subr.mxu0 0.0
      %988 = vmatpush2.xpose.msra.mxu0 0.0
      %989 = vmatprep.subr.mxu0 0.0
      %990 = vmatpush2.xpose.msra.mxu0 0.0
      %991 = vmatprep.subr.mxu0 0.0
      %992 = vmatpush2.xpose.msra.mxu0 0.0
      %993 = vmatprep.subr.mxu0 0.0
      %994 = vmatpush2.xpose.msra.mxu0 0.0
      %995 = vmatprep.subr.mxu0 0.0
      %996 = vmatpush2.xpose.msra.mxu0 0.0
      %997 = vmatprep.mubr.f32.mxu0 0.0
      %998 = vmatmul.mubr.f32.gmra.mxu0 %v929
      %v999 = vpop.f32.mrf.mxu0
      %v1000 = vadd.f32 0.0, %v999
      %v1001 = vpop.f32.mrf.mxu0
      %1002 = vdwg.mxu0
      %1004 = vrot.lane.b32.xlu0 %v768, 96
      %v1005 = vpop.permute.xlu0 %1004
      %v1006 = vsel %vm774, %v768, 0
      %v1008 = vsel %vm774, %v1005, 0
      %1010 = vmatprep.subr.mxu0 0.0
      %1011 = vmatpush1.xpose.msra.mxu0 0.0
      %1012 = vmatprep.subr.mxu0 0.0
      %1013 = vmatpush1.xpose.msra.mxu0 0.0
      %1014 = vmatprep.subr.mxu0 0.0
      %1015 = vmatpush1.xpose.msra.mxu0 0.0
      %1016 = vmatprep.subr.mxu0 0.0
      %1017 = vmatpush1.xpose.msra.mxu0 0.0
      %1018 = vmatprep.subr.mxu0 0.0
      %1019 = vmatpush1.xpose.msra.mxu0 0.0
      %1020 = vmatprep.subr.mxu0 0.0
      %1021 = vmatpush1.xpose.msra.mxu0 0.0
      %1022 = vmatprep.subr.mxu0 0.0
      %1023 = vmatpush1.xpose.msra.mxu0 0.0
      %1024 = vmatprep.subr.mxu0 0.0
      %1025 = vmatpush1.xpose.msra.mxu0 0.0
      %1026 = vmatprep.subr.mxu0 0.0
      %1027 = vmatpush1.xpose.msra.mxu0 0.0
      %1028 = vmatprep.subr.mxu0 0.0
      %1029 = vmatpush1.xpose.msra.mxu0 0.0
      %1030 = vmatprep.subr.mxu0 0.0
      %1031 = vmatpush1.xpose.msra.mxu0 0.0
      %1032 = vmatprep.subr.mxu0 0.0
      %1033 = vmatpush1.xpose.msra.mxu0 0.0
      %1034 = vmatprep.subr.mxu0 0.0
      %1035 = vmatpush1.xpose.msra.mxu0 0.0
      %1036 = vmatprep.subr.mxu0 0.0
      %1037 = vmatpush1.xpose.msra.mxu0 0.0
      %1038 = vmatprep.subr.mxu0 0.0
      %1039 = vmatpush1.xpose.msra.mxu0 0.0
      %1040 = vmatprep.subr.mxu0 0.0
      %1041 = vmatpush1.xpose.msra.mxu0 %v1008
      %1042 = vmatprep.subr.mxu0 0.0
      %1043 = vmatpush2.xpose.msra.mxu0 0.0
      %1044 = vmatprep.subr.mxu0 0.0
      %1045 = vmatpush2.xpose.msra.mxu0 0.0
      %1046 = vmatprep.subr.mxu0 0.0
      %1047 = vmatpush2.xpose.msra.mxu0 0.0
      %1048 = vmatprep.subr.mxu0 0.0
      %1049 = vmatpush2.xpose.msra.mxu0 0.0
      %1050 = vmatprep.subr.mxu0 0.0
      %1051 = vmatpush2.xpose.msra.mxu0 0.0
      %1052 = vmatprep.subr.mxu0 0.0
      %1053 = vmatpush2.xpose.msra.mxu0 0.0
      %1054 = vmatprep.subr.mxu0 0.0
      %1055 = vmatpush2.xpose.msra.mxu0 0.0
      %1056 = vmatprep.subr.mxu0 0.0
      %1057 = vmatpush2.xpose.msra.mxu0 0.0
      %1058 = vmatprep.subr.mxu0 0.0
      %1059 = vmatpush2.xpose.msra.mxu0 0.0
      %1060 = vmatprep.subr.mxu0 0.0
      %1061 = vmatpush2.xpose.msra.mxu0 0.0
      %1062 = vmatprep.subr.mxu0 0.0
      %1063 = vmatpush2.xpose.msra.mxu0 0.0
      %1064 = vmatprep.subr.mxu0 0.0
      %1065 = vmatpush2.xpose.msra.mxu0 0.0
      %1066 = vmatprep.subr.mxu0 0.0
      %1067 = vmatpush2.xpose.msra.mxu0 0.0
      %1068 = vmatprep.subr.mxu0 0.0
      %1069 = vmatpush2.xpose.msra.mxu0 0.0
      %1070 = vmatprep.subr.mxu0 0.0
      %1071 = vmatpush2.xpose.msra.mxu0 0.0
      %1072 = vmatprep.subr.mxu0 0.0
      %1073 = vmatpush2.xpose.msra.mxu0 0.0
      %1074 = vmatprep.mubr.f32.mxu0 0.0
      %1075 = vmatmul.mubr.f32.gmra.mxu0 %v1006
      %v1076 = vpop.f32.mrf.mxu0
      %v1077 = vadd.f32 0.0, %v1076
      %v1078 = vpop.f32.mrf.mxu0
      %1079 = vdwg.mxu0
      %v1080 = vmul.f32 %v846, 0.25
      %v1081 = vmul.f32 %v923, 0.25
      %v1082 = vmul.f32 %v1000, 0.25
      %v1083 = vmul.f32 %v1077, 0.25
      %v1084 = vadd.f32 %v1080, %v650
      %v1085 = vadd.f32 %v1081, %v651
      %v1086 = vadd.f32 %v1082, %v652
      %v1087 = vadd.f32 %v1083, %v653
      %vm1088 = vcmask 64512
      %v1089 = vsel %vm1088, %v1084, -inf
      %1090 = vmax.xlane.f32.xlu0 %v1089
      %v1091 = vpop.xlane.xlu0 %1090
      %v1092 = vsel %vm1088, %v1085, -inf
      %1093 = vmax.xlane.f32.xlu0 %v1092
      %v1094 = vpop.xlane.xlu0 %1093
      %v1095 = vsel %vm1088, %v1086, -inf
      %1096 = vmax.xlane.f32.xlu0 %v1095
      %v1097 = vpop.xlane.xlu0 %1096
      %v1098 = vsel %vm1088, %v1087, -inf
      %1099 = vmax.xlane.f32.xlu0 %v1098
      %v1100 = vpop.xlane.xlu0 %1099
      %v1101 = vsub.f32 %v1084, %v1091
      %v1102 = vsub.f32 %v1085, %v1094
      %v1103 = vsub.f32 %v1086, %v1097
      %v1104 = vsub.f32 %v1087, %v1100
      %v1105 = vmul.f32 %v1101, 1.442695
      %v1106 = vpow.pop %v1105
      %v1107 = vmul.f32 %v1102, 1.442695
      %v1108 = vpow.pop %v1107
      %v1109 = vmul.f32 %v1103, 1.442695
      %v1110 = vpow.pop %v1109
      %v1111 = vmul.f32 %v1104, 1.442695
      %v1112 = vpow.pop %v1111
      %v1113 = vsel %vm1088, %v1106, 0.0
      %1114 = vadd.xlane.f32.xlu0 %v1113
      %v1115 = vpop.xlane.xlu0 %1114
      %v1116 = vsel %vm1088, %v1108, 0.0
      %1117 = vadd.xlane.f32.xlu0 %v1116
      %v1118 = vpop.xlane.xlu0 %1117
      %v1119 = vsel %vm1088, %v1110, 0.0
      %1120 = vadd.xlane.f32.xlu0 %v1119
      %v1121 = vpop.xlane.xlu0 %1120
      %v1122 = vsel %vm1088, %v1112, 0.0
      %1123 = vadd.xlane.f32.xlu0 %v1122
      %v1124 = vpop.xlane.xlu0 %1123
      %v1125 = vrcp.pop %v1115
      %v1126 = vrcp.pop %v1118
      %v1127 = vrcp.pop %v1121
      %v1128 = vrcp.pop %v1124
      %v1129 = vmul.f32 %v1106, %v1125
      %v1130 = vmul.f32 %v1108, %v1126
      %v1131 = vmul.f32 %v1110, %v1127
      %v1132 = vmul.f32 %v1112, %v1128
      %1133 = vrot.lane.b32.xlu0 %v753, 64
      %v1134 = vpop.permute.xlu0 %1133
      %v1137 = vsel %vm1088, %v1129, 0
      %1139 = vmatprep.subr.mxu0 0.0
      %1140 = vmatpush1.msra.mxu0 0.0
      %1141 = vmatprep.subr.mxu0 0.0
      %1142 = vmatpush1.msra.mxu0 0.0
      %1143 = vmatprep.subr.mxu0 0.0
      %1144 = vmatpush1.msra.mxu0 0.0
      %1145 = vmatprep.subr.mxu0 0.0
      %1146 = vmatpush1.msra.mxu0 0.0
      %1147 = vmatprep.subr.mxu0 0.0
      %1148 = vmatpush1.msra.mxu0 0.0
      %1149 = vmatprep.subr.mxu0 0.0
      %1150 = vmatpush1.msra.mxu0 0.0
      %1151 = vmatprep.subr.mxu0 0.0
      %1152 = vmatpush1.msra.mxu0 0.0
      %1153 = vmatprep.subr.mxu0 0.0
      %1154 = vmatpush1.msra.mxu0 0.0
      %1155 = vmatprep.subr.mxu0 0.0
      %1156 = vmatpush1.msra.mxu0 0.0
      %1157 = vmatprep.subr.mxu0 0.0
      %1158 = vmatpush1.msra.mxu0 0.0
      %1159 = vmatprep.subr.mxu0 0.0
      %1160 = vmatpush1.msra.mxu0 0.0
      %1161 = vmatprep.subr.mxu0 0.0
      %1162 = vmatpush1.msra.mxu0 0.0
      %1163 = vmatprep.subr.mxu0 0.0
      %1164 = vmatpush1.msra.mxu0 0.0
      %1165 = vmatprep.subr.mxu0 0.0
      %1166 = vmatpush1.msra.mxu0 0.0
      %1167 = vmatprep.subr.mxu0 0.0
      %1168 = vmatpush1.msra.mxu0 0.0
      %1169 = vmatprep.subr.mxu0 0.0
      %1170 = vmatpush1.msra.mxu0 %v1134
      %1171 = vmatprep.subr.mxu0 0.0
      %1172 = vmatpush2.msra.mxu0 0.0
      %1173 = vmatprep.subr.mxu0 0.0
      %1174 = vmatpush2.msra.mxu0 0.0
      %1175 = vmatprep.subr.mxu0 0.0
      %1176 = vmatpush2.msra.mxu0 0.0
      %1177 = vmatprep.subr.mxu0 0.0
      %1178 = vmatpush2.msra.mxu0 0.0
      %1179 = vmatprep.subr.mxu0 0.0
      %1180 = vmatpush2.msra.mxu0 0.0
      %1181 = vmatprep.subr.mxu0 0.0
      %1182 = vmatpush2.msra.mxu0 0.0
      %1183 = vmatprep.subr.mxu0 0.0
      %1184 = vmatpush2.msra.mxu0 0.0
      %1185 = vmatprep.subr.mxu0 0.0
      %1186 = vmatpush2.msra.mxu0 0.0
      %1187 = vmatprep.subr.mxu0 0.0
      %1188 = vmatpush2.msra.mxu0 0.0
      %1189 = vmatprep.subr.mxu0 0.0
      %1190 = vmatpush2.msra.mxu0 0.0
      %1191 = vmatprep.subr.mxu0 0.0
      %1192 = vmatpush2.msra.mxu0 0.0
      %1193 = vmatprep.subr.mxu0 0.0
      %1194 = vmatpush2.msra.mxu0 0.0
      %1195 = vmatprep.subr.mxu0 0.0
      %1196 = vmatpush2.msra.mxu0 0.0
      %1197 = vmatprep.subr.mxu0 0.0
      %1198 = vmatpush2.msra.mxu0 0.0
      %1199 = vmatprep.subr.mxu0 0.0
      %1200 = vmatpush2.msra.mxu0 0.0
      %1201 = vmatprep.subr.mxu0 0.0
      %1202 = vmatpush2.msra.mxu0 0.0
      %1203 = vmatprep.mubr.f32.mxu0 0.0
      %1204 = vmatmul.mubr.f32.gmra.mxu0 %v1137
      %v1205 = vpop.f32.mrf.mxu0
      %v1206 = vadd.f32 0.0, %v1205
      %v1207 = vpop.f32.mrf.mxu0
      %1208 = vdwg.mxu0
      %1209 = vrot.lane.b32.xlu0 %v758, 64
      %v1210 = vpop.permute.xlu0 %1209
      %v1213 = vsel %vm1088, %v1130, 0
      %1215 = vmatprep.subr.mxu0 0.0
      %1216 = vmatpush1.msra.mxu0 0.0
      %1217 = vmatprep.subr.mxu0 0.0
      %1218 = vmatpush1.msra.mxu0 0.0
      %1219 = vmatprep.subr.mxu0 0.0
      %1220 = vmatpush1.msra.mxu0 0.0
      %1221 = vmatprep.subr.mxu0 0.0
      %1222 = vmatpush1.msra.mxu0 0.0
      %1223 = vmatprep.subr.mxu0 0.0
      %1224 = vmatpush1.msra.mxu0 0.0
      %1225 = vmatprep.subr.mxu0 0.0
      %1226 = vmatpush1.msra.mxu0 0.0
      %1227 = vmatprep.subr.mxu0 0.0
      %1228 = vmatpush1.msra.mxu0 0.0
      %1229 = vmatprep.subr.mxu0 0.0
      %1230 = vmatpush1.msra.mxu0 0.0
      %1231 = vmatprep.subr.mxu0 0.0
      %1232 = vmatpush1.msra.mxu0 0.0
      %1233 = vmatprep.subr.mxu0 0.0
      %1234 = vmatpush1.msra.mxu0 0.0
      %1235 = vmatprep.subr.mxu0 0.0
      %1236 = vmatpush1.msra.mxu0 0.0
      %1237 = vmatprep.subr.mxu0 0.0
      %1238 = vmatpush1.msra.mxu0 0.0
      %1239 = vmatprep.subr.mxu0 0.0
      %1240 = vmatpush1.msra.mxu0 0.0
      %1241 = vmatprep.subr.mxu0 0.0
      %1242 = vmatpush1.msra.mxu0 0.0
      %1243 = vmatprep.subr.mxu0 0.0
      %1244 = vmatpush1.msra.mxu0 0.0
      %1245 = vmatprep.subr.mxu0 0.0
      %1246 = vmatpush1.msra.mxu0 %v1210
      %1247 = vmatprep.subr.mxu0 0.0
      %1248 = vmatpush2.msra.mxu0 0.0
      %1249 = vmatprep.subr.mxu0 0.0
      %1250 = vmatpush2.msra.mxu0 0.0
      %1251 = vmatprep.subr.mxu0 0.0
      %1252 = vmatpush2.msra.mxu0 0.0
      %1253 = vmatprep.subr.mxu0 0.0
      %1254 = vmatpush2.msra.mxu0 0.0
      %1255 = vmatprep.subr.mxu0 0.0
      %1256 = vmatpush2.msra.mxu0 0.0
      %1257 = vmatprep.subr.mxu0 0.0
      %1258 = vmatpush2.msra.mxu0 0.0
      %1259 = vmatprep.subr.mxu0 0.0
      %1260 = vmatpush2.msra.mxu0 0.0
      %1261 = vmatprep.subr.mxu0 0.0
      %1262 = vmatpush2.msra.mxu0 0.0
      %1263 = vmatprep.subr.mxu0 0.0
      %1264 = vmatpush2.msra.mxu0 0.0
      %1265 = vmatprep.subr.mxu0 0.0
      %1266 = vmatpush2.msra.mxu0 0.0
      %1267 = vmatprep.subr.mxu0 0.0
      %1268 = vmatpush2.msra.mxu0 0.0
      %1269 = vmatprep.subr.mxu0 0.0
      %1270 = vmatpush2.msra.mxu0 0.0
      %1271 = vmatprep.subr.mxu0 0.0
      %1272 = vmatpush2.msra.mxu0 0.0
      %1273 = vmatprep.subr.mxu0 0.0
      %1274 = vmatpush2.msra.mxu0 0.0
      %1275 = vmatprep.subr.mxu0 0.0
      %1276 = vmatpush2.msra.mxu0 0.0
      %1277 = vmatprep.subr.mxu0 0.0
      %1278 = vmatpush2.msra.mxu0 0.0
      %1279 = vmatprep.mubr.f32.mxu0 0.0
      %1280 = vmatmul.mubr.f32.gmra.mxu0 %v1213
      %v1281 = vpop.f32.mrf.mxu0
      %v1282 = vadd.f32 0.0, %v1281
      %v1283 = vpop.f32.mrf.mxu0
      %1284 = vdwg.mxu0
      %1285 = vrot.lane.b32.xlu0 %v763, 64
      %v1286 = vpop.permute.xlu0 %1285
      %v1289 = vsel %vm1088, %v1131, 0
      %1291 = vmatprep.subr.mxu0 0.0
      %1292 = vmatpush1.msra.mxu0 0.0
      %1293 = vmatprep.subr.mxu0 0.0
      %1294 = vmatpush1.msra.mxu0 0.0
      %1295 = vmatprep.subr.mxu0 0.0
      %1296 = vmatpush1.msra.mxu0 0.0
      %1297 = vmatprep.subr.mxu0 0.0
      %1298 = vmatpush1.msra.mxu0 0.0
      %1299 = vmatprep.subr.mxu0 0.0
      %1300 = vmatpush1.msra.mxu0 0.0
      %1301 = vmatprep.subr.mxu0 0.0
      %1302 = vmatpush1.msra.mxu0 0.0
      %1303 = vmatprep.subr.mxu0 0.0
      %1304 = vmatpush1.msra.mxu0 0.0
      %1305 = vmatprep.subr.mxu0 0.0
      %1306 = vmatpush1.msra.mxu0 0.0
      %1307 = vmatprep.subr.mxu0 0.0
      %1308 = vmatpush1.msra.mxu0 0.0
      %1309 = vmatprep.subr.mxu0 0.0
      %1310 = vmatpush1.msra.mxu0 0.0
      %1311 = vmatprep.subr.mxu0 0.0
      %1312 = vmatpush1.msra.mxu0 0.0
      %1313 = vmatprep.subr.mxu0 0.0
      %1314 = vmatpush1.msra.mxu0 0.0
      %1315 = vmatprep.subr.mxu0 0.0
      %1316 = vmatpush1.msra.mxu0 0.0
      %1317 = vmatprep.subr.mxu0 0.0
      %1318 = vmatpush1.msra.mxu0 0.0
      %1319 = vmatprep.subr.mxu0 0.0
      %1320 = vmatpush1.msra.mxu0 0.0
      %1321 = vmatprep.subr.mxu0 0.0
      %1322 = vmatpush1.msra.mxu0 %v1286
      %1323 = vmatprep.subr.mxu0 0.0
      %1324 = vmatpush2.msra.mxu0 0.0
      %1325 = vmatprep.subr.mxu0 0.0
      %1326 = vmatpush2.msra.mxu0 0.0
      %1327 = vmatprep.subr.mxu0 0.0
      %1328 = vmatpush2.msra.mxu0 0.0
      %1329 = vmatprep.subr.mxu0 0.0
      %1330 = vmatpush2.msra.mxu0 0.0
      %1331 = vmatprep.subr.mxu0 0.0
      %1332 = vmatpush2.msra.mxu0 0.0
      %1333 = vmatprep.subr.mxu0 0.0
      %1334 = vmatpush2.msra.mxu0 0.0
      %1335 = vmatprep.subr.mxu0 0.0
      %1336 = vmatpush2.msra.mxu0 0.0
      %1337 = vmatprep.subr.mxu0 0.0
      %1338 = vmatpush2.msra.mxu0 0.0
      %1339 = vmatprep.subr.mxu0 0.0
      %1340 = vmatpush2.msra.mxu0 0.0
      %1341 = vmatprep.subr.mxu0 0.0
      %1342 = vmatpush2.msra.mxu0 0.0
      %1343 = vmatprep.subr.mxu0 0.0
      %1344 = vmatpush2.msra.mxu0 0.0
      %1345 = vmatprep.subr.mxu0 0.0
      %1346 = vmatpush2.msra.mxu0 0.0
      %1347 = vmatprep.subr.mxu0 0.0
      %1348 = vmatpush2.msra.mxu0 0.0
      %1349 = vmatprep.subr.mxu0 0.0
      %1350 = vmatpush2.msra.mxu0 0.0
      %1351 = vmatprep.subr.mxu0 0.0
      %1352 = vmatpush2.msra.mxu0 0.0
      %1353 = vmatprep.subr.mxu0 0.0
      %1354 = vmatpush2.msra.mxu0 0.0
      %1355 = vmatprep.mubr.f32.mxu0 0.0
      %1356 = vmatmul.mubr.f32.gmra.mxu0 %v1289
      %v1357 = vpop.f32.mrf.mxu0
      %v1358 = vadd.f32 0.0, %v1357
      %v1359 = vpop.f32.mrf.mxu0
      %1360 = vdwg.mxu0
      %1361 = vrot.lane.b32.xlu0 %v768, 64
      %v1362 = vpop.permute.xlu0 %1361
      %v1365 = vsel %vm1088, %v1132, 0
      %1367 = vmatprep.subr.mxu0 0.0
      %1368 = vmatpush1.msra.mxu0 0.0
      %1369 = vmatprep.subr.mxu0 0.0
      %1370 = vmatpush1.msra.mxu0 0.0
      %1371 = vmatprep.subr.mxu0 0.0
      %1372 = vmatpush1.msra.mxu0 0.0
      %1373 = vmatprep.subr.mxu0 0.0
      %1374 = vmatpush1.msra.mxu0 0.0
      %1375 = vmatprep.subr.mxu0 0.0
      %1376 = vmatpush1.msra.mxu0 0.0
      %1377 = vmatprep.subr.mxu0 0.0
      %1378 = vmatpush1.msra.mxu0 0.0
      %1379 = vmatprep.subr.mxu0 0.0
      %1380 = vmatpush1.msra.mxu0 0.0
      %1381 = vmatprep.subr.mxu0 0.0
      %1382 = vmatpush1.msra.mxu0 0.0
      %1383 = vmatprep.subr.mxu0 0.0
      %1384 = vmatpush1.msra.mxu0 0.0
      %1385 = vmatprep.subr.mxu0 0.0
      %1386 = vmatpush1.msra.mxu0 0.0
      %1387 = vmatprep.subr.mxu0 0.0
      %1388 = vmatpush1.msra.mxu0 0.0
      %1389 = vmatprep.subr.mxu0 0.0
      %1390 = vmatpush1.msra.mxu0 0.0
      %1391 = vmatprep.subr.mxu0 0.0
      %1392 = vmatpush1.msra.mxu0 0.0
      %1393 = vmatprep.subr.mxu0 0.0
      %1394 = vmatpush1.msra.mxu0 0.0
      %1395 = vmatprep.subr.mxu0 0.0
      %1396 = vmatpush1.msra.mxu0 0.0
      %1397 = vmatprep.subr.mxu0 0.0
      %1398 = vmatpush1.msra.mxu0 %v1362
      %1399 = vmatprep.subr.mxu0 0.0
      %1400 = vmatpush2.msra.mxu0 0.0
      %1401 = vmatprep.subr.mxu0 0.0
      %1402 = vmatpush2.msra.mxu0 0.0
      %1403 = vmatprep.subr.mxu0 0.0
      %1404 = vmatpush2.msra.mxu0 0.0
      %1405 = vmatprep.subr.mxu0 0.0
      %1406 = vmatpush2.msra.mxu0 0.0
      %1407 = vmatprep.subr.mxu0 0.0
      %1408 = vmatpush2.msra.mxu0 0.0
      %1409 = vmatprep.subr.mxu0 0.0
      %1410 = vmatpush2.msra.mxu0 0.0
      %1411 = vmatprep.subr.mxu0 0.0
      %1412 = vmatpush2.msra.mxu0 0.0
      %1413 = vmatprep.subr.mxu0 0.0
      %1414 = vmatpush2.msra.mxu0 0.0
      %1415 = vmatprep.subr.mxu0 0.0
      %1416 = vmatpush2.msra.mxu0 0.0
      %1417 = vmatprep.subr.mxu0 0.0
      %1418 = vmatpush2.msra.mxu0 0.0
      %1419 = vmatprep.subr.mxu0 0.0
      %1420 = vmatpush2.msra.mxu0 0.0
      %1421 = vmatprep.subr.mxu0 0.0
      %1422 = vmatpush2.msra.mxu0 0.0
      %1423 = vmatprep.subr.mxu0 0.0
      %1424 = vmatpush2.msra.mxu0 0.0
      %1425 = vmatprep.subr.mxu0 0.0
      %1426 = vmatpush2.msra.mxu0 0.0
      %1427 = vmatprep.subr.mxu0 0.0
      %1428 = vmatpush2.msra.mxu0 0.0
      %1429 = vmatprep.subr.mxu0 0.0
      %1430 = vmatpush2.msra.mxu0 0.0
      %1431 = vmatprep.mubr.f32.mxu0 0.0
      %1432 = vmatmul.mubr.f32.gmra.mxu0 %v1365
      %v1433 = vpop.f32.mrf.mxu0
      %v1434 = vadd.f32 0.0, %v1433
      %v1435 = vpop.f32.mrf.mxu0
      %1436 = vdwg.mxu0
      %1437 = vrot.lane.b32.xlu0 %v753, 112
      %v1438 = vpop.permute.xlu0 %1437
      %1439 = vrot.lane.b32.xlu0 %v753, 80
      %v1440 = vpop.permute.xlu0 %1439
      %v1441 = vsel %vm774, %v1438, 0
      %v1443 = vsel %vm774, %v1440, 0
      %1445 = vmatprep.subr.mxu0 0.0
      %1446 = vmatpush1.xpose.msra.mxu0 0.0
      %1447 = vmatprep.subr.mxu0 0.0
      %1448 = vmatpush1.xpose.msra.mxu0 0.0
      %1449 = vmatprep.subr.mxu0 0.0
      %1450 = vmatpush1.xpose.msra.mxu0 0.0
      %1451 = vmatprep.subr.mxu0 0.0
      %1452 = vmatpush1.xpose.msra.mxu0 0.0
      %1453 = vmatprep.subr.mxu0 0.0
      %1454 = vmatpush1.xpose.msra.mxu0 0.0
      %1455 = vmatprep.subr.mxu0 0.0
      %1456 = vmatpush1.xpose.msra.mxu0 0.0
      %1457 = vmatprep.subr.mxu0 0.0
      %1458 = vmatpush1.xpose.msra.mxu0 0.0
      %1459 = vmatprep.subr.mxu0 0.0
      %1460 = vmatpush1.xpose.msra.mxu0 0.0
      %1461 = vmatprep.subr.mxu0 0.0
      %1462 = vmatpush1.xpose.msra.mxu0 0.0
      %1463 = vmatprep.subr.mxu0 0.0
      %1464 = vmatpush1.xpose.msra.mxu0 0.0
      %1465 = vmatprep.subr.mxu0 0.0
      %1466 = vmatpush1.xpose.msra.mxu0 0.0
      %1467 = vmatprep.subr.mxu0 0.0
      %1468 = vmatpush1.xpose.msra.mxu0 0.0
      %1469 = vmatprep.subr.mxu0 0.0
      %1470 = vmatpush1.xpose.msra.mxu0 0.0
      %1471 = vmatprep.subr.mxu0 0.0
      %1472 = vmatpush1.xpose.msra.mxu0 0.0
      %1473 = vmatprep.subr.mxu0 0.0
      %1474 = vmatpush1.xpose.msra.mxu0 0.0
      %1475 = vmatprep.subr.mxu0 0.0
      %1476 = vmatpush1.xpose.msra.mxu0 %v1443
      %1477 = vmatprep.subr.mxu0 0.0
      %1478 = vmatpush2.xpose.msra.mxu0 0.0
      %1479 = vmatprep.subr.mxu0 0.0
      %1480 = vmatpush2.xpose.msra.mxu0 0.0
      %1481 = vmatprep.subr.mxu0 0.0
      %1482 = vmatpush2.xpose.msra.mxu0 0.0
      %1483 = vmatprep.subr.mxu0 0.0
      %1484 = vmatpush2.xpose.msra.mxu0 0.0
      %1485 = vmatprep.subr.mxu0 0.0
      %1486 = vmatpush2.xpose.msra.mxu0 0.0
      %1487 = vmatprep.subr.mxu0 0.0
      %1488 = vmatpush2.xpose.msra.mxu0 0.0
      %1489 = vmatprep.subr.mxu0 0.0
      %1490 = vmatpush2.xpose.msra.mxu0 0.0
      %1491 = vmatprep.subr.mxu0 0.0
      %1492 = vmatpush2.xpose.msra.mxu0 0.0
      %1493 = vmatprep.subr.mxu0 0.0
      %1494 = vmatpush2.xpose.msra.mxu0 0.0
      %1495 = vmatprep.subr.mxu0 0.0
      %1496 = vmatpush2.xpose.msra.mxu0 0.0
      %1497 = vmatprep.subr.mxu0 0.0
      %1498 = vmatpush2.xpose.msra.mxu0 0.0
      %1499 = vmatprep.subr.mxu0 0.0
      %1500 = vmatpush2.xpose.msra.mxu0 0.0
      %1501 = vmatprep.subr.mxu0 0.0
      %1502 = vmatpush2.xpose.msra.mxu0 0.0
      %1503 = vmatprep.subr.mxu0 0.0
      %1504 = vmatpush2.xpose.msra.mxu0 0.0
      %1505 = vmatprep.subr.mxu0 0.0
      %1506 = vmatpush2.xpose.msra.mxu0 0.0
      %1507 = vmatprep.subr.mxu0 0.0
      %1508 = vmatpush2.xpose.msra.mxu0 0.0
      %1509 = vmatprep.mubr.f32.mxu0 0.0
      %1510 = vmatmul.mubr.f32.gmra.mxu0 %v1441
      %v1511 = vpop.f32.mrf.mxu0
      %v1512 = vadd.f32 0.0, %v1511
      %v1513 = vpop.f32.mrf.mxu0
      %1514 = vdwg.mxu0
      %1515 = vrot.lane.b32.xlu0 %v758, 112
      %v1516 = vpop.permute.xlu0 %1515
      %1517 = vrot.lane.b32.xlu0 %v758, 80
      %v1518 = vpop.permute.xlu0 %1517
      %v1519 = vsel %vm774, %v1516, 0
      %v1521 = vsel %vm774, %v1518, 0
      %1523 = vmatprep.subr.mxu0 0.0
      %1524 = vmatpush1.xpose.msra.mxu0 0.0
      %1525 = vmatprep.subr.mxu0 0.0
      %1526 = vmatpush1.xpose.msra.mxu0 0.0
      %1527 = vmatprep.subr.mxu0 0.0
      %1528 = vmatpush1.xpose.msra.mxu0 0.0
      %1529 = vmatprep.subr.mxu0 0.0
      %1530 = vmatpush1.xpose.msra.mxu0 0.0
      %1531 = vmatprep.subr.mxu0 0.0
      %1532 = vmatpush1.xpose.msra.mxu0 0.0
      %1533 = vmatprep.subr.mxu0 0.0
      %1534 = vmatpush1.xpose.msra.mxu0 0.0
      %1535 = vmatprep.subr.mxu0 0.0
      %1536 = vmatpush1.xpose.msra.mxu0 0.0
      %1537 = vmatprep.subr.mxu0 0.0
      %1538 = vmatpush1.xpose.msra.mxu0 0.0
      %1539 = vmatprep.subr.mxu0 0.0
      %1540 = vmatpush1.xpose.msra.mxu0 0.0
      %1541 = vmatprep.subr.mxu0 0.0
      %1542 = vmatpush1.xpose.msra.mxu0 0.0
      %1543 = vmatprep.subr.mxu0 0.0
      %1544 = vmatpush1.xpose.msra.mxu0 0.0
      %1545 = vmatprep.subr.mxu0 0.0
      %1546 = vmatpush1.xpose.msra.mxu0 0.0
      %1547 = vmatprep.subr.mxu0 0.0
      %1548 = vmatpush1.xpose.msra.mxu0 0.0
      %1549 = vmatprep.subr.mxu0 0.0
      %1550 = vmatpush1.xpose.msra.mxu0 0.0
      %1551 = vmatprep.subr.mxu0 0.0
      %1552 = vmatpush1.xpose.msra.mxu0 0.0
      %1553 = vmatprep.subr.mxu0 0.0
      %1554 = vmatpush1.xpose.msra.mxu0 %v1521
      %1555 = vmatprep.subr.mxu0 0.0
      %1556 = vmatpush2.xpose.msra.mxu0 0.0
      %1557 = vmatprep.subr.mxu0 0.0
      %1558 = vmatpush2.xpose.msra.mxu0 0.0
      %1559 = vmatprep.subr.mxu0 0.0
      %1560 = vmatpush2.xpose.msra.mxu0 0.0
      %1561 = vmatprep.subr.mxu0 0.0
      %1562 = vmatpush2.xpose.msra.mxu0 0.0
      %1563 = vmatprep.subr.mxu0 0.0
      %1564 = vmatpush2.xpose.msra.mxu0 0.0
      %1565 = vmatprep.subr.mxu0 0.0
      %1566 = vmatpush2.xpose.msra.mxu0 0.0
      %1567 = vmatprep.subr.mxu0 0.0
      %1568 = vmatpush2.xpose.msra.mxu0 0.0
      %1569 = vmatprep.subr.mxu0 0.0
      %1570 = vmatpush2.xpose.msra.mxu0 0.0
      %1571 = vmatprep.subr.mxu0 0.0
      %1572 = vmatpush2.xpose.msra.mxu0 0.0
      %1573 = vmatprep.subr.mxu0 0.0
      %1574 = vmatpush2.xpose.msra.mxu0 0.0
      %1575 = vmatprep.subr.mxu0 0.0
      %1576 = vmatpush2.xpose.msra.mxu0 0.0
      %1577 = vmatprep.subr.mxu0 0.0
      %1578 = vmatpush2.xpose.msra.mxu0 0.0
      %1579 = vmatprep.subr.mxu0 0.0
      %1580 = vmatpush2.xpose.msra.mxu0 0.0
      %1581 = vmatprep.subr.mxu0 0.0
      %1582 = vmatpush2.xpose.msra.mxu0 0.0
      %1583 = vmatprep.subr.mxu0 0.0
      %1584 = vmatpush2.xpose.msra.mxu0 0.0
      %1585 = vmatprep.subr.mxu0 0.0
      %1586 = vmatpush2.xpose.msra.mxu0 0.0
      %1587 = vmatprep.mubr.f32.mxu0 0.0
      %1588 = vmatmul.mubr.f32.gmra.mxu0 %v1519
      %v1589 = vpop.f32.mrf.mxu0
      %v1590 = vadd.f32 0.0, %v1589
      %v1591 = vpop.f32.mrf.mxu0
      %1592 = vdwg.mxu0
      %1593 = vrot.lane.b32.xlu0 %v763, 112
      %v1594 = vpop.permute.xlu0 %1593
      %1595 = vrot.lane.b32.xlu0 %v763, 80
      %v1596 = vpop.permute.xlu0 %1595
      %v1597 = vsel %vm774, %v1594, 0
      %v1599 = vsel %vm774, %v1596, 0
      %1601 = vmatprep.subr.mxu0 0.0
      %1602 = vmatpush1.xpose.msra.mxu0 0.0
      %1603 = vmatprep.subr.mxu0 0.0
      %1604 = vmatpush1.xpose.msra.mxu0 0.0
      %1605 = vmatprep.subr.mxu0 0.0
      %1606 = vmatpush1.xpose.msra.mxu0 0.0
      %1607 = vmatprep.subr.mxu0 0.0
      %1608 = vmatpush1.xpose.msra.mxu0 0.0
      %1609 = vmatprep.subr.mxu0 0.0
      %1610 = vmatpush1.xpose.msra.mxu0 0.0
      %1611 = vmatprep.subr.mxu0 0.0
      %1612 = vmatpush1.xpose.msra.mxu0 0.0
      %1613 = vmatprep.subr.mxu0 0.0
      %1614 = vmatpush1.xpose.msra.mxu0 0.0
      %1615 = vmatprep.subr.mxu0 0.0
      %1616 = vmatpush1.xpose.msra.mxu0 0.0
      %1617 = vmatprep.subr.mxu0 0.0
      %1618 = vmatpush1.xpose.msra.mxu0 0.0
      %1619 = vmatprep.subr.mxu0 0.0
      %1620 = vmatpush1.xpose.msra.mxu0 0.0
      %1621 = vmatprep.subr.mxu0 0.0
      %1622 = vmatpush1.xpose.msra.mxu0 0.0
      %1623 = vmatprep.subr.mxu0 0.0
      %1624 = vmatpush1.xpose.msra.mxu0 0.0
      %1625 = vmatprep.subr.mxu0 0.0
      %1626 = vmatpush1.xpose.msra.mxu0 0.0
      %1627 = vmatprep.subr.mxu0 0.0
      %1628 = vmatpush1.xpose.msra.mxu0 0.0
      %1629 = vmatprep.subr.mxu0 0.0
      %1630 = vmatpush1.xpose.msra.mxu0 0.0
      %1631 = vmatprep.subr.mxu0 0.0
      %1632 = vmatpush1.xpose.msra.mxu0 %v1599
      %1633 = vmatprep.subr.mxu0 0.0
      %1634 = vmatpush2.xpose.msra.mxu0 0.0
      %1635 = vmatprep.subr.mxu0 0.0
      %1636 = vmatpush2.xpose.msra.mxu0 0.0
      %1637 = vmatprep.subr.mxu0 0.0
      %1638 = vmatpush2.xpose.msra.mxu0 0.0
      %1639 = vmatprep.subr.mxu0 0.0
      %1640 = vmatpush2.xpose.msra.mxu0 0.0
      %1641 = vmatprep.subr.mxu0 0.0
      %1642 = vmatpush2.xpose.msra.mxu0 0.0
      %1643 = vmatprep.subr.mxu0 0.0
      %1644 = vmatpush2.xpose.msra.mxu0 0.0
      %1645 = vmatprep.subr.mxu0 0.0
      %1646 = vmatpush2.xpose.msra.mxu0 0.0
      %1647 = vmatprep.subr.mxu0 0.0
      %1648 = vmatpush2.xpose.msra.mxu0 0.0
      %1649 = vmatprep.subr.mxu0 0.0
      %1650 = vmatpush2.xpose.msra.mxu0 0.0
      %1651 = vmatprep.subr.mxu0 0.0
      %1652 = vmatpush2.xpose.msra.mxu0 0.0
      %1653 = vmatprep.subr.mxu0 0.0
      %1654 = vmatpush2.xpose.msra.mxu0 0.0
      %1655 = vmatprep.subr.mxu0 0.0
      %1656 = vmatpush2.xpose.msra.mxu0 0.0
      %1657 = vmatprep.subr.mxu0 0.0
      %1658 = vmatpush2.xpose.msra.mxu0 0.0
      %1659 = vmatprep.subr.mxu0 0.0
      %1660 = vmatpush2.xpose.msra.mxu0 0.0
      %1661 = vmatprep.subr.mxu0 0.0
      %1662 = vmatpush2.xpose.msra.mxu0 0.0
      %1663 = vmatprep.subr.mxu0 0.0
      %1664 = vmatpush2.xpose.msra.mxu0 0.0
      %1665 = vmatprep.mubr.f32.mxu0 0.0
      %1666 = vmatmul.mubr.f32.gmra.mxu0 %v1597
      %v1667 = vpop.f32.mrf.mxu0
      %v1668 = vadd.f32 0.0, %v1667
      %v1669 = vpop.f32.mrf.mxu0
      %1670 = vdwg.mxu0
      %1671 = vrot.lane.b32.xlu0 %v768, 112
      %v1672 = vpop.permute.xlu0 %1671
      %1673 = vrot.lane.b32.xlu0 %v768, 80
      %v1674 = vpop.permute.xlu0 %1673
      %v1675 = vsel %vm774, %v1672, 0
      %v1677 = vsel %vm774, %v1674, 0
      %1679 = vmatprep.subr.mxu0 0.0
      %1680 = vmatpush1.xpose.msra.mxu0 0.0
      %1681 = vmatprep.subr.mxu0 0.0
      %1682 = vmatpush1.xpose.msra.mxu0 0.0
      %1683 = vmatprep.subr.mxu0 0.0
      %1684 = vmatpush1.xpose.msra.mxu0 0.0
      %1685 = vmatprep.subr.mxu0 0.0
      %1686 = vmatpush1.xpose.msra.mxu0 0.0
      %1687 = vmatprep.subr.mxu0 0.0
      %1688 = vmatpush1.xpose.msra.mxu0 0.0
      %1689 = vmatprep.subr.mxu0 0.0
      %1690 = vmatpush1.xpose.msra.mxu0 0.0
      %1691 = vmatprep.subr.mxu0 0.0
      %1692 = vmatpush1.xpose.msra.mxu0 0.0
      %1693 = vmatprep.subr.mxu0 0.0
      %1694 = vmatpush1.xpose.msra.mxu0 0.0
      %1695 = vmatprep.subr.mxu0 0.0
      %1696 = vmatpush1.xpose.msra.mxu0 0.0
      %1697 = vmatprep.subr.mxu0 0.0
      %1698 = vmatpush1.xpose.msra.mxu0 0.0
      %1699 = vmatprep.subr.mxu0 0.0
      %1700 = vmatpush1.xpose.msra.mxu0 0.0
      %1701 = vmatprep.subr.mxu0 0.0
      %1702 = vmatpush1.xpose.msra.mxu0 0.0
      %1703 = vmatprep.subr.mxu0 0.0
      %1704 = vmatpush1.xpose.msra.mxu0 0.0
      %1705 = vmatprep.subr.mxu0 0.0
      %1706 = vmatpush1.xpose.msra.mxu0 0.0
      %1707 = vmatprep.subr.mxu0 0.0
      %1708 = vmatpush1.xpose.msra.mxu0 0.0
      %1709 = vmatprep.subr.mxu0 0.0
      %1710 = vmatpush1.xpose.msra.mxu0 %v1677
      %1711 = vmatprep.subr.mxu0 0.0
      %1712 = vmatpush2.xpose.msra.mxu0 0.0
      %1713 = vmatprep.subr.mxu0 0.0
      %1714 = vmatpush2.xpose.msra.mxu0 0.0
      %1715 = vmatprep.subr.mxu0 0.0
      %1716 = vmatpush2.xpose.msra.mxu0 0.0
      %1717 = vmatprep.subr.mxu0 0.0
      %1718 = vmatpush2.xpose.msra.mxu0 0.0
      %1719 = vmatprep.subr.mxu0 0.0
      %1720 = vmatpush2.xpose.msra.mxu0 0.0
      %1721 = vmatprep.subr.mxu0 0.0
      %1722 = vmatpush2.xpose.msra.mxu0 0.0
      %1723 = vmatprep.subr.mxu0 0.0
      %1724 = vmatpush2.xpose.msra.mxu0 0.0
      %1725 = vmatprep.subr.mxu0 0.0
      %1726 = vmatpush2.xpose.msra.mxu0 0.0
      %1727 = vmatprep.subr.mxu0 0.0
      %1728 = vmatpush2.xpose.msra.mxu0 0.0
      %1729 = vmatprep.subr.mxu0 0.0
      %1730 = vmatpush2.xpose.msra.mxu0 0.0
      %1731 = vmatprep.subr.mxu0 0.0
      %1732 = vmatpush2.xpose.msra.mxu0 0.0
      %1733 = vmatprep.subr.mxu0 0.0
      %1734 = vmatpush2.xpose.msra.mxu0 0.0
      %1735 = vmatprep.subr.mxu0 0.0
      %1736 = vmatpush2.xpose.msra.mxu0 0.0
      %1737 = vmatprep.subr.mxu0 0.0
      %1738 = vmatpush2.xpose.msra.mxu0 0.0
      %1739 = vmatprep.subr.mxu0 0.0
      %1740 = vmatpush2.xpose.msra.mxu0 0.0
      %1741 = vmatprep.subr.mxu0 0.0
      %1742 = vmatpush2.xpose.msra.mxu0 0.0
      %1743 = vmatprep.mubr.f32.mxu0 0.0
      %1744 = vmatmul.mubr.f32.gmra.mxu0 %v1675
      %v1745 = vpop.f32.mrf.mxu0
      %v1746 = vadd.f32 0.0, %v1745
      %v1747 = vpop.f32.mrf.mxu0
      %1748 = vdwg.mxu0
      %v1749 = vmul.f32 %v1512, 0.25
      %v1750 = vmul.f32 %v1590, 0.25
      %v1751 = vmul.f32 %v1668, 0.25
      %v1752 = vmul.f32 %v1746, 0.25
      %v1753 = vadd.f32 %v1749, %v650
      %v1754 = vadd.f32 %v1750, %v651
      %v1755 = vadd.f32 %v1751, %v652
      %v1756 = vadd.f32 %v1752, %v653
      %v1757 = vsel %vm1088, %v1753, -inf
      %1758 = vmax.xlane.f32.xlu0 %v1757
      %v1759 = vpop.xlane.xlu0 %1758
      %v1760 = vsel %vm1088, %v1754, -inf
      %1761 = vmax.xlane.f32.xlu0 %v1760
      %v1762 = vpop.xlane.xlu0 %1761
      %v1763 = vsel %vm1088, %v1755, -inf
      %1764 = vmax.xlane.f32.xlu0 %v1763
      %v1765 = vpop.xlane.xlu0 %1764
      %v1766 = vsel %vm1088, %v1756, -inf
      %1767 = vmax.xlane.f32.xlu0 %v1766
      %v1768 = vpop.xlane.xlu0 %1767
      %v1769 = vsub.f32 %v1753, %v1759
      %v1770 = vsub.f32 %v1754, %v1762
      %v1771 = vsub.f32 %v1755, %v1765
      %v1772 = vsub.f32 %v1756, %v1768
      %v1773 = vmul.f32 %v1769, 1.442695
      %v1774 = vpow.pop %v1773
      %v1775 = vmul.f32 %v1770, 1.442695
      %v1776 = vpow.pop %v1775
      %v1777 = vmul.f32 %v1771, 1.442695
      %v1778 = vpow.pop %v1777
      %v1779 = vmul.f32 %v1772, 1.442695
      %v1780 = vpow.pop %v1779
      %v1781 = vsel %vm1088, %v1774, 0.0
      %1782 = vadd.xlane.f32.xlu0 %v1781
      %v1783 = vpop.xlane.xlu0 %1782
      %v1784 = vsel %vm1088, %v1776, 0.0
      %1785 = vadd.xlane.f32.xlu0 %v1784
      %v1786 = vpop.xlane.xlu0 %1785
      %v1787 = vsel %vm1088, %v1778, 0.0
      %1788 = vadd.xlane.f32.xlu0 %v1787
      %v1789 = vpop.xlane.xlu0 %1788
      %v1790 = vsel %vm1088, %v1780, 0.0
      %1791 = vadd.xlane.f32.xlu0 %v1790
      %v1792 = vpop.xlane.xlu0 %1791
      %v1793 = vrcp.pop %v1783
      %v1794 = vrcp.pop %v1786
      %v1795 = vrcp.pop %v1789
      %v1796 = vrcp.pop %v1792
      %v1797 = vmul.f32 %v1774, %v1793
      %v1798 = vmul.f32 %v1776, %v1794
      %v1799 = vmul.f32 %v1778, %v1795
      %v1800 = vmul.f32 %v1780, %v1796
      %1801 = vrot.lane.b32.xlu0 %v753, 48
      %v1802 = vpop.permute.xlu0 %1801
      %v1805 = vsel %vm1088, %v1797, 0
      %1807 = vmatprep.subr.mxu0 0.0
      %1808 = vmatpush1.msra.mxu0 0.0
      %1809 = vmatprep.subr.mxu0 0.0
      %1810 = vmatpush1.msra.mxu0 0.0
      %1811 = vmatprep.subr.mxu0 0.0
      %1812 = vmatpush1.msra.mxu0 0.0
      %1813 = vmatprep.subr.mxu0 0.0
      %1814 = vmatpush1.msra.mxu0 0.0
      %1815 = vmatprep.subr.mxu0 0.0
      %1816 = vmatpush1.msra.mxu0 0.0
      %1817 = vmatprep.subr.mxu0 0.0
      %1818 = vmatpush1.msra.mxu0 0.0
      %1819 = vmatprep.subr.mxu0 0.0
      %1820 = vmatpush1.msra.mxu0 0.0
      %1821 = vmatprep.subr.mxu0 0.0
      %1822 = vmatpush1.msra.mxu0 0.0
      %1823 = vmatprep.subr.mxu0 0.0
      %1824 = vmatpush1.msra.mxu0 0.0
      %1825 = vmatprep.subr.mxu0 0.0
      %1826 = vmatpush1.msra.mxu0 0.0
      %1827 = vmatprep.subr.mxu0 0.0
      %1828 = vmatpush1.msra.mxu0 0.0
      %1829 = vmatprep.subr.mxu0 0.0
      %1830 = vmatpush1.msra.mxu0 0.0
      %1831 = vmatprep.subr.mxu0 0.0
      %1832 = vmatpush1.msra.mxu0 0.0
      %1833 = vmatprep.subr.mxu0 0.0
      %1834 = vmatpush1.msra.mxu0 0.0
      %1835 = vmatprep.subr.mxu0 0.0
      %1836 = vmatpush1.msra.mxu0 0.0
      %1837 = vmatprep.subr.mxu0 0.0
      %1838 = vmatpush1.msra.mxu0 %v1802
      %1839 = vmatprep.subr.mxu0 0.0
      %1840 = vmatpush2.msra.mxu0 0.0
      %1841 = vmatprep.subr.mxu0 0.0
      %1842 = vmatpush2.msra.mxu0 0.0
      %1843 = vmatprep.subr.mxu0 0.0
      %1844 = vmatpush2.msra.mxu0 0.0
      %1845 = vmatprep.subr.mxu0 0.0
      %1846 = vmatpush2.msra.mxu0 0.0
      %1847 = vmatprep.subr.mxu0 0.0
      %1848 = vmatpush2.msra.mxu0 0.0
      %1849 = vmatprep.subr.mxu0 0.0
      %1850 = vmatpush2.msra.mxu0 0.0
      %1851 = vmatprep.subr.mxu0 0.0
      %1852 = vmatpush2.msra.mxu0 0.0
      %1853 = vmatprep.subr.mxu0 0.0
      %1854 = vmatpush2.msra.mxu0 0.0
      %1855 = vmatprep.subr.mxu0 0.0
      %1856 = vmatpush2.msra.mxu0 0.0
      %1857 = vmatprep.subr.mxu0 0.0
      %1858 = vmatpush2.msra.mxu0 0.0
      %1859 = vmatprep.subr.mxu0 0.0
      %1860 = vmatpush2.msra.mxu0 0.0
      %1861 = vmatprep.subr.mxu0 0.0
      %1862 = vmatpush2.msra.mxu0 0.0
      %1863 = vmatprep.subr.mxu0 0.0
      %1864 = vmatpush2.msra.mxu0 0.0
      %1865 = vmatprep.subr.mxu0 0.0
      %1866 = vmatpush2.msra.mxu0 0.0
      %1867 = vmatprep.subr.mxu0 0.0
      %1868 = vmatpush2.msra.mxu0 0.0
      %1869 = vmatprep.subr.mxu0 0.0
      %1870 = vmatpush2.msra.mxu0 0.0
      %1871 = vmatprep.mubr.f32.mxu0 0.0
      %1872 = vmatmul.mubr.f32.gmra.mxu0 %v1805
      %v1873 = vpop.f32.mrf.mxu0
      %v1874 = vadd.f32 0.0, %v1873
      %v1875 = vpop.f32.mrf.mxu0
      %1876 = vdwg.mxu0
      %1877 = vrot.lane.b32.xlu0 %v758, 48
      %v1878 = vpop.permute.xlu0 %1877
      %v1881 = vsel %vm1088, %v1798, 0
      %1883 = vmatprep.subr.mxu0 0.0
      %1884 = vmatpush1.msra.mxu0 0.0
      %1885 = vmatprep.subr.mxu0 0.0
      %1886 = vmatpush1.msra.mxu0 0.0
      %1887 = vmatprep.subr.mxu0 0.0
      %1888 = vmatpush1.msra.mxu0 0.0
      %1889 = vmatprep.subr.mxu0 0.0
      %1890 = vmatpush1.msra.mxu0 0.0
      %1891 = vmatprep.subr.mxu0 0.0
      %1892 = vmatpush1.msra.mxu0 0.0
      %1893 = vmatprep.subr.mxu0 0.0
      %1894 = vmatpush1.msra.mxu0 0.0
      %1895 = vmatprep.subr.mxu0 0.0
      %1896 = vmatpush1.msra.mxu0 0.0
      %1897 = vmatprep.subr.mxu0 0.0
      %1898 = vmatpush1.msra.mxu0 0.0
      %1899 = vmatprep.subr.mxu0 0.0
      %1900 = vmatpush1.msra.mxu0 0.0
      %1901 = vmatprep.subr.mxu0 0.0
      %1902 = vmatpush1.msra.mxu0 0.0
      %1903 = vmatprep.subr.mxu0 0.0
      %1904 = vmatpush1.msra.mxu0 0.0
      %1905 = vmatprep.subr.mxu0 0.0
      %1906 = vmatpush1.msra.mxu0 0.0
      %1907 = vmatprep.subr.mxu0 0.0
      %1908 = vmatpush1.msra.mxu0 0.0
      %1909 = vmatprep.subr.mxu0 0.0
      %1910 = vmatpush1.msra.mxu0 0.0
      %1911 = vmatprep.subr.mxu0 0.0
      %1912 = vmatpush1.msra.mxu0 0.0
      %1913 = vmatprep.subr.mxu0 0.0
      %1914 = vmatpush1.msra.mxu0 %v1878
      %1915 = vmatprep.subr.mxu0 0.0
      %1916 = vmatpush2.msra.mxu0 0.0
      %1917 = vmatprep.subr.mxu0 0.0
      %1918 = vmatpush2.msra.mxu0 0.0
      %1919 = vmatprep.subr.mxu0 0.0
      %1920 = vmatpush2.msra.mxu0 0.0
      %1921 = vmatprep.subr.mxu0 0.0
      %1922 = vmatpush2.msra.mxu0 0.0
      %1923 = vmatprep.subr.mxu0 0.0
      %1924 = vmatpush2.msra.mxu0 0.0
      %1925 = vmatprep.subr.mxu0 0.0
      %1926 = vmatpush2.msra.mxu0 0.0
      %1927 = vmatprep.subr.mxu0 0.0
      %1928 = vmatpush2.msra.mxu0 0.0
      %1929 = vmatprep.subr.mxu0 0.0
      %1930 = vmatpush2.msra.mxu0 0.0
      %1931 = vmatprep.subr.mxu0 0.0
      %1932 = vmatpush2.msra.mxu0 0.0
      %1933 = vmatprep.subr.mxu0 0.0
      %1934 = vmatpush2.msra.mxu0 0.0
      %1935 = vmatprep.subr.mxu0 0.0
      %1936 = vmatpush2.msra.mxu0 0.0
      %1937 = vmatprep.subr.mxu0 0.0
      %1938 = vmatpush2.msra.mxu0 0.0
      %1939 = vmatprep.subr.mxu0 0.0
      %1940 = vmatpush2.msra.mxu0 0.0
      %1941 = vmatprep.subr.mxu0 0.0
      %1942 = vmatpush2.msra.mxu0 0.0
      %1943 = vmatprep.subr.mxu0 0.0
      %1944 = vmatpush2.msra.mxu0 0.0
      %1945 = vmatprep.subr.mxu0 0.0
      %1946 = vmatpush2.msra.mxu0 0.0
      %1947 = vmatprep.mubr.f32.mxu0 0.0
      %1948 = vmatmul.mubr.f32.gmra.mxu0 %v1881
      %v1949 = vpop.f32.mrf.mxu0
      %v1950 = vadd.f32 0.0, %v1949
      %v1951 = vpop.f32.mrf.mxu0
      %1952 = vdwg.mxu0
      %1953 = vrot.lane.b32.xlu0 %v763, 48
      %v1954 = vpop.permute.xlu0 %1953
      %v1957 = vsel %vm1088, %v1799, 0
      %1959 = vmatprep.subr.mxu0 0.0
      %1960 = vmatpush1.msra.mxu0 0.0
      %1961 = vmatprep.subr.mxu0 0.0
      %1962 = vmatpush1.msra.mxu0 0.0
      %1963 = vmatprep.subr.mxu0 0.0
      %1964 = vmatpush1.msra.mxu0 0.0
      %1965 = vmatprep.subr.mxu0 0.0
      %1966 = vmatpush1.msra.mxu0 0.0
      %1967 = vmatprep.subr.mxu0 0.0
      %1968 = vmatpush1.msra.mxu0 0.0
      %1969 = vmatprep.subr.mxu0 0.0
      %1970 = vmatpush1.msra.mxu0 0.0
      %1971 = vmatprep.subr.mxu0 0.0
      %1972 = vmatpush1.msra.mxu0 0.0
      %1973 = vmatprep.subr.mxu0 0.0
      %1974 = vmatpush1.msra.mxu0 0.0
      %1975 = vmatprep.subr.mxu0 0.0
      %1976 = vmatpush1.msra.mxu0 0.0
      %1977 = vmatprep.subr.mxu0 0.0
      %1978 = vmatpush1.msra.mxu0 0.0
      %1979 = vmatprep.subr.mxu0 0.0
      %1980 = vmatpush1.msra.mxu0 0.0
      %1981 = vmatprep.subr.mxu0 0.0
      %1982 = vmatpush1.msra.mxu0 0.0
      %1983 = vmatprep.subr.mxu0 0.0
      %1984 = vmatpush1.msra.mxu0 0.0
      %1985 = vmatprep.subr.mxu0 0.0
      %1986 = vmatpush1.msra.mxu0 0.0
      %1987 = vmatprep.subr.mxu0 0.0
      %1988 = vmatpush1.msra.mxu0 0.0
      %1989 = vmatprep.subr.mxu0 0.0
      %1990 = vmatpush1.msra.mxu0 %v1954
      %1991 = vmatprep.subr.mxu0 0.0
      %1992 = vmatpush2.msra.mxu0 0.0
      %1993 = vmatprep.subr.mxu0 0.0
      %1994 = vmatpush2.msra.mxu0 0.0
      %1995 = vmatprep.subr.mxu0 0.0
      %1996 = vmatpush2.msra.mxu0 0.0
      %1997 = vmatprep.subr.mxu0 0.0
      %1998 = vmatpush2.msra.mxu0 0.0
      %1999 = vmatprep.subr.mxu0 0.0
      %2000 = vmatpush2.msra.mxu0 0.0
      %2001 = vmatprep.subr.mxu0 0.0
      %2002 = vmatpush2.msra.mxu0 0.0
      %2003 = vmatprep.subr.mxu0 0.0
      %2004 = vmatpush2.msra.mxu0 0.0
      %2005 = vmatprep.subr.mxu0 0.0
      %2006 = vmatpush2.msra.mxu0 0.0
      %2007 = vmatprep.subr.mxu0 0.0
      %2008 = vmatpush2.msra.mxu0 0.0
      %2009 = vmatprep.subr.mxu0 0.0
      %2010 = vmatpush2.msra.mxu0 0.0
      %2011 = vmatprep.subr.mxu0 0.0
      %2012 = vmatpush2.msra.mxu0 0.0
      %2013 = vmatprep.subr.mxu0 0.0
      %2014 = vmatpush2.msra.mxu0 0.0
      %2015 = vmatprep.subr.mxu0 0.0
      %2016 = vmatpush2.msra.mxu0 0.0
      %2017 = vmatprep.subr.mxu0 0.0
      %2018 = vmatpush2.msra.mxu0 0.0
      %2019 = vmatprep.subr.mxu0 0.0
      %2020 = vmatpush2.msra.mxu0 0.0
      %2021 = vmatprep.subr.mxu0 0.0
      %2022 = vmatpush2.msra.mxu0 0.0
      %2023 = vmatprep.mubr.f32.mxu0 0.0
      %2024 = vmatmul.mubr.f32.gmra.mxu0 %v1957
      %v2025 = vpop.f32.mrf.mxu0
      %v2026 = vadd.f32 0.0, %v2025
      %v2027 = vpop.f32.mrf.mxu0
      %2028 = vdwg.mxu0
      %2029 = vrot.lane.b32.xlu0 %v768, 48
      %v2030 = vpop.permute.xlu0 %2029
      %v2033 = vsel %vm1088, %v1800, 0
      %2035 = vmatprep.subr.mxu0 0.0
      %2036 = vmatpush1.msra.mxu0 0.0
      %2037 = vmatprep.subr.mxu0 0.0
      %2038 = vmatpush1.msra.mxu0 0.0
      %2039 = vmatprep.subr.mxu0 0.0
      %2040 = vmatpush1.msra.mxu0 0.0
      %2041 = vmatprep.subr.mxu0 0.0
      %2042 = vmatpush1.msra.mxu0 0.0
      %2043 = vmatprep.subr.mxu0 0.0
      %2044 = vmatpush1.msra.mxu0 0.0
      %2045 = vmatprep.subr.mxu0 0.0
      %2046 = vmatpush1.msra.mxu0 0.0
      %2047 = vmatprep.subr.mxu0 0.0
      %2048 = vmatpush1.msra.mxu0 0.0
      %2049 = vmatprep.subr.mxu0 0.0
      %2050 = vmatpush1.msra.mxu0 0.0
      %2051 = vmatprep.subr.mxu0 0.0
      %2052 = vmatpush1.msra.mxu0 0.0
      %2053 = vmatprep.subr.mxu0 0.0
      %2054 = vmatpush1.msra.mxu0 0.0
      %2055 = vmatprep.subr.mxu0 0.0
      %2056 = vmatpush1.msra.mxu0 0.0
      %2057 = vmatprep.subr.mxu0 0.0
      %2058 = vmatpush1.msra.mxu0 0.0
      %2059 = vmatprep.subr.mxu0 0.0
      %2060 = vmatpush1.msra.mxu0 0.0
      %2061 = vmatprep.subr.mxu0 0.0
      %2062 = vmatpush1.msra.mxu0 0.0
      %2063 = vmatprep.subr.mxu0 0.0
      %2064 = vmatpush1.msra.mxu0 0.0
      %2065 = vmatprep.subr.mxu0 0.0
      %2066 = vmatpush1.msra.mxu0 %v2030
      %2067 = vmatprep.subr.mxu0 0.0
      %2068 = vmatpush2.msra.mxu0 0.0
      %2069 = vmatprep.subr.mxu0 0.0
      %2070 = vmatpush2.msra.mxu0 0.0
      %2071 = vmatprep.subr.mxu0 0.0
      %2072 = vmatpush2.msra.mxu0 0.0
      %2073 = vmatprep.subr.mxu0 0.0
      %2074 = vmatpush2.msra.mxu0 0.0
      %2075 = vmatprep.subr.mxu0 0.0
      %2076 = vmatpush2.msra.mxu0 0.0
      %2077 = vmatprep.subr.mxu0 0.0
      %2078 = vmatpush2.msra.mxu0 0.0
      %2079 = vmatprep.subr.mxu0 0.0
      %2080 = vmatpush2.msra.mxu0 0.0
      %2081 = vmatprep.subr.mxu0 0.0
      %2082 = vmatpush2.msra.mxu0 0.0
      %2083 = vmatprep.subr.mxu0 0.0
      %2084 = vmatpush2.msra.mxu0 0.0
      %2085 = vmatprep.subr.mxu0 0.0
      %2086 = vmatpush2.msra.mxu0 0.0
      %2087 = vmatprep.subr.mxu0 0.0
      %2088 = vmatpush2.msra.mxu0 0.0
      %2089 = vmatprep.subr.mxu0 0.0
      %2090 = vmatpush2.msra.mxu0 0.0
      %2091 = vmatprep.subr.mxu0 0.0
      %2092 = vmatpush2.msra.mxu0 0.0
      %2093 = vmatprep.subr.mxu0 0.0
      %2094 = vmatpush2.msra.mxu0 0.0
      %2095 = vmatprep.subr.mxu0 0.0
      %2096 = vmatpush2.msra.mxu0 0.0
      %2097 = vmatprep.subr.mxu0 0.0
      %2098 = vmatpush2.msra.mxu0 0.0
      %2099 = vmatprep.mubr.f32.mxu0 0.0
      %2100 = vmatmul.mubr.f32.gmra.mxu0 %v2033
      %v2101 = vpop.f32.mrf.mxu0
      %v2102 = vadd.f32 0.0, %v2101
      %v2103 = vpop.f32.mrf.mxu0
      %2104 = vdwg.mxu0
      %2109 = vrot.lane.b32.xlu0 %v1874, 16
      %v2110 = vpop.permute.xlu0 %2109
      %2111 = vrot.lane.b32.xlu0 %v1950, 16
      %v2112 = vpop.permute.xlu0 %2111
      %2113 = vrot.lane.b32.xlu0 %v2026, 16
      %v2114 = vpop.permute.xlu0 %2113
      %2115 = vrot.lane.b32.xlu0 %v2102, 16
      %v2116 = vpop.permute.xlu0 %2115
      %v2121 = vsel %vm774, %v1206, %v2110
      %v2122 = vsel %vm774, %v1282, %v2112
      %v2123 = vsel %vm774, %v1358, %v2114
      %v2124 = vsel %vm774, %v1434, %v2116
      %v2125 = vld [vmem:[%s5] sm:$0xff]
      %v2126 = vld [vmem:[%s5 + $0x8] sm:$0xff]
      %v2127 = vld [vmem:[%s5 + $0x10] sm:$0xff]
      %v2128 = vld [vmem:[%s5 + $0x18] sm:$0xff]
      %v2129 = vld [vmem:[%s6] sm:$0x1]
      %v2131 = vlaneseq
      %v2132 = vshrl.u32 %v2131, 7
      %v2133 = vsub.s32 0, %v2132
      %v2134 = vrot.slane %v2129, %v2133
      %v2137 = vsel %vm654, %v2121, 0
      %v2140 = vsel %vm654, %v2122, 0
      %v2143 = vsel %vm654, %v2123, 0
      %v2146 = vsel %vm654, %v2124, 0
      %2148 = vmatprep.subr.mxu0 0.0
      %2149 = vmatpush1.msra.mxu0 0.0
      %2150 = vmatprep.subr.mxu0 0.0
      %2151 = vmatpush1.msra.mxu0 0.0
      %2152 = vmatprep.subr.mxu0 0.0
      %2153 = vmatpush1.msra.mxu0 0.0
      %2154 = vmatprep.subr.mxu0 0.0
      %2155 = vmatpush1.msra.mxu0 0.0
      %2156 = vmatprep.subr.mxu0 0.0
      %2157 = vmatpush1.msra.mxu0 0.0
      %2158 = vmatprep.subr.mxu0 0.0
      %2159 = vmatpush1.msra.mxu0 0.0
      %2160 = vmatprep.subr.mxu0 0.0
      %2161 = vmatpush1.msra.mxu0 0.0
      %2162 = vmatprep.subr.mxu0 0.0
      %2163 = vmatpush1.msra.mxu0 0.0
      %2164 = vmatprep.subr.mxu0 0.0
      %2165 = vmatpush1.msra.mxu0 0.0
      %2166 = vmatprep.subr.mxu0 0.0
      %2167 = vmatpush1.msra.mxu0 0.0
      %2168 = vmatprep.subr.mxu0 0.0
      %2169 = vmatpush1.msra.mxu0 0.0
      %2170 = vmatprep.subr.mxu0 0.0
      %2171 = vmatpush1.msra.mxu0 0.0
      %2172 = vmatprep.subr.mxu0 0.0
      %2173 = vmatpush1.msra.mxu0 %v2128
      %2174 = vmatprep.subr.mxu0 0.0
      %2175 = vmatpush1.msra.mxu0 %v2127
      %2176 = vmatprep.subr.mxu0 0.0
      %2177 = vmatpush1.msra.mxu0 %v2126
      %2178 = vmatprep.subr.mxu0 0.0
      %2179 = vmatpush1.msra.mxu0 %v2125
      %2180 = vmatprep.subr.mxu0 0.0
      %2181 = vmatpush2.msra.mxu0 0.0
      %2182 = vmatprep.subr.mxu0 0.0
      %2183 = vmatpush2.msra.mxu0 0.0
      %2184 = vmatprep.subr.mxu0 0.0
      %2185 = vmatpush2.msra.mxu0 0.0
      %2186 = vmatprep.subr.mxu0 0.0
      %2187 = vmatpush2.msra.mxu0 0.0
      %2188 = vmatprep.subr.mxu0 0.0
      %2189 = vmatpush2.msra.mxu0 0.0
      %2190 = vmatprep.subr.mxu0 0.0
      %2191 = vmatpush2.msra.mxu0 0.0
      %2192 = vmatprep.subr.mxu0 0.0
      %2193 = vmatpush2.msra.mxu0 0.0
      %2194 = vmatprep.subr.mxu0 0.0
      %2195 = vmatpush2.msra.mxu0 0.0
      %2196 = vmatprep.subr.mxu0 0.0
      %2197 = vmatpush2.msra.mxu0 0.0
      %2198 = vmatprep.subr.mxu0 0.0
      %2199 = vmatpush2.msra.mxu0 0.0
      %2200 = vmatprep.subr.mxu0 0.0
      %2201 = vmatpush2.msra.mxu0 0.0
      %2202 = vmatprep.subr.mxu0 0.0
      %2203 = vmatpush2.msra.mxu0 0.0
      %2204 = vmatprep.subr.mxu0 0.0
      %2205 = vmatpush2.msra.mxu0 0.0
      %2206 = vmatprep.subr.mxu0 0.0
      %2207 = vmatpush2.msra.mxu0 0.0
      %2208 = vmatprep.subr.mxu0 0.0
      %2209 = vmatpush2.msra.mxu0 0.0
      %2210 = vmatprep.subr.mxu0 0.0
      %2211 = vmatpush2.msra.mxu0 0.0
      %2212 = vmatprep.mubr.f32.mxu0 0.0
      %2213 = vmatmul.mubr.f32.gmra.mxu0 %v2137
      %v2214 = vpop.f32.mrf.mxu0
      %v2215 = vadd.f32 %v2134, %v2214
      %v2216 = vpop.f32.mrf.mxu0
      %2217 = vmatprep.mubr.f32.mxu0 0.0
      %2218 = vmatmul.mubr.f32.gmra.mxu0 %v2140
      %v2219 = vpop.f32.mrf.mxu0
      %v2220 = vadd.f32 %v2134, %v2219
      %v2221 = vpop.f32.mrf.mxu0
      %2222 = vmatprep.mubr.f32.mxu0 0.0
      %2223 = vmatmul.mubr.f32.gmra.mxu0 %v2143
      %v2224 = vpop.f32.mrf.mxu0
      %v2225 = vadd.f32 %v2134, %v2224
      %v2226 = vpop.f32.mrf.mxu0
      %2227 = vmatprep.mubr.f32.mxu0 0.0
      %2228 = vmatmul.mubr.f32.gmra.mxu0 %v2146
      %v2229 = vpop.f32.mrf.mxu0
      %v2230 = vadd.f32 %v2134, %v2229
      %v2231 = vpop.f32.mrf.mxu0
      %2232 = vdwg.mxu0
      %v2233 = vadd.f32 %v2215, %v578
      %v2234 = vadd.f32 %v2220, %v579
      %v2235 = vadd.f32 %v2225, %v580
      %v2236 = vadd.f32 %v2230, %v581
      %v2237 = vld [vmem:[%s7] sm:$0x1]
      %v2238 = vld [vmem:[%s8] sm:$0x1]
      %v2239 = vsel %vm654, %v2233, 0.0
      %2240 = vadd.xlane.f32.xlu0 %v2239
      %v2241 = vpop.xlane.xlu0 %2240
      %v2242 = vsel %vm654, %v2234, 0.0
      %2243 = vadd.xlane.f32.xlu0 %v2242
      %v2244 = vpop.xlane.xlu0 %2243
      %v2245 = vsel %vm654, %v2235, 0.0
      %2246 = vadd.xlane.f32.xlu0 %v2245
      %v2247 = vpop.xlane.xlu0 %2246
      %v2248 = vsel %vm654, %v2236, 0.0
      %2249 = vadd.xlane.f32.xlu0 %v2248
      %v2250 = vpop.xlane.xlu0 %2249
      %v2251 = vrcp.pop 32.0
      %v2252 = vmul.f32 %v2241, %v2251
      %v2253 = vmul.f32 %v2244, %v2251
      %v2254 = vmul.f32 %v2247, %v2251
      %v2255 = vmul.f32 %v2250, %v2251
      %v2256 = vsub.f32 %v2233, %v2252
      %v2257 = vsub.f32 %v2234, %v2253
      %v2258 = vsub.f32 %v2235, %v2254
      %v2259 = vsub.f32 %v2236, %v2255
      %v2260 = vmul.f32 %v2256, %v2256
      %v2261 = vmul.f32 %v2257, %v2257
      %v2262 = vmul.f32 %v2258, %v2258
      %v2263 = vmul.f32 %v2259, %v2259
      %v2264 = vsel %vm654, %v2260, 0.0
      %2265 = vadd.xlane.f32.xlu0 %v2264
      %v2266 = vpop.xlane.xlu0 %2265
      %v2267 = vsel %vm654, %v2261, 0.0
      %2268 = vadd.xlane.f32.xlu0 %v2267
      %v2269 = vpop.xlane.xlu0 %2268
      %v2270 = vsel %vm654, %v2262, 0.0
      %2271 = vadd.xlane.f32.xlu0 %v2270
      %v2272 = vpop.xlane.xlu0 %2271
      %v2273 = vsel %vm654, %v2263, 0.0
      %2274 = vadd.xlane.f32.xlu0 %v2273
      %v2275 = vpop.xlane.xlu0 %2274
      %v2276 = vmul.f32 %v2266, %v2251
      %v2277 = vmul.f32 %v2269, %v2251
      %v2278 = vmul.f32 %v2272, %v2251
      %v2279 = vmul.f32 %v2275, %v2251
      %v2280 = vadd.f32 %v2276, 1e-05
      %v2281 = vadd.f32 %v2277, 1e-05
      %v2282 = vadd.f32 %v2278, 1e-05
      %v2283 = vadd.f32 %v2279, 1e-05
      %v2284 = vrsqrt.pop %v2280
      %v2285 = vrsqrt.pop %v2281
      %v2286 = vrsqrt.pop %v2282
      %v2287 = vrsqrt.pop %v2283
      %v2288 = vmul.f32 %v2256, %v2284
      %v2289 = vmul.f32 %v2257, %v2285
      %v2290 = vmul.f32 %v2258, %v2286
      %v2291 = vmul.f32 %v2259, %v2287
      %v2293 = vlaneseq
      %v2294 = vshrl.u32 %v2293, 7
      %v2295 = vsub.s32 0, %v2294
      %v2296 = vrot.slane %v2237, %v2295
      %v2298 = vmul.f32 %v2288, %v2296
      %v2299 = vmul.f32 %v2289, %v2296
      %v2300 = vmul.f32 %v2290, %v2296
      %v2301 = vmul.f32 %v2291, %v2296
      %v2303 = vlaneseq
      %v2304 = vshrl.u32 %v2303, 7
      %v2305 = vsub.s32 0, %v2304
      %v2306 = vrot.slane %v2238, %v2305
      %v2308 = vadd.f32 %v2298, %v2306
      %v2309 = vadd.f32 %v2299, %v2306
      %v2310 = vadd.f32 %v2300, %v2306
      %v2311 = vadd.f32 %v2301, %v2306
      %2313 = vset.pattern.permute.xlu0 0
      %2314 = vperm.xlu0 %2313, %v614
      %v2315 = vpop.permute.xlu0 %2314
      %2318 = vset.pattern.permute.xlu0 0
      %2319 = vperm.xlu0 %2318, %v615
      %v2320 = vpop.permute.xlu0 %2319
      %2323 = vset.pattern.permute.xlu0 0
      %2324 = vperm.xlu0 %2323, %v616
      %v2325 = vpop.permute.xlu0 %2324
      %2328 = vset.pattern.permute.xlu0 0
      %2329 = vperm.xlu0 %2328, %v617
      %v2330 = vpop.permute.xlu0 %2329
      %v2332 = vmul.f32 %v2308, %v2315
      %v2333 = vmul.f32 %v2309, %v2320
      %v2334 = vmul.f32 %v2310, %v2325
      %v2335 = vmul.f32 %v2311, %v2330
      %2336 = vst.msk [vmem:[#allocation2 + $0x4] sm:$0xff] %vm654, %v2332
      %2337 = vst.msk [vmem:[#allocation2 + $0x14] sm:$0xff] %vm654, %v2333
      %2338 = vst.msk [vmem:[#allocation2 + $0x24] sm:$0xff] %vm654, %v2334
      %2339 = vst.msk [vmem:[#allocation2 + $0x34] sm:$0xff] %vm654, %v2335
      %v2340 = vld [vmem:[#allocation2] sm:$0xff]
      %v2341 = vld [vmem:[#allocation2 + $0x10] sm:$0xff]
      %v2342 = vld [vmem:[#allocation2 + $0x20] sm:$0xff]
      %v2343 = vld [vmem:[#allocation2 + $0x30] sm:$0xff]
      %v2344 = vld [vmem:[#allocation2 + $0x1] sm:$0xff]
      %v2345 = vld [vmem:[#allocation2 + $0x11] sm:$0xff]
      %v2346 = vld [vmem:[#allocation2 + $0x21] sm:$0xff]
      %v2347 = vld [vmem:[#allocation2 + $0x31] sm:$0xff]
      %v2348 = vld [vmem:[#allocation2 + $0x2] sm:$0xff]
      %v2349 = vld [vmem:[#allocation2 + $0x12] sm:$0xff]
      %v2350 = vld [vmem:[#allocation2 + $0x22] sm:$0xff]
      %v2351 = vld [vmem:[#allocation2 + $0x32] sm:$0xff]
      %v2352 = vld [vmem:[#allocation2 + $0x3] sm:$0xff]
      %v2353 = vld [vmem:[#allocation2 + $0x13] sm:$0xff]
      %v2354 = vld [vmem:[#allocation2 + $0x23] sm:$0xff]
      %v2355 = vld [vmem:[#allocation2 + $0x33] sm:$0xff]
      %v2356 = vld [vmem:[#allocation2 + $0x4] sm:$0xff]
      %v2357 = vld [vmem:[#allocation2 + $0x14] sm:$0xff]
      %v2358 = vld [vmem:[#allocation2 + $0x24] sm:$0xff]
      %v2359 = vld [vmem:[#allocation2 + $0x34] sm:$0xff]
      %v2360 = vld [vmem:[#allocation2 + $0x5] sm:$0xff]
      %v2361 = vld [vmem:[#allocation2 + $0x15] sm:$0xff]
      %v2362 = vld [vmem:[#allocation2 + $0x25] sm:$0xff]
      %v2363 = vld [vmem:[#allocation2 + $0x35] sm:$0xff]
      %v2364 = vld [vmem:[#allocation2 + $0x6] sm:$0xff]
      %v2365 = vld [vmem:[#allocation2 + $0x16] sm:$0xff]
      %v2366 = vld [vmem:[#allocation2 + $0x26] sm:$0xff]
      %v2367 = vld [vmem:[#allocation2 + $0x36] sm:$0xff]
      %v2368 = vld [vmem:[#allocation2 + $0x7] sm:$0xff]
      %v2369 = vld [vmem:[#allocation2 + $0x17] sm:$0xff]
      %v2370 = vld [vmem:[#allocation2 + $0x27] sm:$0xff]
      %v2371 = vld [vmem:[#allocation2 + $0x37] sm:$0xff]
      %v2372 = vld [vmem:[#allocation2 + $0x8] sm:$0xff]
      %v2373 = vld [vmem:[#allocation2 + $0x18] sm:$0xff]
      %v2374 = vld [vmem:[#allocation2 + $0x28] sm:$0xff]
      %v2375 = vld [vmem:[#allocation2 + $0x38] sm:$0xff]
      %2380 = vrot.lane.b32.xlu0 %v2344, 32
      %v2381 = vpop.permute.xlu0 %2380
      %2382 = vrot.lane.b32.xlu0 %v2345, 32
      %v2383 = vpop.permute.xlu0 %2382
      %2384 = vrot.lane.b32.xlu0 %v2346, 32
      %v2385 = vpop.permute.xlu0 %2384
      %2386 = vrot.lane.b32.xlu0 %v2347, 32
      %v2387 = vpop.permute.xlu0 %2386
      %2396 = vrot.lane.b32.xlu0 %v2348, 64
      %v2397 = vpop.permute.xlu0 %2396
      %2398 = vrot.lane.b32.xlu0 %v2349, 64
      %v2399 = vpop.permute.xlu0 %2398
      %2400 = vrot.lane.b32.xlu0 %v2350, 64
      %v2401 = vpop.permute.xlu0 %2400
      %2402 = vrot.lane.b32.xlu0 %v2351, 64
      %v2403 = vpop.permute.xlu0 %2402
      %2412 = vrot.lane.b32.xlu0 %v2352, 96
      %v2413 = vpop.permute.xlu0 %2412
      %2414 = vrot.lane.b32.xlu0 %v2353, 96
      %v2415 = vpop.permute.xlu0 %2414
      %2416 = vrot.lane.b32.xlu0 %v2354, 96
      %v2417 = vpop.permute.xlu0 %2416
      %2418 = vrot.lane.b32.xlu0 %v2355, 96
      %v2419 = vpop.permute.xlu0 %2418
      %2428 = vrot.lane.b32.xlu0 %v2360, 32
      %v2429 = vpop.permute.xlu0 %2428
      %2430 = vrot.lane.b32.xlu0 %v2361, 32
      %v2431 = vpop.permute.xlu0 %2430
      %2432 = vrot.lane.b32.xlu0 %v2362, 32
      %v2433 = vpop.permute.xlu0 %2432
      %2434 = vrot.lane.b32.xlu0 %v2363, 32
      %v2435 = vpop.permute.xlu0 %2434
      %2444 = vrot.lane.b32.xlu0 %v2364, 64
      %v2445 = vpop.permute.xlu0 %2444
      %2446 = vrot.lane.b32.xlu0 %v2365, 64
      %v2447 = vpop.permute.xlu0 %2446
      %2448 = vrot.lane.b32.xlu0 %v2366, 64
      %v2449 = vpop.permute.xlu0 %2448
      %2450 = vrot.lane.b32.xlu0 %v2367, 64
      %v2451 = vpop.permute.xlu0 %2450
      %2460 = vrot.lane.b32.xlu0 %v2368, 96
      %v2461 = vpop.permute.xlu0 %2460
      %2462 = vrot.lane.b32.xlu0 %v2369, 96
      %v2463 = vpop.permute.xlu0 %2462
      %2464 = vrot.lane.b32.xlu0 %v2370, 96
      %v2465 = vpop.permute.xlu0 %2464
      %2466 = vrot.lane.b32.xlu0 %v2371, 96
      %v2467 = vpop.permute.xlu0 %2466
      %v2472 = vsel %vm654, %v2340, %v2381
      %v2473 = vsel %vm654, %v2341, %v2383
      %v2474 = vsel %vm654, %v2342, %v2385
      %v2475 = vsel %vm654, %v2343, %v2387
      %vm2476 = vcmask 523264
      %v2477 = vsel %vm2476, %v2472, %v2397
      %v2478 = vsel %vm2476, %v2473, %v2399
      %v2479 = vsel %vm2476, %v2474, %v2401
      %v2480 = vsel %vm2476, %v2475, %v2403
      %vm2481 = vcmask 785408
      %v2482 = vsel %vm2481, %v2477, %v2413
      %v2483 = vsel %vm2481, %v2478, %v2415
      %v2484 = vsel %vm2481, %v2479, %v2417
      %v2485 = vsel %vm2481, %v2480, %v2419
      %v2486 = vsel %vm654, %v2356, %v2429
      %v2487 = vsel %vm654, %v2357, %v2431
      %v2488 = vsel %vm654, %v2358, %v2433
      %v2489 = vsel %vm654, %v2359, %v2435
      %v2490 = vsel %vm2476, %v2486, %v2445
      %v2491 = vsel %vm2476, %v2487, %v2447
      %v2492 = vsel %vm2476, %v2488, %v2449
      %v2493 = vsel %vm2476, %v2489, %v2451
      %v2494 = vsel %vm2481, %v2490, %v2461
      %v2495 = vsel %vm2481, %v2491, %v2463
      %v2496 = vsel %vm2481, %v2492, %v2465
      %v2497 = vsel %vm2481, %v2493, %v2467
      %v2498 = vld [vmem:[%s9] sm:$0xff]
      %v2499 = vld [vmem:[%s9 + $0x8] sm:$0xff]
      %v2500 = vld [vmem:[%s9 + $0x10] sm:$0xff]
      %v2501 = vld [vmem:[%s9 + $0x18] sm:$0xff]
      %v2502 = vld [vmem:[%s9 + $0x20] sm:$0xff]
      %v2503 = vld [vmem:[%s9 + $0x28] sm:$0xff]
      %v2504 = vld [vmem:[%s9 + $0x30] sm:$0xff]
      %v2505 = vld [vmem:[%s9 + $0x38] sm:$0xff]
      %v2506 = vld [vmem:[%s9 + $0x40] sm:$0xff]
      %v2507 = vld [vmem:[%s9 + $0x48] sm:$0xff]
      %v2508 = vld [vmem:[%s9 + $0x50] sm:$0xff]
      %v2509 = vld [vmem:[%s9 + $0x58] sm:$0xff]
      %v2510 = vld [vmem:[%s9 + $0x60] sm:$0xff]
      %v2511 = vld [vmem:[%s9 + $0x68] sm:$0xff]
      %v2512 = vld [vmem:[%s9 + $0x70] sm:$0xff]
      %v2513 = vld [vmem:[%s9 + $0x78] sm:$0xff]
      %v2514 = vld [vmem:[%s9 + $0x80] sm:$0xff]
      %v2515 = vld [vmem:[%s9 + $0x88] sm:$0xff]
      %v2516 = vld [vmem:[%s9 + $0x90] sm:$0xff]
      %v2517 = vld [vmem:[%s9 + $0x98] sm:$0xff]
      %v2518 = vld [vmem:[%s9 + $0xa0] sm:$0xff]
      %v2519 = vld [vmem:[%s9 + $0xa8] sm:$0xff]
      %v2520 = vld [vmem:[%s9 + $0xb0] sm:$0xff]
      %v2521 = vld [vmem:[%s9 + $0xb8] sm:$0xff]
      %v2522 = vld [vmem:[%s9 + $0xc0] sm:$0xff]
      %v2523 = vld [vmem:[%s9 + $0xc8] sm:$0xff]
      %v2524 = vld [vmem:[%s9 + $0xd0] sm:$0xff]
      %v2525 = vld [vmem:[%s9 + $0xd8] sm:$0xff]
      %v2526 = vld [vmem:[%s9 + $0xe0] sm:$0xff]
      %v2527 = vld [vmem:[%s9 + $0xe8] sm:$0xff]
      %v2528 = vld [vmem:[%s9 + $0xf0] sm:$0xff]
      %v2529 = vld [vmem:[%s9 + $0xf8] sm:$0xff]
      %v2530 = vld [vmem:[%s9 + $0x100] sm:$0xff]
      %v2531 = vld [vmem:[%s9 + $0x108] sm:$0xff]
      %v2532 = vld [vmem:[%s9 + $0x110] sm:$0xff]
      %v2533 = vld [vmem:[%s9 + $0x118] sm:$0xff]
      %v2534 = vld [vmem:[%s10] sm:$0x1]
      %v2536 = vlaneseq
      %v2537 = vshrl.u32 %v2536, 7
      %v2538 = vsub.s32 0, %v2537
      %v2539 = vrot.slane %v2534, %v2538
      %v2542 = vsel %vm654, %v2372, 0
      %v2545 = vsel %vm654, %v2373, 0
      %v2548 = vsel %vm654, %v2374, 0
      %v2551 = vsel %vm654, %v2375, 0
      %2553 = vmatprep.subr.mxu0 0.0
      %2554 = vmatpush1.msra.mxu0 %v2513
      %2555 = vmatprep.subr.mxu0 0.0
      %2556 = vmatpush1.msra.mxu0 %v2512
      %2557 = vmatprep.subr.mxu0 0.0
      %2558 = vmatpush1.msra.mxu0 %v2511
      %2559 = vmatprep.subr.mxu0 0.0
      %2560 = vmatpush1.msra.mxu0 %v2510
      %2561 = vmatprep.subr.mxu0 0.0
      %2562 = vmatpush1.msra.mxu0 %v2509
      %2563 = vmatprep.subr.mxu0 0.0
      %2564 = vmatpush1.msra.mxu0 %v2508
      %2565 = vmatprep.subr.mxu0 0.0
      %2566 = vmatpush1.msra.mxu0 %v2507
      %2567 = vmatprep.subr.mxu0 0.0
      %2568 = vmatpush1.msra.mxu0 %v2506
      %2569 = vmatprep.subr.mxu0 0.0
      %2570 = vmatpush1.msra.mxu0 %v2505
      %2571 = vmatprep.subr.mxu0 0.0
      %2572 = vmatpush1.msra.mxu0 %v2504
      %2573 = vmatprep.subr.mxu0 0.0
      %2574 = vmatpush1.msra.mxu0 %v2503
      %2575 = vmatprep.subr.mxu0 0.0
      %2576 = vmatpush1.msra.mxu0 %v2502
      %2577 = vmatprep.subr.mxu0 0.0
      %2578 = vmatpush1.msra.mxu0 %v2501
      %2579 = vmatprep.subr.mxu0 0.0
      %2580 = vmatpush1.msra.mxu0 %v2500
      %2581 = vmatprep.subr.mxu0 0.0
      %2582 = vmatpush1.msra.mxu0 %v2499
      %2583 = vmatprep.subr.mxu0 0.0
      %2584 = vmatpush1.msra.mxu0 %v2498
      %2585 = vmatprep.subr.mxu0 0.0
      %2586 = vmatpush2.msra.mxu0 %v2529
      %2587 = vmatprep.subr.mxu0 0.0
      %2588 = vmatpush2.msra.mxu0 %v2528
      %2589 = vmatprep.subr.mxu0 0.0
      %2590 = vmatpush2.msra.mxu0 %v2527
      %2591 = vmatprep.subr.mxu0 0.0
      %2592 = vmatpush2.msra.mxu0 %v2526
      %2593 = vmatprep.subr.mxu0 0.0
      %2594 = vmatpush2.msra.mxu0 %v2525
      %2595 = vmatprep.subr.mxu0 0.0
      %2596 = vmatpush2.msra.mxu0 %v2524
      %2597 = vmatprep.subr.mxu0 0.0
      %2598 = vmatpush2.msra.mxu0 %v2523
      %2599 = vmatprep.subr.mxu0 0.0
      %2600 = vmatpush2.msra.mxu0 %v2522
      %2601 = vmatprep.subr.mxu0 0.0
      %2602 = vmatpush2.msra.mxu0 %v2521
      %2603 = vmatprep.subr.mxu0 0.0
      %2604 = vmatpush2.msra.mxu0 %v2520
      %2605 = vmatprep.subr.mxu0 0.0
      %2606 = vmatpush2.msra.mxu0 %v2519
      %2607 = vmatprep.subr.mxu0 0.0
      %2608 = vmatpush2.msra.mxu0 %v2518
      %2609 = vmatprep.subr.mxu0 0.0
      %2610 = vmatpush2.msra.mxu0 %v2517
      %2611 = vmatprep.subr.mxu0 0.0
      %2612 = vmatpush2.msra.mxu0 %v2516
      %2613 = vmatprep.subr.mxu0 0.0
      %2614 = vmatpush2.msra.mxu0 %v2515
      %2615 = vmatprep.subr.mxu0 0.0
      %2616 = vmatpush2.msra.mxu0 %v2514
      %2617 = vmatprep.mubr.f32.mxu0 %v2494
      %2618 = vmatmul.mubr.f32.gmra.mxu0 %v2482
      %v2619 = vpop.f32.mrf.mxu0
      %v2620 = vadd.f32 %v2539, %v2619
      %v2621 = vpop.f32.mrf.mxu0
      %2622 = vmatprep.mubr.f32.mxu0 %v2495
      %2623 = vmatmul.mubr.f32.gmra.mxu0 %v2483
      %v2624 = vpop.f32.mrf.mxu0
      %v2625 = vadd.f32 %v2539, %v2624
      %v2626 = vpop.f32.mrf.mxu0
      %2627 = vmatprep.mubr.f32.mxu0 %v2496
      %2628 = vmatmul.mubr.f32.gmra.mxu0 %v2484
      %v2629 = vpop.f32.mrf.mxu0
      %v2630 = vadd.f32 %v2539, %v2629
      %v2631 = vpop.f32.mrf.mxu0
      %2632 = vmatprep.mubr.f32.mxu0 %v2497
      %2633 = vmatmul.mubr.f32.gmra.mxu0 %v2485
      %v2634 = vpop.f32.mrf.mxu0
      %v2635 = vadd.f32 %v2539, %v2634
      %v2636 = vpop.f32.mrf.mxu0
      %2637 = vdwg.mxu0
      %2638 = vmatprep.subr.mxu0 0.0
      %2639 = vmatpush1.msra.mxu0 0.0
      %2640 = vmatprep.subr.mxu0 0.0
      %2641 = vmatpush1.msra.mxu0 0.0
      %2642 = vmatprep.subr.mxu0 0.0
      %2643 = vmatpush1.msra.mxu0 0.0
      %2644 = vmatprep.subr.mxu0 0.0
      %2645 = vmatpush1.msra.mxu0 0.0
      %2646 = vmatprep.subr.mxu0 0.0
      %2647 = vmatpush1.msra.mxu0 0.0
      %2648 = vmatprep.subr.mxu0 0.0
      %2649 = vmatpush1.msra.mxu0 0.0
      %2650 = vmatprep.subr.mxu0 0.0
      %2651 = vmatpush1.msra.mxu0 0.0
      %2652 = vmatprep.subr.mxu0 0.0
      %2653 = vmatpush1.msra.mxu0 0.0
      %2654 = vmatprep.subr.mxu0 0.0
      %2655 = vmatpush1.msra.mxu0 0.0
      %2656 = vmatprep.subr.mxu0 0.0
      %2657 = vmatpush1.msra.mxu0 0.0
      %2658 = vmatprep.subr.mxu0 0.0
      %2659 = vmatpush1.msra.mxu0 0.0
      %2660 = vmatprep.subr.mxu0 0.0
      %2661 = vmatpush1.msra.mxu0 0.0
      %2662 = vmatprep.subr.mxu0 0.0
      %2663 = vmatpush1.msra.mxu0 %v2533
      %2664 = vmatprep.subr.mxu0 0.0
      %2665 = vmatpush1.msra.mxu0 %v2532
      %2666 = vmatprep.subr.mxu0 0.0
      %2667 = vmatpush1.msra.mxu0 %v2531
      %2668 = vmatprep.subr.mxu0 0.0
      %2669 = vmatpush1.msra.mxu0 %v2530
      %2670 = vmatprep.subr.mxu0 0.0
      %2671 = vmatpush2.msra.mxu0 0.0
      %2672 = vmatprep.subr.mxu0 0.0
      %2673 = vmatpush2.msra.mxu0 0.0
      %2674 = vmatprep.subr.mxu0 0.0
      %2675 = vmatpush2.msra.mxu0 0.0
      %2676 = vmatprep.subr.mxu0 0.0
      %2677 = vmatpush2.msra.mxu0 0.0
      %2678 = vmatprep.subr.mxu0 0.0
      %2679 = vmatpush2.msra.mxu0 0.0
      %2680 = vmatprep.subr.mxu0 0.0
      %2681 = vmatpush2.msra.mxu0 0.0
      %2682 = vmatprep.subr.mxu0 0.0
      %2683 = vmatpush2.msra.mxu0 0.0
      %2684 = vmatprep.subr.mxu0 0.0
      %2685 = vmatpush2.msra.mxu0 0.0
      %2686 = vmatprep.subr.mxu0 0.0
      %2687 = vmatpush2.msra.mxu0 0.0
      %2688 = vmatprep.subr.mxu0 0.0
      %2689 = vmatpush2.msra.mxu0 0.0
      %2690 = vmatprep.subr.mxu0 0.0
      %2691 = vmatpush2.msra.mxu0 0.0
      %2692 = vmatprep.subr.mxu0 0.0
      %2693 = vmatpush2.msra.mxu0 0.0
      %2694 = vmatprep.subr.mxu0 0.0
      %2695 = vmatpush2.msra.mxu0 0.0
      %2696 = vmatprep.subr.mxu0 0.0
      %2697 = vmatpush2.msra.mxu0 0.0
      %2698 = vmatprep.subr.mxu0 0.0
      %2699 = vmatpush2.msra.mxu0 0.0
      %2700 = vmatprep.subr.mxu0 0.0
      %2701 = vmatpush2.msra.mxu0 0.0
      %2702 = vmatprep.mubr.f32.mxu0 0.0
      %2703 = vmatmul.mubr.f32.gmra.mxu0 %v2542
      %v2704 = vpop.f32.mrf.mxu0
      %v2705 = vadd.f32 %v2620, %v2704
      %v2706 = vpop.f32.mrf.mxu0
      %2707 = vmatprep.mubr.f32.mxu0 0.0
      %2708 = vmatmul.mubr.f32.gmra.mxu0 %v2545
      %v2709 = vpop.f32.mrf.mxu0
      %v2710 = vadd.f32 %v2625, %v2709
      %v2711 = vpop.f32.mrf.mxu0
      %2712 = vmatprep.mubr.f32.mxu0 0.0
      %2713 = vmatmul.mubr.f32.gmra.mxu0 %v2548
      %v2714 = vpop.f32.mrf.mxu0
      %v2715 = vadd.f32 %v2630, %v2714
      %v2716 = vpop.f32.mrf.mxu0
      %2717 = vmatprep.mubr.f32.mxu0 0.0
      %2718 = vmatmul.mubr.f32.gmra.mxu0 %v2551
      %v2719 = vpop.f32.mrf.mxu0
      %v2720 = vadd.f32 %v2635, %v2719
      %v2721 = vpop.f32.mrf.mxu0
      %2722 = vdwg.mxu0
      %v2723 = vmax.f32 %v2705, 0.0
      %v2724 = vmax.f32 %v2710, 0.0
      %v2725 = vmax.f32 %v2715, 0.0
      %v2726 = vmax.f32 %v2720, 0.0
      %v2727 = vld [vmem:[%s11] sm:$0xff]
      %v2728 = vld [vmem:[%s11 + $0x8] sm:$0xff]
      %v2729 = vld [vmem:[%s11 + $0x10] sm:$0xff]
      %v2730 = vld [vmem:[%s11 + $0x18] sm:$0xff]
      %v2731 = vld [vmem:[%s11 + $0x20] sm:$0xff]
      %v2732 = vld [vmem:[%s11 + $0x28] sm:$0xff]
      %v2733 = vld [vmem:[%s11 + $0x30] sm:$0xff]
      %v2734 = vld [vmem:[%s11 + $0x38] sm:$0xff]
      %v2735 = vld [vmem:[%s12] sm:$0x1]
      %v2737 = vlaneseq
      %v2738 = vshrl.u32 %v2737, 7
      %v2739 = vsub.s32 0, %v2738
      %v2740 = vrot.slane %v2735, %v2739
      %v2743 = vsel %vm2476, %v2723, 0
      %v2746 = vsel %vm2476, %v2724, 0
      %v2749 = vsel %vm2476, %v2725, 0
      %v2752 = vsel %vm2476, %v2726, 0
      %2754 = vmatprep.subr.mxu0 0.0
      %2755 = vmatpush1.msra.mxu0 0.0
      %2756 = vmatprep.subr.mxu0 0.0
      %2757 = vmatpush1.msra.mxu0 0.0
      %2758 = vmatprep.subr.mxu0 0.0
      %2759 = vmatpush1.msra.mxu0 0.0
      %2760 = vmatprep.subr.mxu0 0.0
      %2761 = vmatpush1.msra.mxu0 0.0
      %2762 = vmatprep.subr.mxu0 0.0
      %2763 = vmatpush1.msra.mxu0 0.0
      %2764 = vmatprep.subr.mxu0 0.0
      %2765 = vmatpush1.msra.mxu0 0.0
      %2766 = vmatprep.subr.mxu0 0.0
      %2767 = vmatpush1.msra.mxu0 0.0
      %2768 = vmatprep.subr.mxu0 0.0
      %2769 = vmatpush1.msra.mxu0 0.0
      %2770 = vmatprep.subr.mxu0 0.0
      %2771 = vmatpush1.msra.mxu0 %v2734
      %2772 = vmatprep.subr.mxu0 0.0
      %2773 = vmatpush1.msra.mxu0 %v2733
      %2774 = vmatprep.subr.mxu0 0.0
      %2775 = vmatpush1.msra.mxu0 %v2732
      %2776 = vmatprep.subr.mxu0 0.0
      %2777 = vmatpush1.msra.mxu0 %v2731
      %2778 = vmatprep.subr.mxu0 0.0
      %2779 = vmatpush1.msra.mxu0 %v2730
      %2780 = vmatprep.subr.mxu0 0.0
      %2781 = vmatpush1.msra.mxu0 %v2729
      %2782 = vmatprep.subr.mxu0 0.0
      %2783 = vmatpush1.msra.mxu0 %v2728
      %2784 = vmatprep.subr.mxu0 0.0
      %2785 = vmatpush1.msra.mxu0 %v2727
      %2786 = vmatprep.subr.mxu0 0.0
      %2787 = vmatpush2.msra.mxu0 0.0
      %2788 = vmatprep.subr.mxu0 0.0
      %2789 = vmatpush2.msra.mxu0 0.0
      %2790 = vmatprep.subr.mxu0 0.0
      %2791 = vmatpush2.msra.mxu0 0.0
      %2792 = vmatprep.subr.mxu0 0.0
      %2793 = vmatpush2.msra.mxu0 0.0
      %2794 = vmatprep.subr.mxu0 0.0
      %2795 = vmatpush2.msra.mxu0 0.0
      %2796 = vmatprep.subr.mxu0 0.0
      %2797 = vmatpush2.msra.mxu0 0.0
      %2798 = vmatprep.subr.mxu0 0.0
      %2799 = vmatpush2.msra.mxu0 0.0
      %2800 = vmatprep.subr.mxu0 0.0
      %2801 = vmatpush2.msra.mxu0 0.0
      %2802 = vmatprep.subr.mxu0 0.0
      %2803 = vmatpush2.msra.mxu0 0.0
      %2804 = vmatprep.subr.mxu0 0.0
      %2805 = vmatpush2.msra.mxu0 0.0
      %2806 = vmatprep.subr.mxu0 0.0
      %2807 = vmatpush2.msra.mxu0 0.0
      %2808 = vmatprep.subr.mxu0 0.0
      %2809 = vmatpush2.msra.mxu0 0.0
      %2810 = vmatprep.subr.mxu0 0.0
      %2811 = vmatpush2.msra.mxu0 0.0
      %2812 = vmatprep.subr.mxu0 0.0
      %2813 = vmatpush2.msra.mxu0 0.0
      %2814 = vmatprep.subr.mxu0 0.0
      %2815 = vmatpush2.msra.mxu0 0.0
      %2816 = vmatprep.subr.mxu0 0.0
      %2817 = vmatpush2.msra.mxu0 0.0
      %2818 = vmatprep.mubr.f32.mxu0 0.0
      %2819 = vmatmul.mubr.f32.gmra.mxu0 %v2743
      %v2820 = vpop.f32.mrf.mxu0
      %v2821 = vadd.f32 %v2740, %v2820
      %v2822 = vpop.f32.mrf.mxu0
      %2823 = vmatprep.mubr.f32.mxu0 0.0
      %2824 = vmatmul.mubr.f32.gmra.mxu0 %v2746
      %v2825 = vpop.f32.mrf.mxu0
      %v2826 = vadd.f32 %v2740, %v2825
      %v2827 = vpop.f32.mrf.mxu0
      %2828 = vmatprep.mubr.f32.mxu0 0.0
      %2829 = vmatmul.mubr.f32.gmra.mxu0 %v2749
      %v2830 = vpop.f32.mrf.mxu0
      %v2831 = vadd.f32 %v2740, %v2830
      %v2832 = vpop.f32.mrf.mxu0
      %2833 = vmatprep.mubr.f32.mxu0 0.0
      %2834 = vmatmul.mubr.f32.gmra.mxu0 %v2752
      %v2835 = vpop.f32.mrf.mxu0
      %v2836 = vadd.f32 %v2740, %v2835
      %v2837 = vpop.f32.mrf.mxu0
      %2838 = vdwg.mxu0
      %v2839 = vadd.f32 %v2821, %v2332
      %v2840 = vadd.f32 %v2826, %v2333
      %v2841 = vadd.f32 %v2831, %v2334
      %v2842 = vadd.f32 %v2836, %v2335
      %v2843 = vld [vmem:[%s13] sm:$0x1]
      %v2844 = vld [vmem:[%s14] sm:$0x1]
      %v2845 = vsel %vm654, %v2839, 0.0
      %2846 = vadd.xlane.f32.xlu0 %v2845
      %v2847 = vpop.xlane.xlu0 %2846
      %v2848 = vsel %vm654, %v2840, 0.0
      %2849 = vadd.xlane.f32.xlu0 %v2848
      %v2850 = vpop.xlane.xlu0 %2849
      %v2851 = vsel %vm654, %v2841, 0.0
      %2852 = vadd.xlane.f32.xlu0 %v2851
      %v2853 = vpop.xlane.xlu0 %2852
      %v2854 = vsel %vm654, %v2842, 0.0
      %2855 = vadd.xlane.f32.xlu0 %v2854
      %v2856 = vpop.xlane.xlu0 %2855
      %v2857 = vmul.f32 %v2847, %v2251
      %v2858 = vmul.f32 %v2850, %v2251
      %v2859 = vmul.f32 %v2853, %v2251
      %v2860 = vmul.f32 %v2856, %v2251
      %v2861 = vsub.f32 %v2839, %v2857
      %v2862 = vsub.f32 %v2840, %v2858
      %v2863 = vsub.f32 %v2841, %v2859
      %v2864 = vsub.f32 %v2842, %v2860
      %v2865 = vmul.f32 %v2861, %v2861
      %v2866 = vmul.f32 %v2862, %v2862
      %v2867 = vmul.f32 %v2863, %v2863
      %v2868 = vmul.f32 %v2864, %v2864
      %v2869 = vsel %vm654, %v2865, 0.0
      %2870 = vadd.xlane.f32.xlu0 %v2869
      %v2871 = vpop.xlane.xlu0 %2870
      %v2872 = vsel %vm654, %v2866, 0.0
      %2873 = vadd.xlane.f32.xlu0 %v2872
      %v2874 = vpop.xlane.xlu0 %2873
      %v2875 = vsel %vm654, %v2867, 0.0
      %2876 = vadd.xlane.f32.xlu0 %v2875
      %v2877 = vpop.xlane.xlu0 %2876
      %v2878 = vsel %vm654, %v2868, 0.0
      %2879 = vadd.xlane.f32.xlu0 %v2878
      %v2880 = vpop.xlane.xlu0 %2879
      %v2881 = vmul.f32 %v2871, %v2251
      %v2882 = vmul.f32 %v2874, %v2251
      %v2883 = vmul.f32 %v2877, %v2251
      %v2884 = vmul.f32 %v2880, %v2251
      %v2885 = vadd.f32 %v2881, 1e-05
      %v2886 = vadd.f32 %v2882, 1e-05
      %v2887 = vadd.f32 %v2883, 1e-05
      %v2888 = vadd.f32 %v2884, 1e-05
      %v2889 = vrsqrt.pop %v2885
      %v2890 = vrsqrt.pop %v2886
      %v2891 = vrsqrt.pop %v2887
      %v2892 = vrsqrt.pop %v2888
      %v2893 = vmul.f32 %v2861, %v2889
      %v2894 = vmul.f32 %v2862, %v2890
      %v2895 = vmul.f32 %v2863, %v2891
      %v2896 = vmul.f32 %v2864, %v2892
      %v2898 = vlaneseq
      %v2899 = vshrl.u32 %v2898, 7
      %v2900 = vsub.s32 0, %v2899
      %v2901 = vrot.slane %v2843, %v2900
      %v2903 = vmul.f32 %v2893, %v2901
      %v2904 = vmul.f32 %v2894, %v2901
      %v2905 = vmul.f32 %v2895, %v2901
      %v2906 = vmul.f32 %v2896, %v2901
      %v2908 = vlaneseq
      %v2909 = vshrl.u32 %v2908, 7
      %v2910 = vsub.s32 0, %v2909
      %v2911 = vrot.slane %v2844, %v2910
      %v2913 = vadd.f32 %v2903, %v2911
      %v2914 = vadd.f32 %v2904, %v2911
      %v2915 = vadd.f32 %v2905, %v2911
      %v2916 = vadd.f32 %v2906, %v2911
      %v2917 = vmul.f32 %v2913, %v2315
      %v2918 = vmul.f32 %v2914, %v2320
      %v2919 = vmul.f32 %v2915, %v2325
      %v2920 = vmul.f32 %v2916, %v2330
      %s2921 = scalar_lea.vmem %s3, 32
      %v2922 = vld [vmem:[%s2921] sm:$0xff]
      %v2923 = vld [vmem:[%s2921 + $0x8] sm:$0xff]
      %v2924 = vld [vmem:[%s2921 + $0x10] sm:$0xff]
      %v2925 = vld [vmem:[%s2921 + $0x18] sm:$0xff]
      %s2926 = scalar_lea.vmem %s4, 1
      %v2927 = vld [vmem:[%s2926] sm:$0x1]
      %v2929 = vlaneseq
      %v2930 = vshrl.u32 %v2929, 7
      %v2931 = vsub.s32 0, %v2930
      %v2932 = vrot.slane %v2927, %v2931
      %v2935 = vsel %vm654, %v2917, 0
      %v2938 = vsel %vm654, %v2918, 0
      %v2941 = vsel %vm654, %v2919, 0
      %v2944 = vsel %vm654, %v2920, 0
      %2946 = vmatprep.subr.mxu0 0.0
      %2947 = vmatpush1.msra.mxu0 0.0
      %2948 = vmatprep.subr.mxu0 0.0
      %2949 = vmatpush1.msra.mxu0 0.0
      %2950 = vmatprep.subr.mxu0 0.0
      %2951 = vmatpush1.msra.mxu0 0.0
      %2952 = vmatprep.subr.mxu0 0.0
      %2953 = vmatpush1.msra.mxu0 0.0
      %2954 = vmatprep.subr.mxu0 0.0
      %2955 = vmatpush1.msra.mxu0 0.0
      %2956 = vmatprep.subr.mxu0 0.0
      %2957 = vmatpush1.msra.mxu0 0.0
      %2958 = vmatprep.subr.mxu0 0.0
      %2959 = vmatpush1.msra.mxu0 0.0
      %2960 = vmatprep.subr.mxu0 0.0
      %2961 = vmatpush1.msra.mxu0 0.0
      %2962 = vmatprep.subr.mxu0 0.0
      %2963 = vmatpush1.msra.mxu0 0.0
      %2964 = vmatprep.subr.mxu0 0.0
      %2965 = vmatpush1.msra.mxu0 0.0
      %2966 = vmatprep.subr.mxu0 0.0
      %2967 = vmatpush1.msra.mxu0 0.0
      %2968 = vmatprep.subr.mxu0 0.0
      %2969 = vmatpush1.msra.mxu0 0.0
      %2970 = vmatprep.subr.mxu0 0.0
      %2971 = vmatpush1.msra.mxu0 %v2925
      %2972 = vmatprep.subr.mxu0 0.0
      %2973 = vmatpush1.msra.mxu0 %v2924
      %2974 = vmatprep.subr.mxu0 0.0
      %2975 = vmatpush1.msra.mxu0 %v2923
      %2976 = vmatprep.subr.mxu0 0.0
      %2977 = vmatpush1.msra.mxu0 %v2922
      %2978 = vmatprep.subr.mxu0 0.0
      %2979 = vmatpush2.msra.mxu0 0.0
      %2980 = vmatprep.subr.mxu0 0.0
      %2981 = vmatpush2.msra.mxu0 0.0
      %2982 = vmatprep.subr.mxu0 0.0
      %2983 = vmatpush2.msra.mxu0 0.0
      %2984 = vmatprep.subr.mxu0 0.0
      %2985 = vmatpush2.msra.mxu0 0.0
      %2986 = vmatprep.subr.mxu0 0.0
      %2987 = vmatpush2.msra.mxu0 0.0
      %2988 = vmatprep.subr.mxu0 0.0
      %2989 = vmatpush2.msra.mxu0 0.0
      %2990 = vmatprep.subr.mxu0 0.0
      %2991 = vmatpush2.msra.mxu0 0.0
      %2992 = vmatprep.subr.mxu0 0.0
      %2993 = vmatpush2.msra.mxu0 0.0
      %2994 = vmatprep.subr.mxu0 0.0
      %2995 = vmatpush2.msra.mxu0 0.0
      %2996 = vmatprep.subr.mxu0 0.0
      %2997 = vmatpush2.msra.mxu0 0.0
      %2998 = vmatprep.subr.mxu0 0.0
      %2999 = vmatpush2.msra.mxu0 0.0
      %3000 = vmatprep.subr.mxu0 0.0
      %3001 = vmatpush2.msra.mxu0 0.0
      %3002 = vmatprep.subr.mxu0 0.0
      %3003 = vmatpush2.msra.mxu0 0.0
      %3004 = vmatprep.subr.mxu0 0.0
      %3005 = vmatpush2.msra.mxu0 0.0
      %3006 = vmatprep.subr.mxu0 0.0
      %3007 = vmatpush2.msra.mxu0 0.0
      %3008 = vmatprep.subr.mxu0 0.0
      %3009 = vmatpush2.msra.mxu0 0.0
      %3010 = vmatprep.mubr.f32.mxu0 0.0
      %3011 = vmatmul.mubr.f32.gmra.mxu0 %v2935
      %v3012 = vpop.f32.mrf.mxu0
      %v3013 = vadd.f32 %v2932, %v3012
      %v3014 = vpop.f32.mrf.mxu0
      %3015 = vmatprep.mubr.f32.mxu0 0.0
      %3016 = vmatmul.mubr.f32.gmra.mxu0 %v2938
      %v3017 = vpop.f32.mrf.mxu0
      %v3018 = vadd.f32 %v2932, %v3017
      %v3019 = vpop.f32.mrf.mxu0
      %3020 = vmatprep.mubr.f32.mxu0 0.0
      %3021 = vmatmul.mubr.f32.gmra.mxu0 %v2941
      %v3022 = vpop.f32.mrf.mxu0
      %v3023 = vadd.f32 %v2932, %v3022
      %v3024 = vpop.f32.mrf.mxu0
      %3025 = vmatprep.mubr.f32.mxu0 0.0
      %3026 = vmatmul.mubr.f32.gmra.mxu0 %v2944
      %v3027 = vpop.f32.mrf.mxu0
      %v3028 = vadd.f32 %v2932, %v3027
      %v3029 = vpop.f32.mrf.mxu0
      %3030 = vdwg.mxu0
      %3032 = vrot.lane.b32.xlu0 %v3013, 96
      %v3033 = vpop.permute.xlu0 %3032
      %v3034 = vsel %vm774, %v3013, 0
      %v3036 = vsel %vm774, %v3033, 0
      %3038 = vmatprep.subr.mxu0 0.0
      %3039 = vmatpush1.xpose.msra.mxu0 0.0
      %3040 = vmatprep.subr.mxu0 0.0
      %3041 = vmatpush1.xpose.msra.mxu0 0.0
      %3042 = vmatprep.subr.mxu0 0.0
      %3043 = vmatpush1.xpose.msra.mxu0 0.0
      %3044 = vmatprep.subr.mxu0 0.0
      %3045 = vmatpush1.xpose.msra.mxu0 0.0
      %3046 = vmatprep.subr.mxu0 0.0
      %3047 = vmatpush1.xpose.msra.mxu0 0.0
      %3048 = vmatprep.subr.mxu0 0.0
      %3049 = vmatpush1.xpose.msra.mxu0 0.0
      %3050 = vmatprep.subr.mxu0 0.0
      %3051 = vmatpush1.xpose.msra.mxu0 0.0
      %3052 = vmatprep.subr.mxu0 0.0
      %3053 = vmatpush1.xpose.msra.mxu0 0.0
      %3054 = vmatprep.subr.mxu0 0.0
      %3055 = vmatpush1.xpose.msra.mxu0 0.0
      %3056 = vmatprep.subr.mxu0 0.0
      %3057 = vmatpush1.xpose.msra.mxu0 0.0
      %3058 = vmatprep.subr.mxu0 0.0
      %3059 = vmatpush1.xpose.msra.mxu0 0.0
      %3060 = vmatprep.subr.mxu0 0.0
      %3061 = vmatpush1.xpose.msra.mxu0 0.0
      %3062 = vmatprep.subr.mxu0 0.0
      %3063 = vmatpush1.xpose.msra.mxu0 0.0
      %3064 = vmatprep.subr.mxu0 0.0
      %3065 = vmatpush1.xpose.msra.mxu0 0.0
      %3066 = vmatprep.subr.mxu0 0.0
      %3067 = vmatpush1.xpose.msra.mxu0 0.0
      %3068 = vmatprep.subr.mxu0 0.0
      %3069 = vmatpush1.xpose.msra.mxu0 %v3036
      %3070 = vmatprep.subr.mxu0 0.0
      %3071 = vmatpush2.xpose.msra.mxu0 0.0
      %3072 = vmatprep.subr.mxu0 0.0
      %3073 = vmatpush2.xpose.msra.mxu0 0.0
      %3074 = vmatprep.subr.mxu0 0.0
      %3075 = vmatpush2.xpose.msra.mxu0 0.0
      %3076 = vmatprep.subr.mxu0 0.0
      %3077 = vmatpush2.xpose.msra.mxu0 0.0
      %3078 = vmatprep.subr.mxu0 0.0
      %3079 = vmatpush2.xpose.msra.mxu0 0.0
      %3080 = vmatprep.subr.mxu0 0.0
      %3081 = vmatpush2.xpose.msra.mxu0 0.0
      %3082 = vmatprep.subr.mxu0 0.0
      %3083 = vmatpush2.xpose.msra.mxu0 0.0
      %3084 = vmatprep.subr.mxu0 0.0
      %3085 = vmatpush2.xpose.msra.mxu0 0.0
      %3086 = vmatprep.subr.mxu0 0.0
      %3087 = vmatpush2.xpose.msra.mxu0 0.0
      %3088 = vmatprep.subr.mxu0 0.0
      %3089 = vmatpush2.xpose.msra.mxu0 0.0
      %3090 = vmatprep.subr.mxu0 0.0
      %3091 = vmatpush2.xpose.msra.mxu0 0.0
      %3092 = vmatprep.subr.mxu0 0.0
      %3093 = vmatpush2.xpose.msra.mxu0 0.0
      %3094 = vmatprep.subr.mxu0 0.0
      %3095 = vmatpush2.xpose.msra.mxu0 0.0
      %3096 = vmatprep.subr.mxu0 0.0
      %3097 = vmatpush2.xpose.msra.mxu0 0.0
      %3098 = vmatprep.subr.mxu0 0.0
      %3099 = vmatpush2.xpose.msra.mxu0 0.0
      %3100 = vmatprep.subr.mxu0 0.0
      %3101 = vmatpush2.xpose.msra.mxu0 0.0
      %3102 = vmatprep.mubr.f32.mxu0 0.0
      %3103 = vmatmul.mubr.f32.gmra.mxu0 %v3034
      %v3104 = vpop.f32.mrf.mxu0
      %v3105 = vadd.f32 0.0, %v3104
      %v3106 = vpop.f32.mrf.mxu0
      %3107 = vdwg.mxu0
      %3109 = vrot.lane.b32.xlu0 %v3018, 96
      %v3110 = vpop.permute.xlu0 %3109
      %v3111 = vsel %vm774, %v3018, 0
      %v3113 = vsel %vm774, %v3110, 0
      %3115 = vmatprep.subr.mxu0 0.0
      %3116 = vmatpush1.xpose.msra.mxu0 0.0
      %3117 = vmatprep.subr.mxu0 0.0
      %3118 = vmatpush1.xpose.msra.mxu0 0.0
      %3119 = vmatprep.subr.mxu0 0.0
      %3120 = vmatpush1.xpose.msra.mxu0 0.0
      %3121 = vmatprep.subr.mxu0 0.0
      %3122 = vmatpush1.xpose.msra.mxu0 0.0
      %3123 = vmatprep.subr.mxu0 0.0
      %3124 = vmatpush1.xpose.msra.mxu0 0.0
      %3125 = vmatprep.subr.mxu0 0.0
      %3126 = vmatpush1.xpose.msra.mxu0 0.0
      %3127 = vmatprep.subr.mxu0 0.0
      %3128 = vmatpush1.xpose.msra.mxu0 0.0
      %3129 = vmatprep.subr.mxu0 0.0
      %3130 = vmatpush1.xpose.msra.mxu0 0.0
      %3131 = vmatprep.subr.mxu0 0.0
      %3132 = vmatpush1.xpose.msra.mxu0 0.0
      %3133 = vmatprep.subr.mxu0 0.0
      %3134 = vmatpush1.xpose.msra.mxu0 0.0
      %3135 = vmatprep.subr.mxu0 0.0
      %3136 = vmatpush1.xpose.msra.mxu0 0.0
      %3137 = vmatprep.subr.mxu0 0.0
      %3138 = vmatpush1.xpose.msra.mxu0 0.0
      %3139 = vmatprep.subr.mxu0 0.0
      %3140 = vmatpush1.xpose.msra.mxu0 0.0
      %3141 = vmatprep.subr.mxu0 0.0
      %3142 = vmatpush1.xpose.msra.mxu0 0.0
      %3143 = vmatprep.subr.mxu0 0.0
      %3144 = vmatpush1.xpose.msra.mxu0 0.0
      %3145 = vmatprep.subr.mxu0 0.0
      %3146 = vmatpush1.xpose.msra.mxu0 %v3113
      %3147 = vmatprep.subr.mxu0 0.0
      %3148 = vmatpush2.xpose.msra.mxu0 0.0
      %3149 = vmatprep.subr.mxu0 0.0
      %3150 = vmatpush2.xpose.msra.mxu0 0.0
      %3151 = vmatprep.subr.mxu0 0.0
      %3152 = vmatpush2.xpose.msra.mxu0 0.0
      %3153 = vmatprep.subr.mxu0 0.0
      %3154 = vmatpush2.xpose.msra.mxu0 0.0
      %3155 = vmatprep.subr.mxu0 0.0
      %3156 = vmatpush2.xpose.msra.mxu0 0.0
      %3157 = vmatprep.subr.mxu0 0.0
      %3158 = vmatpush2.xpose.msra.mxu0 0.0
      %3159 = vmatprep.subr.mxu0 0.0
      %3160 = vmatpush2.xpose.msra.mxu0 0.0
      %3161 = vmatprep.subr.mxu0 0.0
      %3162 = vmatpush2.xpose.msra.mxu0 0.0
      %3163 = vmatprep.subr.mxu0 0.0
      %3164 = vmatpush2.xpose.msra.mxu0 0.0
      %3165 = vmatprep.subr.mxu0 0.0
      %3166 = vmatpush2.xpose.msra.mxu0 0.0
      %3167 = vmatprep.subr.mxu0 0.0
      %3168 = vmatpush2.xpose.msra.mxu0 0.0
      %3169 = vmatprep.subr.mxu0 0.0
      %3170 = vmatpush2.xpose.msra.mxu0 0.0
      %3171 = vmatprep.subr.mxu0 0.0
      %3172 = vmatpush2.xpose.msra.mxu0 0.0
      %3173 = vmatprep.subr.mxu0 0.0
      %3174 = vmatpush2.xpose.msra.mxu0 0.0
      %3175 = vmatprep.subr.mxu0 0.0
      %3176 = vmatpush2.xpose.msra.mxu0 0.0
      %3177 = vmatprep.subr.mxu0 0.0
      %3178 = vmatpush2.xpose.msra.mxu0 0.0
      %3179 = vmatprep.mubr.f32.mxu0 0.0
      %3180 = vmatmul.mubr.f32.gmra.mxu0 %v3111
      %v3181 = vpop.f32.mrf.mxu0
      %v3182 = vadd.f32 0.0, %v3181
      %v3183 = vpop.f32.mrf.mxu0
      %3184 = vdwg.mxu0
      %3186 = vrot.lane.b32.xlu0 %v3023, 96
      %v3187 = vpop.permute.xlu0 %3186
      %v3188 = vsel %vm774, %v3023, 0
      %v3190 = vsel %vm774, %v3187, 0
      %3192 = vmatprep.subr.mxu0 0.0
      %3193 = vmatpush1.xpose.msra.mxu0 0.0
      %3194 = vmatprep.subr.mxu0 0.0
      %3195 = vmatpush1.xpose.msra.mxu0 0.0
      %3196 = vmatprep.subr.mxu0 0.0
      %3197 = vmatpush1.xpose.msra.mxu0 0.0
      %3198 = vmatprep.subr.mxu0 0.0
      %3199 = vmatpush1.xpose.msra.mxu0 0.0
      %3200 = vmatprep.subr.mxu0 0.0
      %3201 = vmatpush1.xpose.msra.mxu0 0.0
      %3202 = vmatprep.subr.mxu0 0.0
      %3203 = vmatpush1.xpose.msra.mxu0 0.0
      %3204 = vmatprep.subr.mxu0 0.0
      %3205 = vmatpush1.xpose.msra.mxu0 0.0
      %3206 = vmatprep.subr.mxu0 0.0
      %3207 = vmatpush1.xpose.msra.mxu0 0.0
      %3208 = vmatprep.subr.mxu0 0.0
      %3209 = vmatpush1.xpose.msra.mxu0 0.0
      %3210 = vmatprep.subr.mxu0 0.0
      %3211 = vmatpush1.xpose.msra.mxu0 0.0
      %3212 = vmatprep.subr.mxu0 0.0
      %3213 = vmatpush1.xpose.msra.mxu0 0.0
      %3214 = vmatprep.subr.mxu0 0.0
      %3215 = vmatpush1.xpose.msra.mxu0 0.0
      %3216 = vmatprep.subr.mxu0 0.0
      %3217 = vmatpush1.xpose.msra.mxu0 0.0
      %3218 = vmatprep.subr.mxu0 0.0
      %3219 = vmatpush1.xpose.msra.mxu0 0.0
      %3220 = vmatprep.subr.mxu0 0.0
      %3221 = vmatpush1.xpose.msra.mxu0 0.0
      %3222 = vmatprep.subr.mxu0 0.0
      %3223 = vmatpush1.xpose.msra.mxu0 %v3190
      %3224 = vmatprep.subr.mxu0 0.0
      %3225 = vmatpush2.xpose.msra.mxu0 0.0
      %3226 = vmatprep.subr.mxu0 0.0
      %3227 = vmatpush2.xpose.msra.mxu0 0.0
      %3228 = vmatprep.subr.mxu0 0.0
      %3229 = vmatpush2.xpose.msra.mxu0 0.0
      %3230 = vmatprep.subr.mxu0 0.0
      %3231 = vmatpush2.xpose.msra.mxu0 0.0
      %3232 = vmatprep.subr.mxu0 0.0
      %3233 = vmatpush2.xpose.msra.mxu0 0.0
      %3234 = vmatprep.subr.mxu0 0.0
      %3235 = vmatpush2.xpose.msra.mxu0 0.0
      %3236 = vmatprep.subr.mxu0 0.0
      %3237 = vmatpush2.xpose.msra.mxu0 0.0
      %3238 = vmatprep.subr.mxu0 0.0
      %3239 = vmatpush2.xpose.msra.mxu0 0.0
      %3240 = vmatprep.subr.mxu0 0.0
      %3241 = vmatpush2.xpose.msra.mxu0 0.0
      %3242 = vmatprep.subr.mxu0 0.0
      %3243 = vmatpush2.xpose.msra.mxu0 0.0
      %3244 = vmatprep.subr.mxu0 0.0
      %3245 = vmatpush2.xpose.msra.mxu0 0.0
      %3246 = vmatprep.subr.mxu0 0.0
      %3247 = vmatpush2.xpose.msra.mxu0 0.0
      %3248 = vmatprep.subr.mxu0 0.0
      %3249 = vmatpush2.xpose.msra.mxu0 0.0
      %3250 = vmatprep.subr.mxu0 0.0
      %3251 = vmatpush2.xpose.msra.mxu0 0.0
      %3252 = vmatprep.subr.mxu0 0.0
      %3253 = vmatpush2.xpose.msra.mxu0 0.0
      %3254 = vmatprep.subr.mxu0 0.0
      %3255 = vmatpush2.xpose.msra.mxu0 0.0
      %3256 = vmatprep.mubr.f32.mxu0 0.0
      %3257 = vmatmul.mubr.f32.gmra.mxu0 %v3188
      %v3258 = vpop.f32.mrf.mxu0
      %v3259 = vadd.f32 0.0, %v3258
      %v3260 = vpop.f32.mrf.mxu0
      %3261 = vdwg.mxu0
      %3263 = vrot.lane.b32.xlu0 %v3028, 96
      %v3264 = vpop.permute.xlu0 %3263
      %v3265 = vsel %vm774, %v3028, 0
      %v3267 = vsel %vm774, %v3264, 0
      %3269 = vmatprep.subr.mxu0 0.0
      %3270 = vmatpush1.xpose.msra.mxu0 0.0
      %3271 = vmatprep.subr.mxu0 0.0
      %3272 = vmatpush1.xpose.msra.mxu0 0.0
      %3273 = vmatprep.subr.mxu0 0.0
      %3274 = vmatpush1.xpose.msra.mxu0 0.0
      %3275 = vmatprep.subr.mxu0 0.0
      %3276 = vmatpush1.xpose.msra.mxu0 0.0
      %3277 = vmatprep.subr.mxu0 0.0
      %3278 = vmatpush1.xpose.msra.mxu0 0.0
      %3279 = vmatprep.subr.mxu0 0.0
      %3280 = vmatpush1.xpose.msra.mxu0 0.0
      %3281 = vmatprep.subr.mxu0 0.0
      %3282 = vmatpush1.xpose.msra.mxu0 0.0
      %3283 = vmatprep.subr.mxu0 0.0
      %3284 = vmatpush1.xpose.msra.mxu0 0.0
      %3285 = vmatprep.subr.mxu0 0.0
      %3286 = vmatpush1.xpose.msra.mxu0 0.0
      %3287 = vmatprep.subr.mxu0 0.0
      %3288 = vmatpush1.xpose.msra.mxu0 0.0
      %3289 = vmatprep.subr.mxu0 0.0
      %3290 = vmatpush1.xpose.msra.mxu0 0.0
      %3291 = vmatprep.subr.mxu0 0.0
      %3292 = vmatpush1.xpose.msra.mxu0 0.0
      %3293 = vmatprep.subr.mxu0 0.0
      %3294 = vmatpush1.xpose.msra.mxu0 0.0
      %3295 = vmatprep.subr.mxu0 0.0
      %3296 = vmatpush1.xpose.msra.mxu0 0.0
      %3297 = vmatprep.subr.mxu0 0.0
      %3298 = vmatpush1.xpose.msra.mxu0 0.0
      %3299 = vmatprep.subr.mxu0 0.0
      %3300 = vmatpush1.xpose.msra.mxu0 %v3267
      %3301 = vmatprep.subr.mxu0 0.0
      %3302 = vmatpush2.xpose.msra.mxu0 0.0
      %3303 = vmatprep.subr.mxu0 0.0
      %3304 = vmatpush2.xpose.msra.mxu0 0.0
      %3305 = vmatprep.subr.mxu0 0.0
      %3306 = vmatpush2.xpose.msra.mxu0 0.0
      %3307 = vmatprep.subr.mxu0 0.0
      %3308 = vmatpush2.xpose.msra.mxu0 0.0
      %3309 = vmatprep.subr.mxu0 0.0
      %3310 = vmatpush2.xpose.msra.mxu0 0.0
      %3311 = vmatprep.subr.mxu0 0.0
      %3312 = vmatpush2.xpose.msra.mxu0 0.0
      %3313 = vmatprep.subr.mxu0 0.0
      %3314 = vmatpush2.xpose.msra.mxu0 0.0
      %3315 = vmatprep.subr.mxu0 0.0
      %3316 = vmatpush2.xpose.msra.mxu0 0.0
      %3317 = vmatprep.subr.mxu0 0.0
      %3318 = vmatpush2.xpose.msra.mxu0 0.0
      %3319 = vmatprep.subr.mxu0 0.0
      %3320 = vmatpush2.xpose.msra.mxu0 0.0
      %3321 = vmatprep.subr.mxu0 0.0
      %3322 = vmatpush2.xpose.msra.mxu0 0.0
      %3323 = vmatprep.subr.mxu0 0.0
      %3324 = vmatpush2.xpose.msra.mxu0 0.0
      %3325 = vmatprep.subr.mxu0 0.0
      %3326 = vmatpush2.xpose.msra.mxu0 0.0
      %3327 = vmatprep.subr.mxu0 0.0
      %3328 = vmatpush2.xpose.msra.mxu0 0.0
      %3329 = vmatprep.subr.mxu0 0.0
      %3330 = vmatpush2.xpose.msra.mxu0 0.0
      %3331 = vmatprep.subr.mxu0 0.0
      %3332 = vmatpush2.xpose.msra.mxu0 0.0
      %3333 = vmatprep.mubr.f32.mxu0 0.0
      %3334 = vmatmul.mubr.f32.gmra.mxu0 %v3265
      %v3335 = vpop.f32.mrf.mxu0
      %v3336 = vadd.f32 0.0, %v3335
      %v3337 = vpop.f32.mrf.mxu0
      %3338 = vdwg.mxu0
      %v3339 = vmul.f32 %v3105, 0.25
      %v3340 = vmul.f32 %v3182, 0.25
      %v3341 = vmul.f32 %v3259, 0.25
      %v3342 = vmul.f32 %v3336, 0.25
      %v3343 = vadd.f32 %v3339, %v650
      %v3344 = vadd.f32 %v3340, %v651
      %v3345 = vadd.f32 %v3341, %v652
      %v3346 = vadd.f32 %v3342, %v653
      %v3347 = vsel %vm1088, %v3343, -inf
      %3348 = vmax.xlane.f32.xlu0 %v3347
      %v3349 = vpop.xlane.xlu0 %3348
      %v3350 = vsel %vm1088, %v3344, -inf
      %3351 = vmax.xlane.f32.xlu0 %v3350
      %v3352 = vpop.xlane.xlu0 %3351
      %v3353 = vsel %vm1088, %v3345, -inf
      %3354 = vmax.xlane.f32.xlu0 %v3353
      %v3355 = vpop.xlane.xlu0 %3354
      %v3356 = vsel %vm1088, %v3346, -inf
      %3357 = vmax.xlane.f32.xlu0 %v3356
      %v3358 = vpop.xlane.xlu0 %3357
      %v3359 = vsub.f32 %v3343, %v3349
      %v3360 = vsub.f32 %v3344, %v3352
      %v3361 = vsub.f32 %v3345, %v3355
      %v3362 = vsub.f32 %v3346, %v3358
      %v3363 = vmul.f32 %v3359, 1.442695
      %v3364 = vpow.pop %v3363
      %v3365 = vmul.f32 %v3360, 1.442695
      %v3366 = vpow.pop %v3365
      %v3367 = vmul.f32 %v3361, 1.442695
      %v3368 = vpow.pop %v3367
      %v3369 = vmul.f32 %v3362, 1.442695
      %v3370 = vpow.pop %v3369
      %v3371 = vsel %vm1088, %v3364, 0.0
      %3372 = vadd.xlane.f32.xlu0 %v3371
      %v3373 = vpop.xlane.xlu0 %3372
      %v3374 = vsel %vm1088, %v3366, 0.0
      %3375 = vadd.xlane.f32.xlu0 %v3374
      %v3376 = vpop.xlane.xlu0 %3375
      %v3377 = vsel %vm1088, %v3368, 0.0
      %3378 = vadd.xlane.f32.xlu0 %v3377
      %v3379 = vpop.xlane.xlu0 %3378
      %v3380 = vsel %vm1088, %v3370, 0.0
      %3381 = vadd.xlane.f32.xlu0 %v3380
      %v3382 = vpop.xlane.xlu0 %3381
      %v3383 = vrcp.pop %v3373
      %v3384 = vrcp.pop %v3376
      %v3385 = vrcp.pop %v3379
      %v3386 = vrcp.pop %v3382
      %v3387 = vmul.f32 %v3364, %v3383
      %v3388 = vmul.f32 %v3366, %v3384
      %v3389 = vmul.f32 %v3368, %v3385
      %v3390 = vmul.f32 %v3370, %v3386
      %3391 = vrot.lane.b32.xlu0 %v3013, 64
      %v3392 = vpop.permute.xlu0 %3391
      %v3395 = vsel %vm1088, %v3387, 0
      %3397 = vmatprep.subr.mxu0 0.0
      %3398 = vmatpush1.msra.mxu0 0.0
      %3399 = vmatprep.subr.mxu0 0.0
      %3400 = vmatpush1.msra.mxu0 0.0
      %3401 = vmatprep.subr.mxu0 0.0
      %3402 = vmatpush1.msra.mxu0 0.0
      %3403 = vmatprep.subr.mxu0 0.0
      %3404 = vmatpush1.msra.mxu0 0.0
      %3405 = vmatprep.subr.mxu0 0.0
      %3406 = vmatpush1.msra.mxu0 0.0
      %3407 = vmatprep.subr.mxu0 0.0
      %3408 = vmatpush1.msra.mxu0 0.0
      %3409 = vmatprep.subr.mxu0 0.0
      %3410 = vmatpush1.msra.mxu0 0.0
      %3411 = vmatprep.subr.mxu0 0.0
      %3412 = vmatpush1.msra.mxu0 0.0
      %3413 = vmatprep.subr.mxu0 0.0
      %3414 = vmatpush1.msra.mxu0 0.0
      %3415 = vmatprep.subr.mxu0 0.0
      %3416 = vmatpush1.msra.mxu0 0.0
      %3417 = vmatprep.subr.mxu0 0.0
      %3418 = vmatpush1.msra.mxu0 0.0
      %3419 = vmatprep.subr.mxu0 0.0
      %3420 = vmatpush1.msra.mxu0 0.0
      %3421 = vmatprep.subr.mxu0 0.0
      %3422 = vmatpush1.msra.mxu0 0.0
      %3423 = vmatprep.subr.mxu0 0.0
      %3424 = vmatpush1.msra.mxu0 0.0
      %3425 = vmatprep.subr.mxu0 0.0
      %3426 = vmatpush1.msra.mxu0 0.0
      %3427 = vmatprep.subr.mxu0 0.0
      %3428 = vmatpush1.msra.mxu0 %v3392
      %3429 = vmatprep.subr.mxu0 0.0
      %3430 = vmatpush2.msra.mxu0 0.0
      %3431 = vmatprep.subr.mxu0 0.0
      %3432 = vmatpush2.msra.mxu0 0.0
      %3433 = vmatprep.subr.mxu0 0.0
      %3434 = vmatpush2.msra.mxu0 0.0
      %3435 = vmatprep.subr.mxu0 0.0
      %3436 = vmatpush2.msra.mxu0 0.0
      %3437 = vmatprep.subr.mxu0 0.0
      %3438 = vmatpush2.msra.mxu0 0.0
      %3439 = vmatprep.subr.mxu0 0.0
      %3440 = vmatpush2.msra.mxu0 0.0
      %3441 = vmatprep.subr.mxu0 0.0
      %3442 = vmatpush2.msra.mxu0 0.0
      %3443 = vmatprep.subr.mxu0 0.0
      %3444 = vmatpush2.msra.mxu0 0.0
      %3445 = vmatprep.subr.mxu0 0.0
      %3446 = vmatpush2.msra.mxu0 0.0
      %3447 = vmatprep.subr.mxu0 0.0
      %3448 = vmatpush2.msra.mxu0 0.0
      %3449 = vmatprep.subr.mxu0 0.0
      %3450 = vmatpush2.msra.mxu0 0.0
      %3451 = vmatprep.subr.mxu0 0.0
      %3452 = vmatpush2.msra.mxu0 0.0
      %3453 = vmatprep.subr.mxu0 0.0
      %3454 = vmatpush2.msra.mxu0 0.0
      %3455 = vmatprep.subr.mxu0 0.0
      %3456 = vmatpush2.msra.mxu0 0.0
      %3457 = vmatprep.subr.mxu0 0.0
      %3458 = vmatpush2.msra.mxu0 0.0
      %3459 = vmatprep.subr.mxu0 0.0
      %3460 = vmatpush2.msra.mxu0 0.0
      %3461 = vmatprep.mubr.f32.mxu0 0.0
      %3462 = vmatmul.mubr.f32.gmra.mxu0 %v3395
      %v3463 = vpop.f32.mrf.mxu0
      %v3464 = vadd.f32 0.0, %v3463
      %v3465 = vpop.f32.mrf.mxu0
      %3466 = vdwg.mxu0
      %3467 = vrot.lane.b32.xlu0 %v3018, 64
      %v3468 = vpop.permute.xlu0 %3467
      %v3471 = vsel %vm1088, %v3388, 0
      %3473 = vmatprep.subr.mxu0 0.0
      %3474 = vmatpush1.msra.mxu0 0.0
      %3475 = vmatprep.subr.mxu0 0.0
      %3476 = vmatpush1.msra.mxu0 0.0
      %3477 = vmatprep.subr.mxu0 0.0
      %3478 = vmatpush1.msra.mxu0 0.0
      %3479 = vmatprep.subr.mxu0 0.0
      %3480 = vmatpush1.msra.mxu0 0.0
      %3481 = vmatprep.subr.mxu0 0.0
      %3482 = vmatpush1.msra.mxu0 0.0
      %3483 = vmatprep.subr.mxu0 0.0
      %3484 = vmatpush1.msra.mxu0 0.0
      %3485 = vmatprep.subr.mxu0 0.0
      %3486 = vmatpush1.msra.mxu0 0.0
      %3487 = vmatprep.subr.mxu0 0.0
      %3488 = vmatpush1.msra.mxu0 0.0
      %3489 = vmatprep.subr.mxu0 0.0
      %3490 = vmatpush1.msra.mxu0 0.0
      %3491 = vmatprep.subr.mxu0 0.0
      %3492 = vmatpush1.msra.mxu0 0.0
      %3493 = vmatprep.subr.mxu0 0.0
      %3494 = vmatpush1.msra.mxu0 0.0
      %3495 = vmatprep.subr.mxu0 0.0
      %3496 = vmatpush1.msra.mxu0 0.0
      %3497 = vmatprep.subr.mxu0 0.0
      %3498 = vmatpush1.msra.mxu0 0.0
      %3499 = vmatprep.subr.mxu0 0.0
      %3500 = vmatpush1.msra.mxu0 0.0
      %3501 = vmatprep.subr.mxu0 0.0
      %3502 = vmatpush1.msra.mxu0 0.0
      %3503 = vmatprep.subr.mxu0 0.0
      %3504 = vmatpush1.msra.mxu0 %v3468
      %3505 = vmatprep.subr.mxu0 0.0
      %3506 = vmatpush2.msra.mxu0 0.0
      %3507 = vmatprep.subr.mxu0 0.0
      %3508 = vmatpush2.msra.mxu0 0.0
      %3509 = vmatprep.subr.mxu0 0.0
      %3510 = vmatpush2.msra.mxu0 0.0
      %3511 = vmatprep.subr.mxu0 0.0
      %3512 = vmatpush2.msra.mxu0 0.0
      %3513 = vmatprep.subr.mxu0 0.0
      %3514 = vmatpush2.msra.mxu0 0.0
      %3515 = vmatprep.subr.mxu0 0.0
      %3516 = vmatpush2.msra.mxu0 0.0
      %3517 = vmatprep.subr.mxu0 0.0
      %3518 = vmatpush2.msra.mxu0 0.0
      %3519 = vmatprep.subr.mxu0 0.0
      %3520 = vmatpush2.msra.mxu0 0.0
      %3521 = vmatprep.subr.mxu0 0.0
      %3522 = vmatpush2.msra.mxu0 0.0
      %3523 = vmatprep.subr.mxu0 0.0
      %3524 = vmatpush2.msra.mxu0 0.0
      %3525 = vmatprep.subr.mxu0 0.0
      %3526 = vmatpush2.msra.mxu0 0.0
      %3527 = vmatprep.subr.mxu0 0.0
      %3528 = vmatpush2.msra.mxu0 0.0
      %3529 = vmatprep.subr.mxu0 0.0
      %3530 = vmatpush2.msra.mxu0 0.0
      %3531 = vmatprep.subr.mxu0 0.0
      %3532 = vmatpush2.msra.mxu0 0.0
      %3533 = vmatprep.subr.mxu0 0.0
      %3534 = vmatpush2.msra.mxu0 0.0
      %3535 = vmatprep.subr.mxu0 0.0
      %3536 = vmatpush2.msra.mxu0 0.0
      %3537 = vmatprep.mubr.f32.mxu0 0.0
      %3538 = vmatmul.mubr.f32.gmra.mxu0 %v3471
      %v3539 = vpop.f32.mrf.mxu0
      %v3540 = vadd.f32 0.0, %v3539
      %v3541 = vpop.f32.mrf.mxu0
      %3542 = vdwg.mxu0
      %3543 = vrot.lane.b32.xlu0 %v3023, 64
      %v3544 = vpop.permute.xlu0 %3543
      %v3547 = vsel %vm1088, %v3389, 0
      %3549 = vmatprep.subr.mxu0 0.0
      %3550 = vmatpush1.msra.mxu0 0.0
      %3551 = vmatprep.subr.mxu0 0.0
      %3552 = vmatpush1.msra.mxu0 0.0
      %3553 = vmatprep.subr.mxu0 0.0
      %3554 = vmatpush1.msra.mxu0 0.0
      %3555 = vmatprep.subr.mxu0 0.0
      %3556 = vmatpush1.msra.mxu0 0.0
      %3557 = vmatprep.subr.mxu0 0.0
      %3558 = vmatpush1.msra.mxu0 0.0
      %3559 = vmatprep.subr.mxu0 0.0
      %3560 = vmatpush1.msra.mxu0 0.0
      %3561 = vmatprep.subr.mxu0 0.0
      %3562 = vmatpush1.msra.mxu0 0.0
      %3563 = vmatprep.subr.mxu0 0.0
      %3564 = vmatpush1.msra.mxu0 0.0
      %3565 = vmatprep.subr.mxu0 0.0
      %3566 = vmatpush1.msra.mxu0 0.0
      %3567 = vmatprep.subr.mxu0 0.0
      %3568 = vmatpush1.msra.mxu0 0.0
      %3569 = vmatprep.subr.mxu0 0.0
      %3570 = vmatpush1.msra.mxu0 0.0
      %3571 = vmatprep.subr.mxu0 0.0
      %3572 = vmatpush1.msra.mxu0 0.0
      %3573 = vmatprep.subr.mxu0 0.0
      %3574 = vmatpush1.msra.mxu0 0.0
      %3575 = vmatprep.subr.mxu0 0.0
      %3576 = vmatpush1.msra.mxu0 0.0
      %3577 = vmatprep.subr.mxu0 0.0
      %3578 = vmatpush1.msra.mxu0 0.0
      %3579 = vmatprep.subr.mxu0 0.0
      %3580 = vmatpush1.msra.mxu0 %v3544
      %3581 = vmatprep.subr.mxu0 0.0
      %3582 = vmatpush2.msra.mxu0 0.0
      %3583 = vmatprep.subr.mxu0 0.0
      %3584 = vmatpush2.msra.mxu0 0.0
      %3585 = vmatprep.subr.mxu0 0.0
      %3586 = vmatpush2.msra.mxu0 0.0
      %3587 = vmatprep.subr.mxu0 0.0
      %3588 = vmatpush2.msra.mxu0 0.0
      %3589 = vmatprep.subr.mxu0 0.0
      %3590 = vmatpush2.msra.mxu0 0.0
      %3591 = vmatprep.subr.mxu0 0.0
      %3592 = vmatpush2.msra.mxu0 0.0
      %3593 = vmatprep.subr.mxu0 0.0
      %3594 = vmatpush2.msra.mxu0 0.0
      %3595 = vmatprep.subr.mxu0 0.0
      %3596 = vmatpush2.msra.mxu0 0.0
      %3597 = vmatprep.subr.mxu0 0.0
      %3598 = vmatpush2.msra.mxu0 0.0
      %3599 = vmatprep.subr.mxu0 0.0
      %3600 = vmatpush2.msra.mxu0 0.0
      %3601 = vmatprep.subr.mxu0 0.0
      %3602 = vmatpush2.msra.mxu0 0.0
      %3603 = vmatprep.subr.mxu0 0.0
      %3604 = vmatpush2.msra.mxu0 0.0
      %3605 = vmatprep.subr.mxu0 0.0
      %3606 = vmatpush2.msra.mxu0 0.0
      %3607 = vmatprep.subr.mxu0 0.0
      %3608 = vmatpush2.msra.mxu0 0.0
      %3609 = vmatprep.subr.mxu0 0.0
      %3610 = vmatpush2.msra.mxu0 0.0
      %3611 = vmatprep.subr.mxu0 0.0
      %3612 = vmatpush2.msra.mxu0 0.0
      %3613 = vmatprep.mubr.f32.mxu0 0.0
      %3614 = vmatmul.mubr.f32.gmra.mxu0 %v3547
      %v3615 = vpop.f32.mrf.mxu0
      %v3616 = vadd.f32 0.0, %v3615
      %v3617 = vpop.f32.mrf.mxu0
      %3618 = vdwg.mxu0
      %3619 = vrot.lane.b32.xlu0 %v3028, 64
      %v3620 = vpop.permute.xlu0 %3619
      %v3623 = vsel %vm1088, %v3390, 0
      %3625 = vmatprep.subr.mxu0 0.0
      %3626 = vmatpush1.msra.mxu0 0.0
      %3627 = vmatprep.subr.mxu0 0.0
      %3628 = vmatpush1.msra.mxu0 0.0
      %3629 = vmatprep.subr.mxu0 0.0
      %3630 = vmatpush1.msra.mxu0 0.0
      %3631 = vmatprep.subr.mxu0 0.0
      %3632 = vmatpush1.msra.mxu0 0.0
      %3633 = vmatprep.subr.mxu0 0.0
      %3634 = vmatpush1.msra.mxu0 0.0
      %3635 = vmatprep.subr.mxu0 0.0
      %3636 = vmatpush1.msra.mxu0 0.0
      %3637 = vmatprep.subr.mxu0 0.0
      %3638 = vmatpush1.msra.mxu0 0.0
      %3639 = vmatprep.subr.mxu0 0.0
      %3640 = vmatpush1.msra.mxu0 0.0
      %3641 = vmatprep.subr.mxu0 0.0
      %3642 = vmatpush1.msra.mxu0 0.0
      %3643 = vmatprep.subr.mxu0 0.0
      %3644 = vmatpush1.msra.mxu0 0.0
      %3645 = vmatprep.subr.mxu0 0.0
      %3646 = vmatpush1.msra.mxu0 0.0
      %3647 = vmatprep.subr.mxu0 0.0
      %3648 = vmatpush1.msra.mxu0 0.0
      %3649 = vmatprep.subr.mxu0 0.0
      %3650 = vmatpush1.msra.mxu0 0.0
      %3651 = vmatprep.subr.mxu0 0.0
      %3652 = vmatpush1.msra.mxu0 0.0
      %3653 = vmatprep.subr.mxu0 0.0
      %3654 = vmatpush1.msra.mxu0 0.0
      %3655 = vmatprep.subr.mxu0 0.0
      %3656 = vmatpush1.msra.mxu0 %v3620
      %3657 = vmatprep.subr.mxu0 0.0
      %3658 = vmatpush2.msra.mxu0 0.0
      %3659 = vmatprep.subr.mxu0 0.0
      %3660 = vmatpush2.msra.mxu0 0.0
      %3661 = vmatprep.subr.mxu0 0.0
      %3662 = vmatpush2.msra.mxu0 0.0
      %3663 = vmatprep.subr.mxu0 0.0
      %3664 = vmatpush2.msra.mxu0 0.0
      %3665 = vmatprep.subr.mxu0 0.0
      %3666 = vmatpush2.msra.mxu0 0.0
      %3667 = vmatprep.subr.mxu0 0.0
      %3668 = vmatpush2.msra.mxu0 0.0
      %3669 = vmatprep.subr.mxu0 0.0
      %3670 = vmatpush2.msra.mxu0 0.0
      %3671 = vmatprep.subr.mxu0 0.0
      %3672 = vmatpush2.msra.mxu0 0.0
      %3673 = vmatprep.subr.mxu0 0.0
      %3674 = vmatpush2.msra.mxu0 0.0
      %3675 = vmatprep.subr.mxu0 0.0
      %3676 = vmatpush2.msra.mxu0 0.0
      %3677 = vmatprep.subr.mxu0 0.0
      %3678 = vmatpush2.msra.mxu0 0.0
      %3679 = vmatprep.subr.mxu0 0.0
      %3680 = vmatpush2.msra.mxu0 0.0
      %3681 = vmatprep.subr.mxu0 0.0
      %3682 = vmatpush2.msra.mxu0 0.0
      %3683 = vmatprep.subr.mxu0 0.0
      %3684 = vmatpush2.msra.mxu0 0.0
      %3685 = vmatprep.subr.mxu0 0.0
      %3686 = vmatpush2.msra.mxu0 0.0
      %3687 = vmatprep.subr.mxu0 0.0
      %3688 = vmatpush2.msra.mxu0 0.0
      %3689 = vmatprep.mubr.f32.mxu0 0.0
      %3690 = vmatmul.mubr.f32.gmra.mxu0 %v3623
      %v3691 = vpop.f32.mrf.mxu0
      %v3692 = vadd.f32 0.0, %v3691
      %v3693 = vpop.f32.mrf.mxu0
      %3694 = vdwg.mxu0
      %3695 = vrot.lane.b32.xlu0 %v3013, 112
      %v3696 = vpop.permute.xlu0 %3695
      %3697 = vrot.lane.b32.xlu0 %v3013, 80
      %v3698 = vpop.permute.xlu0 %3697
      %v3699 = vsel %vm774, %v3696, 0
      %v3701 = vsel %vm774, %v3698, 0
      %3703 = vmatprep.subr.mxu0 0.0
      %3704 = vmatpush1.xpose.msra.mxu0 0.0
      %3705 = vmatprep.subr.mxu0 0.0
      %3706 = vmatpush1.xpose.msra.mxu0 0.0
      %3707 = vmatprep.subr.mxu0 0.0
      %3708 = vmatpush1.xpose.msra.mxu0 0.0
      %3709 = vmatprep.subr.mxu0 0.0
      %3710 = vmatpush1.xpose.msra.mxu0 0.0
      %3711 = vmatprep.subr.mxu0 0.0
      %3712 = vmatpush1.xpose.msra.mxu0 0.0
      %3713 = vmatprep.subr.mxu0 0.0
      %3714 = vmatpush1.xpose.msra.mxu0 0.0
      %3715 = vmatprep.subr.mxu0 0.0
      %3716 = vmatpush1.xpose.msra.mxu0 0.0
      %3717 = vmatprep.subr.mxu0 0.0
      %3718 = vmatpush1.xpose.msra.mxu0 0.0
      %3719 = vmatprep.subr.mxu0 0.0
      %3720 = vmatpush1.xpose.msra.mxu0 0.0
      %3721 = vmatprep.subr.mxu0 0.0
      %3722 = vmatpush1.xpose.msra.mxu0 0.0
      %3723 = vmatprep.subr.mxu0 0.0
      %3724 = vmatpush1.xpose.msra.mxu0 0.0
      %3725 = vmatprep.subr.mxu0 0.0
      %3726 = vmatpush1.xpose.msra.mxu0 0.0
      %3727 = vmatprep.subr.mxu0 0.0
      %3728 = vmatpush1.xpose.msra.mxu0 0.0
      %3729 = vmatprep.subr.mxu0 0.0
      %3730 = vmatpush1.xpose.msra.mxu0 0.0
      %3731 = vmatprep.subr.mxu0 0.0
      %3732 = vmatpush1.xpose.msra.mxu0 0.0
      %3733 = vmatprep.subr.mxu0 0.0
      %3734 = vmatpush1.xpose.msra.mxu0 %v3701
      %3735 = vmatprep.subr.mxu0 0.0
      %3736 = vmatpush2.xpose.msra.mxu0 0.0
      %3737 = vmatprep.subr.mxu0 0.0
      %3738 = vmatpush2.xpose.msra.mxu0 0.0
      %3739 = vmatprep.subr.mxu0 0.0
      %3740 = vmatpush2.xpose.msra.mxu0 0.0
      %3741 = vmatprep.subr.mxu0 0.0
      %3742 = vmatpush2.xpose.msra.mxu0 0.0
      %3743 = vmatprep.subr.mxu0 0.0
      %3744 = vmatpush2.xpose.msra.mxu0 0.0
      %3745 = vmatprep.subr.mxu0 0.0
      %3746 = vmatpush2.xpose.msra.mxu0 0.0
      %3747 = vmatprep.subr.mxu0 0.0
      %3748 = vmatpush2.xpose.msra.mxu0 0.0
      %3749 = vmatprep.subr.mxu0 0.0
      %3750 = vmatpush2.xpose.msra.mxu0 0.0
      %3751 = vmatprep.subr.mxu0 0.0
      %3752 = vmatpush2.xpose.msra.mxu0 0.0
      %3753 = vmatprep.subr.mxu0 0.0
      %3754 = vmatpush2.xpose.msra.mxu0 0.0
      %3755 = vmatprep.subr.mxu0 0.0
      %3756 = vmatpush2.xpose.msra.mxu0 0.0
      %3757 = vmatprep.subr.mxu0 0.0
      %3758 = vmatpush2.xpose.msra.mxu0 0.0
      %3759 = vmatprep.subr.mxu0 0.0
      %3760 = vmatpush2.xpose.msra.mxu0 0.0
      %3761 = vmatprep.subr.mxu0 0.0
      %3762 = vmatpush2.xpose.msra.mxu0 0.0
      %3763 = vmatprep.subr.mxu0 0.0
      %3764 = vmatpush2.xpose.msra.mxu0 0.0
      %3765 = vmatprep.subr.mxu0 0.0
      %3766 = vmatpush2.xpose.msra.mxu0 0.0
      %3767 = vmatprep.mubr.f32.mxu0 0.0
      %3768 = vmatmul.mubr.f32.gmra.mxu0 %v3699
      %v3769 = vpop.f32.mrf.mxu0
      %v3770 = vadd.f32 0.0, %v3769
      %v3771 = vpop.f32.mrf.mxu0
      %3772 = vdwg.mxu0
      %3773 = vrot.lane.b32.xlu0 %v3018, 112
      %v3774 = vpop.permute.xlu0 %3773
      %3775 = vrot.lane.b32.xlu0 %v3018, 80
      %v3776 = vpop.permute.xlu0 %3775
      %v3777 = vsel %vm774, %v3774, 0
      %v3779 = vsel %vm774, %v3776, 0
      %3781 = vmatprep.subr.mxu0 0.0
      %3782 = vmatpush1.xpose.msra.mxu0 0.0
      %3783 = vmatprep.subr.mxu0 0.0
      %3784 = vmatpush1.xpose.msra.mxu0 0.0
      %3785 = vmatprep.subr.mxu0 0.0
      %3786 = vmatpush1.xpose.msra.mxu0 0.0
      %3787 = vmatprep.subr.mxu0 0.0
      %3788 = vmatpush1.xpose.msra.mxu0 0.0
      %3789 = vmatprep.subr.mxu0 0.0
      %3790 = vmatpush1.xpose.msra.mxu0 0.0
      %3791 = vmatprep.subr.mxu0 0.0
      %3792 = vmatpush1.xpose.msra.mxu0 0.0
      %3793 = vmatprep.subr.mxu0 0.0
      %3794 = vmatpush1.xpose.msra.mxu0 0.0
      %3795 = vmatprep.subr.mxu0 0.0
      %3796 = vmatpush1.xpose.msra.mxu0 0.0
      %3797 = vmatprep.subr.mxu0 0.0
      %3798 = vmatpush1.xpose.msra.mxu0 0.0
      %3799 = vmatprep.subr.mxu0 0.0
      %3800 = vmatpush1.xpose.msra.mxu0 0.0
      %3801 = vmatprep.subr.mxu0 0.0
      %3802 = vmatpush1.xpose.msra.mxu0 0.0
      %3803 = vmatprep.subr.mxu0 0.0
      %3804 = vmatpush1.xpose.msra.mxu0 0.0
      %3805 = vmatprep.subr.mxu0 0.0
      %3806 = vmatpush1.xpose.msra.mxu0 0.0
      %3807 = vmatprep.subr.mxu0 0.0
      %3808 = vmatpush1.xpose.msra.mxu0 0.0
      %3809 = vmatprep.subr.mxu0 0.0
      %3810 = vmatpush1.xpose.msra.mxu0 0.0
      %3811 = vmatprep.subr.mxu0 0.0
      %3812 = vmatpush1.xpose.msra.mxu0 %v3779
      %3813 = vmatprep.subr.mxu0 0.0
      %3814 = vmatpush2.xpose.msra.mxu0 0.0
      %3815 = vmatprep.subr.mxu0 0.0
      %3816 = vmatpush2.xpose.msra.mxu0 0.0
      %3817 = vmatprep.subr.mxu0 0.0
      %3818 = vmatpush2.xpose.msra.mxu0 0.0
      %3819 = vmatprep.subr.mxu0 0.0
      %3820 = vmatpush2.xpose.msra.mxu0 0.0
      %3821 = vmatprep.subr.mxu0 0.0
      %3822 = vmatpush2.xpose.msra.mxu0 0.0
      %3823 = vmatprep.subr.mxu0 0.0
      %3824 = vmatpush2.xpose.msra.mxu0 0.0
      %3825 = vmatprep.subr.mxu0 0.0
      %3826 = vmatpush2.xpose.msra.mxu0 0.0
      %3827 = vmatprep.subr.mxu0 0.0
      %3828 = vmatpush2.xpose.msra.mxu0 0.0
      %3829 = vmatprep.subr.mxu0 0.0
      %3830 = vmatpush2.xpose.msra.mxu0 0.0
      %3831 = vmatprep.subr.mxu0 0.0
      %3832 = vmatpush2.xpose.msra.mxu0 0.0
      %3833 = vmatprep.subr.mxu0 0.0
      %3834 = vmatpush2.xpose.msra.mxu0 0.0
      %3835 = vmatprep.subr.mxu0 0.0
      %3836 = vmatpush2.xpose.msra.mxu0 0.0
      %3837 = vmatprep.subr.mxu0 0.0
      %3838 = vmatpush2.xpose.msra.mxu0 0.0
      %3839 = vmatprep.subr.mxu0 0.0
      %3840 = vmatpush2.xpose.msra.mxu0 0.0
      %3841 = vmatprep.subr.mxu0 0.0
      %3842 = vmatpush2.xpose.msra.mxu0 0.0
      %3843 = vmatprep.subr.mxu0 0.0
      %3844 = vmatpush2.xpose.msra.mxu0 0.0
      %3845 = vmatprep.mubr.f32.mxu0 0.0
      %3846 = vmatmul.mubr.f32.gmra.mxu0 %v3777
      %v3847 = vpop.f32.mrf.mxu0
      %v3848 = vadd.f32 0.0, %v3847
      %v3849 = vpop.f32.mrf.mxu0
      %3850 = vdwg.mxu0
      %3851 = vrot.lane.b32.xlu0 %v3023, 112
      %v3852 = vpop.permute.xlu0 %3851
      %3853 = vrot.lane.b32.xlu0 %v3023, 80
      %v3854 = vpop.permute.xlu0 %3853
      %v3855 = vsel %vm774, %v3852, 0
      %v3857 = vsel %vm774, %v3854, 0
      %3859 = vmatprep.subr.mxu0 0.0
      %3860 = vmatpush1.xpose.msra.mxu0 0.0
      %3861 = vmatprep.subr.mxu0 0.0
      %3862 = vmatpush1.xpose.msra.mxu0 0.0
      %3863 = vmatprep.subr.mxu0 0.0
      %3864 = vmatpush1.xpose.msra.mxu0 0.0
      %3865 = vmatprep.subr.mxu0 0.0
      %3866 = vmatpush1.xpose.msra.mxu0 0.0
      %3867 = vmatprep.subr.mxu0 0.0
      %3868 = vmatpush1.xpose.msra.mxu0 0.0
      %3869 = vmatprep.subr.mxu0 0.0
      %3870 = vmatpush1.xpose.msra.mxu0 0.0
      %3871 = vmatprep.subr.mxu0 0.0
      %3872 = vmatpush1.xpose.msra.mxu0 0.0
      %3873 = vmatprep.subr.mxu0 0.0
      %3874 = vmatpush1.xpose.msra.mxu0 0.0
      %3875 = vmatprep.subr.mxu0 0.0
      %3876 = vmatpush1.xpose.msra.mxu0 0.0
      %3877 = vmatprep.subr.mxu0 0.0
      %3878 = vmatpush1.xpose.msra.mxu0 0.0
      %3879 = vmatprep.subr.mxu0 0.0
      %3880 = vmatpush1.xpose.msra.mxu0 0.0
      %3881 = vmatprep.subr.mxu0 0.0
      %3882 = vmatpush1.xpose.msra.mxu0 0.0
      %3883 = vmatprep.subr.mxu0 0.0
      %3884 = vmatpush1.xpose.msra.mxu0 0.0
      %3885 = vmatprep.subr.mxu0 0.0
      %3886 = vmatpush1.xpose.msra.mxu0 0.0
      %3887 = vmatprep.subr.mxu0 0.0
      %3888 = vmatpush1.xpose.msra.mxu0 0.0
      %3889 = vmatprep.subr.mxu0 0.0
      %3890 = vmatpush1.xpose.msra.mxu0 %v3857
      %3891 = vmatprep.subr.mxu0 0.0
      %3892 = vmatpush2.xpose.msra.mxu0 0.0
      %3893 = vmatprep.subr.mxu0 0.0
      %3894 = vmatpush2.xpose.msra.mxu0 0.0
      %3895 = vmatprep.subr.mxu0 0.0
      %3896 = vmatpush2.xpose.msra.mxu0 0.0
      %3897 = vmatprep.subr.mxu0 0.0
      %3898 = vmatpush2.xpose.msra.mxu0 0.0
      %3899 = vmatprep.subr.mxu0 0.0
      %3900 = vmatpush2.xpose.msra.mxu0 0.0
      %3901 = vmatprep.subr.mxu0 0.0
      %3902 = vmatpush2.xpose.msra.mxu0 0.0
      %3903 = vmatprep.subr.mxu0 0.0
      %3904 = vmatpush2.xpose.msra.mxu0 0.0
      %3905 = vmatprep.subr.mxu0 0.0
      %3906 = vmatpush2.xpose.msra.mxu0 0.0
      %3907 = vmatprep.subr.mxu0 0.0
      %3908 = vmatpush2.xpose.msra.mxu0 0.0
      %3909 = vmatprep.subr.mxu0 0.0
      %3910 = vmatpush2.xpose.msra.mxu0 0.0
      %3911 = vmatprep.subr.mxu0 0.0
      %3912 = vmatpush2.xpose.msra.mxu0 0.0
      %3913 = vmatprep.subr.mxu0 0.0
      %3914 = vmatpush2.xpose.msra.mxu0 0.0
      %3915 = vmatprep.subr.mxu0 0.0
      %3916 = vmatpush2.xpose.msra.mxu0 0.0
      %3917 = vmatprep.subr.mxu0 0.0
      %3918 = vmatpush2.xpose.msra.mxu0 0.0
      %3919 = vmatprep.subr.mxu0 0.0
      %3920 = vmatpush2.xpose.msra.mxu0 0.0
      %3921 = vmatprep.subr.mxu0 0.0
      %3922 = vmatpush2.xpose.msra.mxu0 0.0
      %3923 = vmatprep.mubr.f32.mxu0 0.0
      %3924 = vmatmul.mubr.f32.gmra.mxu0 %v3855
      %v3925 = vpop.f32.mrf.mxu0
      %v3926 = vadd.f32 0.0, %v3925
      %v3927 = vpop.f32.mrf.mxu0
      %3928 = vdwg.mxu0
      %3929 = vrot.lane.b32.xlu0 %v3028, 112
      %v3930 = vpop.permute.xlu0 %3929
      %3931 = vrot.lane.b32.xlu0 %v3028, 80
      %v3932 = vpop.permute.xlu0 %3931
      %v3933 = vsel %vm774, %v3930, 0
      %v3935 = vsel %vm774, %v3932, 0
      %3937 = vmatprep.subr.mxu0 0.0
      %3938 = vmatpush1.xpose.msra.mxu0 0.0
      %3939 = vmatprep.subr.mxu0 0.0
      %3940 = vmatpush1.xpose.msra.mxu0 0.0
      %3941 = vmatprep.subr.mxu0 0.0
      %3942 = vmatpush1.xpose.msra.mxu0 0.0
      %3943 = vmatprep.subr.mxu0 0.0
      %3944 = vmatpush1.xpose.msra.mxu0 0.0
      %3945 = vmatprep.subr.mxu0 0.0
      %3946 = vmatpush1.xpose.msra.mxu0 0.0
      %3947 = vmatprep.subr.mxu0 0.0
      %3948 = vmatpush1.xpose.msra.mxu0 0.0
      %3949 = vmatprep.subr.mxu0 0.0
      %3950 = vmatpush1.xpose.msra.mxu0 0.0
      %3951 = vmatprep.subr.mxu0 0.0
      %3952 = vmatpush1.xpose.msra.mxu0 0.0
      %3953 = vmatprep.subr.mxu0 0.0
      %3954 = vmatpush1.xpose.msra.mxu0 0.0
      %3955 = vmatprep.subr.mxu0 0.0
      %3956 = vmatpush1.xpose.msra.mxu0 0.0
      %3957 = vmatprep.subr.mxu0 0.0
      %3958 = vmatpush1.xpose.msra.mxu0 0.0
      %3959 = vmatprep.subr.mxu0 0.0
      %3960 = vmatpush1.xpose.msra.mxu0 0.0
      %3961 = vmatprep.subr.mxu0 0.0
      %3962 = vmatpush1.xpose.msra.mxu0 0.0
      %3963 = vmatprep.subr.mxu0 0.0
      %3964 = vmatpush1.xpose.msra.mxu0 0.0
      %3965 = vmatprep.subr.mxu0 0.0
      %3966 = vmatpush1.xpose.msra.mxu0 0.0
      %3967 = vmatprep.subr.mxu0 0.0
      %3968 = vmatpush1.xpose.msra.mxu0 %v3935
      %3969 = vmatprep.subr.mxu0 0.0
      %3970 = vmatpush2.xpose.msra.mxu0 0.0
      %3971 = vmatprep.subr.mxu0 0.0
      %3972 = vmatpush2.xpose.msra.mxu0 0.0
      %3973 = vmatprep.subr.mxu0 0.0
      %3974 = vmatpush2.xpose.msra.mxu0 0.0
      %3975 = vmatprep.subr.mxu0 0.0
      %3976 = vmatpush2.xpose.msra.mxu0 0.0
      %3977 = vmatprep.subr.mxu0 0.0
      %3978 = vmatpush2.xpose.msra.mxu0 0.0
      %3979 = vmatprep.subr.mxu0 0.0
      %3980 = vmatpush2.xpose.msra.mxu0 0.0
      %3981 = vmatprep.subr.mxu0 0.0
      %3982 = vmatpush2.xpose.msra.mxu0 0.0
      %3983 = vmatprep.subr.mxu0 0.0
      %3984 = vmatpush2.xpose.msra.mxu0 0.0
      %3985 = vmatprep.subr.mxu0 0.0
      %3986 = vmatpush2.xpose.msra.mxu0 0.0
      %3987 = vmatprep.subr.mxu0 0.0
      %3988 = vmatpush2.xpose.msra.mxu0 0.0
      %3989 = vmatprep.subr.mxu0 0.0
      %3990 = vmatpush2.xpose.msra.mxu0 0.0
      %3991 = vmatprep.subr.mxu0 0.0
      %3992 = vmatpush2.xpose.msra.mxu0 0.0
      %3993 = vmatprep.subr.mxu0 0.0
      %3994 = vmatpush2.xpose.msra.mxu0 0.0
      %3995 = vmatprep.subr.mxu0 0.0
      %3996 = vmatpush2.xpose.msra.mxu0 0.0
      %3997 = vmatprep.subr.mxu0 0.0
      %3998 = vmatpush2.xpose.msra.mxu0 0.0
      %3999 = vmatprep.subr.mxu0 0.0
      %4000 = vmatpush2.xpose.msra.mxu0 0.0
      %4001 = vmatprep.mubr.f32.mxu0 0.0
      %4002 = vmatmul.mubr.f32.gmra.mxu0 %v3933
      %v4003 = vpop.f32.mrf.mxu0
      %v4004 = vadd.f32 0.0, %v4003
      %v4005 = vpop.f32.mrf.mxu0
      %4006 = vdwg.mxu0
      %v4007 = vmul.f32 %v3770, 0.25
      %v4008 = vmul.f32 %v3848, 0.25
      %v4009 = vmul.f32 %v3926, 0.25
      %v4010 = vmul.f32 %v4004, 0.25
      %v4011 = vadd.f32 %v4007, %v650
      %v4012 = vadd.f32 %v4008, %v651
      %v4013 = vadd.f32 %v4009, %v652
      %v4014 = vadd.f32 %v4010, %v653
      %v4015 = vsel %vm1088, %v4011, -inf
      %4016 = vmax.xlane.f32.xlu0 %v4015
      %v4017 = vpop.xlane.xlu0 %4016
      %v4018 = vsel %vm1088, %v4012, -inf
      %4019 = vmax.xlane.f32.xlu0 %v4018
      %v4020 = vpop.xlane.xlu0 %4019
      %v4021 = vsel %vm1088, %v4013, -inf
      %4022 = vmax.xlane.f32.xlu0 %v4021
      %v4023 = vpop.xlane.xlu0 %4022
      %v4024 = vsel %vm1088, %v4014, -inf
      %4025 = vmax.xlane.f32.xlu0 %v4024
      %v4026 = vpop.xlane.xlu0 %4025
      %v4027 = vsub.f32 %v4011, %v4017
      %v4028 = vsub.f32 %v4012, %v4020
      %v4029 = vsub.f32 %v4013, %v4023
      %v4030 = vsub.f32 %v4014, %v4026
      %v4031 = vmul.f32 %v4027, 1.442695
      %v4032 = vpow.pop %v4031
      %v4033 = vmul.f32 %v4028, 1.442695
      %v4034 = vpow.pop %v4033
      %v4035 = vmul.f32 %v4029, 1.442695
      %v4036 = vpow.pop %v4035
      %v4037 = vmul.f32 %v4030, 1.442695
      %v4038 = vpow.pop %v4037
      %v4039 = vsel %vm1088, %v4032, 0.0
      %4040 = vadd.xlane.f32.xlu0 %v4039
      %v4041 = vpop.xlane.xlu0 %4040
      %v4042 = vsel %vm1088, %v4034, 0.0
      %4043 = vadd.xlane.f32.xlu0 %v4042
      %v4044 = vpop.xlane.xlu0 %4043
      %v4045 = vsel %vm1088, %v4036, 0.0
      %4046 = vadd.xlane.f32.xlu0 %v4045
      %v4047 = vpop.xlane.xlu0 %4046
      %v4048 = vsel %vm1088, %v4038, 0.0
      %4049 = vadd.xlane.f32.xlu0 %v4048
      %v4050 = vpop.xlane.xlu0 %4049
      %v4051 = vrcp.pop %v4041
      %v4052 = vrcp.pop %v4044
      %v4053 = vrcp.pop %v4047
      %v4054 = vrcp.pop %v4050
      %v4055 = vmul.f32 %v4032, %v4051
      %v4056 = vmul.f32 %v4034, %v4052
      %v4057 = vmul.f32 %v4036, %v4053
      %v4058 = vmul.f32 %v4038, %v4054
      %4059 = vrot.lane.b32.xlu0 %v3013, 48
      %v4060 = vpop.permute.xlu0 %4059
      %v4063 = vsel %vm1088, %v4055, 0
      %4065 = vmatprep.subr.mxu0 0.0
      %4066 = vmatpush1.msra.mxu0 0.0
      %4067 = vmatprep.subr.mxu0 0.0
      %4068 = vmatpush1.msra.mxu0 0.0
      %4069 = vmatprep.subr.mxu0 0.0
      %4070 = vmatpush1.msra.mxu0 0.0
      %4071 = vmatprep.subr.mxu0 0.0
      %4072 = vmatpush1.msra.mxu0 0.0
      %4073 = vmatprep.subr.mxu0 0.0
      %4074 = vmatpush1.msra.mxu0 0.0
      %4075 = vmatprep.subr.mxu0 0.0
      %4076 = vmatpush1.msra.mxu0 0.0
      %4077 = vmatprep.subr.mxu0 0.0
      %4078 = vmatpush1.msra.mxu0 0.0
      %4079 = vmatprep.subr.mxu0 0.0
      %4080 = vmatpush1.msra.mxu0 0.0
      %4081 = vmatprep.subr.mxu0 0.0
      %4082 = vmatpush1.msra.mxu0 0.0
      %4083 = vmatprep.subr.mxu0 0.0
      %4084 = vmatpush1.msra.mxu0 0.0
      %4085 = vmatprep.subr.mxu0 0.0
      %4086 = vmatpush1.msra.mxu0 0.0
      %4087 = vmatprep.subr.mxu0 0.0
      %4088 = vmatpush1.msra.mxu0 0.0
      %4089 = vmatprep.subr.mxu0 0.0
      %4090 = vmatpush1.msra.mxu0 0.0
      %4091 = vmatprep.subr.mxu0 0.0
      %4092 = vmatpush1.msra.mxu0 0.0
      %4093 = vmatprep.subr.mxu0 0.0
      %4094 = vmatpush1.msra.mxu0 0.0
      %4095 = vmatprep.subr.mxu0 0.0
      %4096 = vmatpush1.msra.mxu0 %v4060
      %4097 = vmatprep.subr.mxu0 0.0
      %4098 = vmatpush2.msra.mxu0 0.0
      %4099 = vmatprep.subr.mxu0 0.0
      %4100 = vmatpush2.msra.mxu0 0.0
      %4101 = vmatprep.subr.mxu0 0.0
      %4102 = vmatpush2.msra.mxu0 0.0
      %4103 = vmatprep.subr.mxu0 0.0
      %4104 = vmatpush2.msra.mxu0 0.0
      %4105 = vmatprep.subr.mxu0 0.0
      %4106 = vmatpush2.msra.mxu0 0.0
      %4107 = vmatprep.subr.mxu0 0.0
      %4108 = vmatpush2.msra.mxu0 0.0
      %4109 = vmatprep.subr.mxu0 0.0
      %4110 = vmatpush2.msra.mxu0 0.0
      %4111 = vmatprep.subr.mxu0 0.0
      %4112 = vmatpush2.msra.mxu0 0.0
      %4113 = vmatprep.subr.mxu0 0.0
      %4114 = vmatpush2.msra.mxu0 0.0
      %4115 = vmatprep.subr.mxu0 0.0
      %4116 = vmatpush2.msra.mxu0 0.0
      %4117 = vmatprep.subr.mxu0 0.0
      %4118 = vmatpush2.msra.mxu0 0.0
      %4119 = vmatprep.subr.mxu0 0.0
      %4120 = vmatpush2.msra.mxu0 0.0
      %4121 = vmatprep.subr.mxu0 0.0
      %4122 = vmatpush2.msra.mxu0 0.0
      %4123 = vmatprep.subr.mxu0 0.0
      %4124 = vmatpush2.msra.mxu0 0.0
      %4125 = vmatprep.subr.mxu0 0.0
      %4126 = vmatpush2.msra.mxu0 0.0
      %4127 = vmatprep.subr.mxu0 0.0
      %4128 = vmatpush2.msra.mxu0 0.0
      %4129 = vmatprep.mubr.f32.mxu0 0.0
      %4130 = vmatmul.mubr.f32.gmra.mxu0 %v4063
      %v4131 = vpop.f32.mrf.mxu0
      %v4132 = vadd.f32 0.0, %v4131
      %v4133 = vpop.f32.mrf.mxu0
      %4134 = vdwg.mxu0
      %4135 = vrot.lane.b32.xlu0 %v3018, 48
      %v4136 = vpop.permute.xlu0 %4135
      %v4139 = vsel %vm1088, %v4056, 0
      %4141 = vmatprep.subr.mxu0 0.0
      %4142 = vmatpush1.msra.mxu0 0.0
      %4143 = vmatprep.subr.mxu0 0.0
      %4144 = vmatpush1.msra.mxu0 0.0
      %4145 = vmatprep.subr.mxu0 0.0
      %4146 = vmatpush1.msra.mxu0 0.0
      %4147 = vmatprep.subr.mxu0 0.0
      %4148 = vmatpush1.msra.mxu0 0.0
      %4149 = vmatprep.subr.mxu0 0.0
      %4150 = vmatpush1.msra.mxu0 0.0
      %4151 = vmatprep.subr.mxu0 0.0
      %4152 = vmatpush1.msra.mxu0 0.0
      %4153 = vmatprep.subr.mxu0 0.0
      %4154 = vmatpush1.msra.mxu0 0.0
      %4155 = vmatprep.subr.mxu0 0.0
      %4156 = vmatpush1.msra.mxu0 0.0
      %4157 = vmatprep.subr.mxu0 0.0
      %4158 = vmatpush1.msra.mxu0 0.0
      %4159 = vmatprep.subr.mxu0 0.0
      %4160 = vmatpush1.msra.mxu0 0.0
      %4161 = vmatprep.subr.mxu0 0.0
      %4162 = vmatpush1.msra.mxu0 0.0
      %4163 = vmatprep.subr.mxu0 0.0
      %4164 = vmatpush1.msra.mxu0 0.0
      %4165 = vmatprep.subr.mxu0 0.0
      %4166 = vmatpush1.msra.mxu0 0.0
      %4167 = vmatprep.subr.mxu0 0.0
      %4168 = vmatpush1.msra.mxu0 0.0
      %4169 = vmatprep.subr.mxu0 0.0
      %4170 = vmatpush1.msra.mxu0 0.0
      %4171 = vmatprep.subr.mxu0 0.0
      %4172 = vmatpush1.msra.mxu0 %v4136
      %4173 = vmatprep.subr.mxu0 0.0
      %4174 = vmatpush2.msra.mxu0 0.0
      %4175 = vmatprep.subr.mxu0 0.0
      %4176 = vmatpush2.msra.mxu0 0.0
      %4177 = vmatprep.subr.mxu0 0.0
      %4178 = vmatpush2.msra.mxu0 0.0
      %4179 = vmatprep.subr.mxu0 0.0
      %4180 = vmatpush2.msra.mxu0 0.0
      %4181 = vmatprep.subr.mxu0 0.0
      %4182 = vmatpush2.msra.mxu0 0.0
      %4183 = vmatprep.subr.mxu0 0.0
      %4184 = vmatpush2.msra.mxu0 0.0
      %4185 = vmatprep.subr.mxu0 0.0
      %4186 = vmatpush2.msra.mxu0 0.0
      %4187 = vmatprep.subr.mxu0 0.0
      %4188 = vmatpush2.msra.mxu0 0.0
      %4189 = vmatprep.subr.mxu0 0.0
      %4190 = vmatpush2.msra.mxu0 0.0
      %4191 = vmatprep.subr.mxu0 0.0
      %4192 = vmatpush2.msra.mxu0 0.0
      %4193 = vmatprep.subr.mxu0 0.0
      %4194 = vmatpush2.msra.mxu0 0.0
      %4195 = vmatprep.subr.mxu0 0.0
      %4196 = vmatpush2.msra.mxu0 0.0
      %4197 = vmatprep.subr.mxu0 0.0
      %4198 = vmatpush2.msra.mxu0 0.0
      %4199 = vmatprep.subr.mxu0 0.0
      %4200 = vmatpush2.msra.mxu0 0.0
      %4201 = vmatprep.subr.mxu0 0.0
      %4202 = vmatpush2.msra.mxu0 0.0
      %4203 = vmatprep.subr.mxu0 0.0
      %4204 = vmatpush2.msra.mxu0 0.0
      %4205 = vmatprep.mubr.f32.mxu0 0.0
      %4206 = vmatmul.mubr.f32.gmra.mxu0 %v4139
      %v4207 = vpop.f32.mrf.mxu0
      %v4208 = vadd.f32 0.0, %v4207
      %v4209 = vpop.f32.mrf.mxu0
      %4210 = vdwg.mxu0
      %4211 = vrot.lane.b32.xlu0 %v3023, 48
      %v4212 = vpop.permute.xlu0 %4211
      %v4215 = vsel %vm1088, %v4057, 0
      %4217 = vmatprep.subr.mxu0 0.0
      %4218 = vmatpush1.msra.mxu0 0.0
      %4219 = vmatprep.subr.mxu0 0.0
      %4220 = vmatpush1.msra.mxu0 0.0
      %4221 = vmatprep.subr.mxu0 0.0
      %4222 = vmatpush1.msra.mxu0 0.0
      %4223 = vmatprep.subr.mxu0 0.0
      %4224 = vmatpush1.msra.mxu0 0.0
      %4225 = vmatprep.subr.mxu0 0.0
      %4226 = vmatpush1.msra.mxu0 0.0
      %4227 = vmatprep.subr.mxu0 0.0
      %4228 = vmatpush1.msra.mxu0 0.0
      %4229 = vmatprep.subr.mxu0 0.0
      %4230 = vmatpush1.msra.mxu0 0.0
      %4231 = vmatprep.subr.mxu0 0.0
      %4232 = vmatpush1.msra.mxu0 0.0
      %4233 = vmatprep.subr.mxu0 0.0
      %4234 = vmatpush1.msra.mxu0 0.0
      %4235 = vmatprep.subr.mxu0 0.0
      %4236 = vmatpush1.msra.mxu0 0.0
      %4237 = vmatprep.subr.mxu0 0.0
      %4238 = vmatpush1.msra.mxu0 0.0
      %4239 = vmatprep.subr.mxu0 0.0
      %4240 = vmatpush1.msra.mxu0 0.0
      %4241 = vmatprep.subr.mxu0 0.0
      %4242 = vmatpush1.msra.mxu0 0.0
      %4243 = vmatprep.subr.mxu0 0.0
      %4244 = vmatpush1.msra.mxu0 0.0
      %4245 = vmatprep.subr.mxu0 0.0
      %4246 = vmatpush1.msra.mxu0 0.0
      %4247 = vmatprep.subr.mxu0 0.0
      %4248 = vmatpush1.msra.mxu0 %v4212
      %4249 = vmatprep.subr.mxu0 0.0
      %4250 = vmatpush2.msra.mxu0 0.0
      %4251 = vmatprep.subr.mxu0 0.0
      %4252 = vmatpush2.msra.mxu0 0.0
      %4253 = vmatprep.subr.mxu0 0.0
      %4254 = vmatpush2.msra.mxu0 0.0
      %4255 = vmatprep.subr.mxu0 0.0
      %4256 = vmatpush2.msra.mxu0 0.0
      %4257 = vmatprep.subr.mxu0 0.0
      %4258 = vmatpush2.msra.mxu0 0.0
      %4259 = vmatprep.subr.mxu0 0.0
      %4260 = vmatpush2.msra.mxu0 0.0
      %4261 = vmatprep.subr.mxu0 0.0
      %4262 = vmatpush2.msra.mxu0 0.0
      %4263 = vmatprep.subr.mxu0 0.0
      %4264 = vmatpush2.msra.mxu0 0.0
      %4265 = vmatprep.subr.mxu0 0.0
      %4266 = vmatpush2.msra.mxu0 0.0
      %4267 = vmatprep.subr.mxu0 0.0
      %4268 = vmatpush2.msra.mxu0 0.0
      %4269 = vmatprep.subr.mxu0 0.0
      %4270 = vmatpush2.msra.mxu0 0.0
      %4271 = vmatprep.subr.mxu0 0.0
      %4272 = vmatpush2.msra.mxu0 0.0
      %4273 = vmatprep.subr.mxu0 0.0
      %4274 = vmatpush2.msra.mxu0 0.0
      %4275 = vmatprep.subr.mxu0 0.0
      %4276 = vmatpush2.msra.mxu0 0.0
      %4277 = vmatprep.subr.mxu0 0.0
      %4278 = vmatpush2.msra.mxu0 0.0
      %4279 = vmatprep.subr.mxu0 0.0
      %4280 = vmatpush2.msra.mxu0 0.0
      %4281 = vmatprep.mubr.f32.mxu0 0.0
      %4282 = vmatmul.mubr.f32.gmra.mxu0 %v4215
      %v4283 = vpop.f32.mrf.mxu0
      %v4284 = vadd.f32 0.0, %v4283
      %v4285 = vpop.f32.mrf.mxu0
      %4286 = vdwg.mxu0
      %4287 = vrot.lane.b32.xlu0 %v3028, 48
      %v4288 = vpop.permute.xlu0 %4287
      %v4291 = vsel %vm1088, %v4058, 0
      %4293 = vmatprep.subr.mxu0 0.0
      %4294 = vmatpush1.msra.mxu0 0.0
      %4295 = vmatprep.subr.mxu0 0.0
      %4296 = vmatpush1.msra.mxu0 0.0
      %4297 = vmatprep.subr.mxu0 0.0
      %4298 = vmatpush1.msra.mxu0 0.0
      %4299 = vmatprep.subr.mxu0 0.0
      %4300 = vmatpush1.msra.mxu0 0.0
      %4301 = vmatprep.subr.mxu0 0.0
      %4302 = vmatpush1.msra.mxu0 0.0
      %4303 = vmatprep.subr.mxu0 0.0
      %4304 = vmatpush1.msra.mxu0 0.0
      %4305 = vmatprep.subr.mxu0 0.0
      %4306 = vmatpush1.msra.mxu0 0.0
      %4307 = vmatprep.subr.mxu0 0.0
      %4308 = vmatpush1.msra.mxu0 0.0
      %4309 = vmatprep.subr.mxu0 0.0
      %4310 = vmatpush1.msra.mxu0 0.0
      %4311 = vmatprep.subr.mxu0 0.0
      %4312 = vmatpush1.msra.mxu0 0.0
      %4313 = vmatprep.subr.mxu0 0.0
      %4314 = vmatpush1.msra.mxu0 0.0
      %4315 = vmatprep.subr.mxu0 0.0
      %4316 = vmatpush1.msra.mxu0 0.0
      %4317 = vmatprep.subr.mxu0 0.0
      %4318 = vmatpush1.msra.mxu0 0.0
      %4319 = vmatprep.subr.mxu0 0.0
      %4320 = vmatpush1.msra.mxu0 0.0
      %4321 = vmatprep.subr.mxu0 0.0
      %4322 = vmatpush1.msra.mxu0 0.0
      %4323 = vmatprep.subr.mxu0 0.0
      %4324 = vmatpush1.msra.mxu0 %v4288
      %4325 = vmatprep.subr.mxu0 0.0
      %4326 = vmatpush2.msra.mxu0 0.0
      %4327 = vmatprep.subr.mxu0 0.0
      %4328 = vmatpush2.msra.mxu0 0.0
      %4329 = vmatprep.subr.mxu0 0.0
      %4330 = vmatpush2.msra.mxu0 0.0
      %4331 = vmatprep.subr.mxu0 0.0
      %4332 = vmatpush2.msra.mxu0 0.0
      %4333 = vmatprep.subr.mxu0 0.0
      %4334 = vmatpush2.msra.mxu0 0.0
      %4335 = vmatprep.subr.mxu0 0.0
      %4336 = vmatpush2.msra.mxu0 0.0
      %4337 = vmatprep.subr.mxu0 0.0
      %4338 = vmatpush2.msra.mxu0 0.0
      %4339 = vmatprep.subr.mxu0 0.0
      %4340 = vmatpush2.msra.mxu0 0.0
      %4341 = vmatprep.subr.mxu0 0.0
      %4342 = vmatpush2.msra.mxu0 0.0
      %4343 = vmatprep.subr.mxu0 0.0
      %4344 = vmatpush2.msra.mxu0 0.0
      %4345 = vmatprep.subr.mxu0 0.0
      %4346 = vmatpush2.msra.mxu0 0.0
      %4347 = vmatprep.subr.mxu0 0.0
      %4348 = vmatpush2.msra.mxu0 0.0
      %4349 = vmatprep.subr.mxu0 0.0
      %4350 = vmatpush2.msra.mxu0 0.0
      %4351 = vmatprep.subr.mxu0 0.0
      %4352 = vmatpush2.msra.mxu0 0.0
      %4353 = vmatprep.subr.mxu0 0.0
      %4354 = vmatpush2.msra.mxu0 0.0
      %4355 = vmatprep.subr.mxu0 0.0
      %4356 = vmatpush2.msra.mxu0 0.0
      %4357 = vmatprep.mubr.f32.mxu0 0.0
      %4358 = vmatmul.mubr.f32.gmra.mxu0 %v4291
      %v4359 = vpop.f32.mrf.mxu0
      %v4360 = vadd.f32 0.0, %v4359
      %v4361 = vpop.f32.mrf.mxu0
      %4362 = vdwg.mxu0
      %4367 = vrot.lane.b32.xlu0 %v4132, 16
      %v4368 = vpop.permute.xlu0 %4367
      %4369 = vrot.lane.b32.xlu0 %v4208, 16
      %v4370 = vpop.permute.xlu0 %4369
      %4371 = vrot.lane.b32.xlu0 %v4284, 16
      %v4372 = vpop.permute.xlu0 %4371
      %4373 = vrot.lane.b32.xlu0 %v4360, 16
      %v4374 = vpop.permute.xlu0 %4373
      %v4379 = vsel %vm774, %v3464, %v4368
      %v4380 = vsel %vm774, %v3540, %v4370
      %v4381 = vsel %vm774, %v3616, %v4372
      %v4382 = vsel %vm774, %v3692, %v4374
      %s4383 = scalar_lea.vmem %s5, 32
      %v4384 = vld [vmem:[%s4383] sm:$0xff]
      %v4385 = vld [vmem:[%s4383 + $0x8] sm:$0xff]
      %v4386 = vld [vmem:[%s4383 + $0x10] sm:$0xff]
      %v4387 = vld [vmem:[%s4383 + $0x18] sm:$0xff]
      %s4388 = scalar_lea.vmem %s6, 1
      %v4389 = vld [vmem:[%s4388] sm:$0x1]
      %v4391 = vlaneseq
      %v4392 = vshrl.u32 %v4391, 7
      %v4393 = vsub.s32 0, %v4392
      %v4394 = vrot.slane %v4389, %v4393
      %v4397 = vsel %vm654, %v4379, 0
      %v4400 = vsel %vm654, %v4380, 0
      %v4403 = vsel %vm654, %v4381, 0
      %v4406 = vsel %vm654, %v4382, 0
      %4408 = vmatprep.subr.mxu0 0.0
      %4409 = vmatpush1.msra.mxu0 0.0
      %4410 = vmatprep.subr.mxu0 0.0
      %4411 = vmatpush1.msra.mxu0 0.0
      %4412 = vmatprep.subr.mxu0 0.0
      %4413 = vmatpush1.msra.mxu0 0.0
      %4414 = vmatprep.subr.mxu0 0.0
      %4415 = vmatpush1.msra.mxu0 0.0
      %4416 = vmatprep.subr.mxu0 0.0
      %4417 = vmatpush1.msra.mxu0 0.0
      %4418 = vmatprep.subr.mxu0 0.0
      %4419 = vmatpush1.msra.mxu0 0.0
      %4420 = vmatprep.subr.mxu0 0.0
      %4421 = vmatpush1.msra.mxu0 0.0
      %4422 = vmatprep.subr.mxu0 0.0
      %4423 = vmatpush1.msra.mxu0 0.0
      %4424 = vmatprep.subr.mxu0 0.0
      %4425 = vmatpush1.msra.mxu0 0.0
      %4426 = vmatprep.subr.mxu0 0.0
      %4427 = vmatpush1.msra.mxu0 0.0
      %4428 = vmatprep.subr.mxu0 0.0
      %4429 = vmatpush1.msra.mxu0 0.0
      %4430 = vmatprep.subr.mxu0 0.0
      %4431 = vmatpush1.msra.mxu0 0.0
      %4432 = vmatprep.subr.mxu0 0.0
      %4433 = vmatpush1.msra.mxu0 %v4387
      %4434 = vmatprep.subr.mxu0 0.0
      %4435 = vmatpush1.msra.mxu0 %v4386
      %4436 = vmatprep.subr.mxu0 0.0
      %4437 = vmatpush1.msra.mxu0 %v4385
      %4438 = vmatprep.subr.mxu0 0.0
      %4439 = vmatpush1.msra.mxu0 %v4384
      %4440 = vmatprep.subr.mxu0 0.0
      %4441 = vmatpush2.msra.mxu0 0.0
      %4442 = vmatprep.subr.mxu0 0.0
      %4443 = vmatpush2.msra.mxu0 0.0
      %4444 = vmatprep.subr.mxu0 0.0
      %4445 = vmatpush2.msra.mxu0 0.0
      %4446 = vmatprep.subr.mxu0 0.0
      %4447 = vmatpush2.msra.mxu0 0.0
      %4448 = vmatprep.subr.mxu0 0.0
      %4449 = vmatpush2.msra.mxu0 0.0
      %4450 = vmatprep.subr.mxu0 0.0
      %4451 = vmatpush2.msra.mxu0 0.0
      %4452 = vmatprep.subr.mxu0 0.0
      %4453 = vmatpush2.msra.mxu0 0.0
      %4454 = vmatprep.subr.mxu0 0.0
      %4455 = vmatpush2.msra.mxu0 0.0
      %4456 = vmatprep.subr.mxu0 0.0
      %4457 = vmatpush2.msra.mxu0 0.0
      %4458 = vmatprep.subr.mxu0 0.0
      %4459 = vmatpush2.msra.mxu0 0.0
      %4460 = vmatprep.subr.mxu0 0.0
      %4461 = vmatpush2.msra.mxu0 0.0
      %4462 = vmatprep.subr.mxu0 0.0
      %4463 = vmatpush2.msra.mxu0 0.0
      %4464 = vmatprep.subr.mxu0 0.0
      %4465 = vmatpush2.msra.mxu0 0.0
      %4466 = vmatprep.subr.mxu0 0.0
      %4467 = vmatpush2.msra.mxu0 0.0
      %4468 = vmatprep.subr.mxu0 0.0
      %4469 = vmatpush2.msra.mxu0 0.0
      %4470 = vmatprep.subr.mxu0 0.0
      %4471 = vmatpush2.msra.mxu0 0.0
      %4472 = vmatprep.mubr.f32.mxu0 0.0
      %4473 = vmatmul.mubr.f32.gmra.mxu0 %v4397
      %v4474 = vpop.f32.mrf.mxu0
      %v4475 = vadd.f32 %v4394, %v4474
      %v4476 = vpop.f32.mrf.mxu0
      %4477 = vmatprep.mubr.f32.mxu0 0.0
      %4478 = vmatmul.mubr.f32.gmra.mxu0 %v4400
      %v4479 = vpop.f32.mrf.mxu0
      %v4480 = vadd.f32 %v4394, %v4479
      %v4481 = vpop.f32.mrf.mxu0
      %4482 = vmatprep.mubr.f32.mxu0 0.0
      %4483 = vmatmul.mubr.f32.gmra.mxu0 %v4403
      %v4484 = vpop.f32.mrf.mxu0
      %v4485 = vadd.f32 %v4394, %v4484
      %v4486 = vpop.f32.mrf.mxu0
      %4487 = vmatprep.mubr.f32.mxu0 0.0
      %4488 = vmatmul.mubr.f32.gmra.mxu0 %v4406
      %v4489 = vpop.f32.mrf.mxu0
      %v4490 = vadd.f32 %v4394, %v4489
      %v4491 = vpop.f32.mrf.mxu0
      %4492 = vdwg.mxu0
      %v4493 = vadd.f32 %v4475, %v2917
      %v4494 = vadd.f32 %v4480, %v2918
      %v4495 = vadd.f32 %v4485, %v2919
      %v4496 = vadd.f32 %v4490, %v2920
      %s4497 = scalar_lea.vmem %s7, 1
      %v4498 = vld [vmem:[%s4497] sm:$0x1]
      %s4499 = scalar_lea.vmem %s8, 1
      %v4500 = vld [vmem:[%s4499] sm:$0x1]
      %v4501 = vsel %vm654, %v4493, 0.0
      %4502 = vadd.xlane.f32.xlu0 %v4501
      %v4503 = vpop.xlane.xlu0 %4502
      %v4504 = vsel %vm654, %v4494, 0.0
      %4505 = vadd.xlane.f32.xlu0 %v4504
      %v4506 = vpop.xlane.xlu0 %4505
      %v4507 = vsel %vm654, %v4495, 0.0
      %4508 = vadd.xlane.f32.xlu0 %v4507
      %v4509 = vpop.xlane.xlu0 %4508
      %v4510 = vsel %vm654, %v4496, 0.0
      %4511 = vadd.xlane.f32.xlu0 %v4510
      %v4512 = vpop.xlane.xlu0 %4511
      %v4513 = vmul.f32 %v4503, %v2251
      %v4514 = vmul.f32 %v4506, %v2251
      %v4515 = vmul.f32 %v4509, %v2251
      %v4516 = vmul.f32 %v4512, %v2251
      %v4517 = vsub.f32 %v4493, %v4513
      %v4518 = vsub.f32 %v4494, %v4514
      %v4519 = vsub.f32 %v4495, %v4515
      %v4520 = vsub.f32 %v4496, %v4516
      %v4521 = vmul.f32 %v4517, %v4517
      %v4522 = vmul.f32 %v4518, %v4518
      %v4523 = vmul.f32 %v4519, %v4519
      %v4524 = vmul.f32 %v4520, %v4520
      %v4525 = vsel %vm654, %v4521, 0.0
      %4526 = vadd.xlane.f32.xlu0 %v4525
      %v4527 = vpop.xlane.xlu0 %4526
      %v4528 = vsel %vm654, %v4522, 0.0
      %4529 = vadd.xlane.f32.xlu0 %v4528
      %v4530 = vpop.xlane.xlu0 %4529
      %v4531 = vsel %vm654, %v4523, 0.0
      %4532 = vadd.xlane.f32.xlu0 %v4531
      %v4533 = vpop.xlane.xlu0 %4532
      %v4534 = vsel %vm654, %v4524, 0.0
      %4535 = vadd.xlane.f32.xlu0 %v4534
      %v4536 = vpop.xlane.xlu0 %4535
      %v4537 = vmul.f32 %v4527, %v2251
      %v4538 = vmul.f32 %v4530, %v2251
      %v4539 = vmul.f32 %v4533, %v2251
      %v4540 = vmul.f32 %v4536, %v2251
      %v4541 = vadd.f32 %v4537, 1e-05
      %v4542 = vadd.f32 %v4538, 1e-05
      %v4543 = vadd.f32 %v4539, 1e-05
      %v4544 = vadd.f32 %v4540, 1e-05
      %v4545 = vrsqrt.pop %v4541
      %v4546 = vrsqrt.pop %v4542
      %v4547 = vrsqrt.pop %v4543
      %v4548 = vrsqrt.pop %v4544
      %v4549 = vmul.f32 %v4517, %v4545
      %v4550 = vmul.f32 %v4518, %v4546
      %v4551 = vmul.f32 %v4519, %v4547
      %v4552 = vmul.f32 %v4520, %v4548
      %v4554 = vlaneseq
      %v4555 = vshrl.u32 %v4554, 7
      %v4556 = vsub.s32 0, %v4555
      %v4557 = vrot.slane %v4498, %v4556
      %v4559 = vmul.f32 %v4549, %v4557
      %v4560 = vmul.f32 %v4550, %v4557
      %v4561 = vmul.f32 %v4551, %v4557
      %v4562 = vmul.f32 %v4552, %v4557
      %v4564 = vlaneseq
      %v4565 = vshrl.u32 %v4564, 7
      %v4566 = vsub.s32 0, %v4565
      %v4567 = vrot.slane %v4500, %v4566
      %v4569 = vadd.f32 %v4559, %v4567
      %v4570 = vadd.f32 %v4560, %v4567
      %v4571 = vadd.f32 %v4561, %v4567
      %v4572 = vadd.f32 %v4562, %v4567
      %v4573 = vmul.f32 %v4569, %v2315
      %v4574 = vmul.f32 %v4570, %v2320
      %v4575 = vmul.f32 %v4571, %v2325
      %v4576 = vmul.f32 %v4572, %v2330
      %4577 = vst.msk [vmem:[#allocation2 + $0x4] sm:$0xff] %vm654, %v4573
      %4578 = vst.msk [vmem:[#allocation2 + $0x14] sm:$0xff] %vm654, %v4574
      %4579 = vst.msk [vmem:[#allocation2 + $0x24] sm:$0xff] %vm654, %v4575
      %4580 = vst.msk [vmem:[#allocation2 + $0x34] sm:$0xff] %vm654, %v4576
      %v4581 = vld [vmem:[#allocation2] sm:$0xff]
      %v4582 = vld [vmem:[#allocation2 + $0x10] sm:$0xff]
      %v4583 = vld [vmem:[#allocation2 + $0x20] sm:$0xff]
      %v4584 = vld [vmem:[#allocation2 + $0x30] sm:$0xff]
      %v4585 = vld [vmem:[#allocation2 + $0x1] sm:$0xff]
      %v4586 = vld [vmem:[#allocation2 + $0x11] sm:$0xff]
      %v4587 = vld [vmem:[#allocation2 + $0x21] sm:$0xff]
      %v4588 = vld [vmem:[#allocation2 + $0x31] sm:$0xff]
      %v4589 = vld [vmem:[#allocation2 + $0x2] sm:$0xff]
      %v4590 = vld [vmem:[#allocation2 + $0x12] sm:$0xff]
      %v4591 = vld [vmem:[#allocation2 + $0x22] sm:$0xff]
      %v4592 = vld [vmem:[#allocation2 + $0x32] sm:$0xff]
      %v4593 = vld [vmem:[#allocation2 + $0x3] sm:$0xff]
      %v4594 = vld [vmem:[#allocation2 + $0x13] sm:$0xff]
      %v4595 = vld [vmem:[#allocation2 + $0x23] sm:$0xff]
      %v4596 = vld [vmem:[#allocation2 + $0x33] sm:$0xff]
      %v4597 = vld [vmem:[#allocation2 + $0x4] sm:$0xff]
      %v4598 = vld [vmem:[#allocation2 + $0x14] sm:$0xff]
      %v4599 = vld [vmem:[#allocation2 + $0x24] sm:$0xff]
      %v4600 = vld [vmem:[#allocation2 + $0x34] sm:$0xff]
      %v4601 = vld [vmem:[#allocation2 + $0x5] sm:$0xff]
      %v4602 = vld [vmem:[#allocation2 + $0x15] sm:$0xff]
      %v4603 = vld [vmem:[#allocation2 + $0x25] sm:$0xff]
      %v4604 = vld [vmem:[#allocation2 + $0x35] sm:$0xff]
      %v4605 = vld [vmem:[#allocation2 + $0x6] sm:$0xff]
      %v4606 = vld [vmem:[#allocation2 + $0x16] sm:$0xff]
      %v4607 = vld [vmem:[#allocation2 + $0x26] sm:$0xff]
      %v4608 = vld [vmem:[#allocation2 + $0x36] sm:$0xff]
      %v4609 = vld [vmem:[#allocation2 + $0x7] sm:$0xff]
      %v4610 = vld [vmem:[#allocation2 + $0x17] sm:$0xff]
      %v4611 = vld [vmem:[#allocation2 + $0x27] sm:$0xff]
      %v4612 = vld [vmem:[#allocation2 + $0x37] sm:$0xff]
      %v4613 = vld [vmem:[#allocation2 + $0x8] sm:$0xff]
      %v4614 = vld [vmem:[#allocation2 + $0x18] sm:$0xff]
      %v4615 = vld [vmem:[#allocation2 + $0x28] sm:$0xff]
      %v4616 = vld [vmem:[#allocation2 + $0x38] sm:$0xff]
      %4621 = vrot.lane.b32.xlu0 %v4585, 32
      %v4622 = vpop.permute.xlu0 %4621
      %4623 = vrot.lane.b32.xlu0 %v4586, 32
      %v4624 = vpop.permute.xlu0 %4623
      %4625 = vrot.lane.b32.xlu0 %v4587, 32
      %v4626 = vpop.permute.xlu0 %4625
      %4627 = vrot.lane.b32.xlu0 %v4588, 32
      %v4628 = vpop.permute.xlu0 %4627
      %4637 = vrot.lane.b32.xlu0 %v4589, 64
      %v4638 = vpop.permute.xlu0 %4637
      %4639 = vrot.lane.b32.xlu0 %v4590, 64
      %v4640 = vpop.permute.xlu0 %4639
      %4641 = vrot.lane.b32.xlu0 %v4591, 64
      %v4642 = vpop.permute.xlu0 %4641
      %4643 = vrot.lane.b32.xlu0 %v4592, 64
      %v4644 = vpop.permute.xlu0 %4643
      %4653 = vrot.lane.b32.xlu0 %v4593, 96
      %v4654 = vpop.permute.xlu0 %4653
      %4655 = vrot.lane.b32.xlu0 %v4594, 96
      %v4656 = vpop.permute.xlu0 %4655
      %4657 = vrot.lane.b32.xlu0 %v4595, 96
      %v4658 = vpop.permute.xlu0 %4657
      %4659 = vrot.lane.b32.xlu0 %v4596, 96
      %v4660 = vpop.permute.xlu0 %4659
      %4669 = vrot.lane.b32.xlu0 %v4601, 32
      %v4670 = vpop.permute.xlu0 %4669
      %4671 = vrot.lane.b32.xlu0 %v4602, 32
      %v4672 = vpop.permute.xlu0 %4671
      %4673 = vrot.lane.b32.xlu0 %v4603, 32
      %v4674 = vpop.permute.xlu0 %4673
      %4675 = vrot.lane.b32.xlu0 %v4604, 32
      %v4676 = vpop.permute.xlu0 %4675
      %4685 = vrot.lane.b32.xlu0 %v4605, 64
      %v4686 = vpop.permute.xlu0 %4685
      %4687 = vrot.lane.b32.xlu0 %v4606, 64
      %v4688 = vpop.permute.xlu0 %4687
      %4689 = vrot.lane.b32.xlu0 %v4607, 64
      %v4690 = vpop.permute.xlu0 %4689
      %4691 = vrot.lane.b32.xlu0 %v4608, 64
      %v4692 = vpop.permute.xlu0 %4691
      %4701 = vrot.lane.b32.xlu0 %v4609, 96
      %v4702 = vpop.permute.xlu0 %4701
      %4703 = vrot.lane.b32.xlu0 %v4610, 96
      %v4704 = vpop.permute.xlu0 %4703
      %4705 = vrot.lane.b32.xlu0 %v4611, 96
      %v4706 = vpop.permute.xlu0 %4705
      %4707 = vrot.lane.b32.xlu0 %v4612, 96
      %v4708 = vpop.permute.xlu0 %4707
      %v4713 = vsel %vm654, %v4581, %v4622
      %v4714 = vsel %vm654, %v4582, %v4624
      %v4715 = vsel %vm654, %v4583, %v4626
      %v4716 = vsel %vm654, %v4584, %v4628
      %v4717 = vsel %vm2476, %v4713, %v4638
      %v4718 = vsel %vm2476, %v4714, %v4640
      %v4719 = vsel %vm2476, %v4715, %v4642
      %v4720 = vsel %vm2476, %v4716, %v4644
      %v4721 = vsel %vm2481, %v4717, %v4654
      %v4722 = vsel %vm2481, %v4718, %v4656
      %v4723 = vsel %vm2481, %v4719, %v4658
      %v4724 = vsel %vm2481, %v4720, %v4660
      %v4725 = vsel %vm654, %v4597, %v4670
      %v4726 = vsel %vm654, %v4598, %v4672
      %v4727 = vsel %vm654, %v4599, %v4674
      %v4728 = vsel %vm654, %v4600, %v4676
      %v4729 = vsel %vm2476, %v4725, %v4686
      %v4730 = vsel %vm2476, %v4726, %v4688
      %v4731 = vsel %vm2476, %v4727, %v4690
      %v4732 = vsel %vm2476, %v4728, %v4692
      %v4733 = vsel %vm2481, %v4729, %v4702
      %v4734 = vsel %vm2481, %v4730, %v4704
      %v4735 = vsel %vm2481, %v4731, %v4706
      %v4736 = vsel %vm2481, %v4732, %v4708
      %s4737 = scalar_lea.vmem %s9, 288
      %v4738 = vld [vmem:[%s4737] sm:$0xff]
      %v4739 = vld [vmem:[%s4737 + $0x8] sm:$0xff]
      %v4740 = vld [vmem:[%s4737 + $0x10] sm:$0xff]
      %v4741 = vld [vmem:[%s4737 + $0x18] sm:$0xff]
      %v4742 = vld [vmem:[%s4737 + $0x20] sm:$0xff]
      %v4743 = vld [vmem:[%s4737 + $0x28] sm:$0xff]
      %v4744 = vld [vmem:[%s4737 + $0x30] sm:$0xff]
      %v4745 = vld [vmem:[%s4737 + $0x38] sm:$0xff]
      %v4746 = vld [vmem:[%s4737 + $0x40] sm:$0xff]
      %v4747 = vld [vmem:[%s4737 + $0x48] sm:$0xff]
      %v4748 = vld [vmem:[%s4737 + $0x50] sm:$0xff]
      %v4749 = vld [vmem:[%s4737 + $0x58] sm:$0xff]
      %v4750 = vld [vmem:[%s4737 + $0x60] sm:$0xff]
      %v4751 = vld [vmem:[%s4737 + $0x68] sm:$0xff]
      %v4752 = vld [vmem:[%s4737 + $0x70] sm:$0xff]
      %v4753 = vld [vmem:[%s4737 + $0x78] sm:$0xff]
      %v4754 = vld [vmem:[%s4737 + $0x80] sm:$0xff]
      %v4755 = vld [vmem:[%s4737 + $0x88] sm:$0xff]
      %v4756 = vld [vmem:[%s4737 + $0x90] sm:$0xff]
      %v4757 = vld [vmem:[%s4737 + $0x98] sm:$0xff]
      %v4758 = vld [vmem:[%s4737 + $0xa0] sm:$0xff]
      %v4759 = vld [vmem:[%s4737 + $0xa8] sm:$0xff]
      %v4760 = vld [vmem:[%s4737 + $0xb0] sm:$0xff]
      %v4761 = vld [vmem:[%s4737 + $0xb8] sm:$0xff]
      %v4762 = vld [vmem:[%s4737 + $0xc0] sm:$0xff]
      %v4763 = vld [vmem:[%s4737 + $0xc8] sm:$0xff]
      %v4764 = vld [vmem:[%s4737 + $0xd0] sm:$0xff]
      %v4765 = vld [vmem:[%s4737 + $0xd8] sm:$0xff]
      %v4766 = vld [vmem:[%s4737 + $0xe0] sm:$0xff]
      %v4767 = vld [vmem:[%s4737 + $0xe8] sm:$0xff]
      %v4768 = vld [vmem:[%s4737 + $0xf0] sm:$0xff]
      %v4769 = vld [vmem:[%s4737 + $0xf8] sm:$0xff]
      %v4770 = vld [vmem:[%s4737 + $0x100] sm:$0xff]
      %v4771 = vld [vmem:[%s4737 + $0x108] sm:$0xff]
      %v4772 = vld [vmem:[%s4737 + $0x110] sm:$0xff]
      %v4773 = vld [vmem:[%s4737 + $0x118] sm:$0xff]
      %s4774 = scalar_lea.vmem %s10, 1
      %v4775 = vld [vmem:[%s4774] sm:$0x1]
      %v4777 = vlaneseq
      %v4778 = vshrl.u32 %v4777, 7
      %v4779 = vsub.s32 0, %v4778
      %v4780 = vrot.slane %v4775, %v4779
      %v4783 = vsel %vm654, %v4613, 0
      %v4786 = vsel %vm654, %v4614, 0
      %v4789 = vsel %vm654, %v4615, 0
      %v4792 = vsel %vm654, %v4616, 0
      %4794 = vmatprep.subr.mxu0 0.0
      %4795 = vmatpush1.msra.mxu0 %v4753
      %4796 = vmatprep.subr.mxu0 0.0
      %4797 = vmatpush1.msra.mxu0 %v4752
      %4798 = vmatprep.subr.mxu0 0.0
      %4799 = vmatpush1.msra.mxu0 %v4751
      %4800 = vmatprep.subr.mxu0 0.0
      %4801 = vmatpush1.msra.mxu0 %v4750
      %4802 = vmatprep.subr.mxu0 0.0
      %4803 = vmatpush1.msra.mxu0 %v4749
      %4804 = vmatprep.subr.mxu0 0.0
      %4805 = vmatpush1.msra.mxu0 %v4748
      %4806 = vmatprep.subr.mxu0 0.0
      %4807 = vmatpush1.msra.mxu0 %v4747
      %4808 = vmatprep.subr.mxu0 0.0
      %4809 = vmatpush1.msra.mxu0 %v4746
      %4810 = vmatprep.subr.mxu0 0.0
      %4811 = vmatpush1.msra.mxu0 %v4745
      %4812 = vmatprep.subr.mxu0 0.0
      %4813 = vmatpush1.msra.mxu0 %v4744
      %4814 = vmatprep.subr.mxu0 0.0
      %4815 = vmatpush1.msra.mxu0 %v4743
      %4816 = vmatprep.subr.mxu0 0.0
      %4817 = vmatpush1.msra.mxu0 %v4742
      %4818 = vmatprep.subr.mxu0 0.0
      %4819 = vmatpush1.msra.mxu0 %v4741
      %4820 = vmatprep.subr.mxu0 0.0
      %4821 = vmatpush1.msra.mxu0 %v4740
      %4822 = vmatprep.subr.mxu0 0.0
      %4823 = vmatpush1.msra.mxu0 %v4739
      %4824 = vmatprep.subr.mxu0 0.0
      %4825 = vmatpush1.msra.mxu0 %v4738
      %4826 = vmatprep.subr.mxu0 0.0
      %4827 = vmatpush2.msra.mxu0 %v4769
      %4828 = vmatprep.subr.mxu0 0.0
      %4829 = vmatpush2.msra.mxu0 %v4768
      %4830 = vmatprep.subr.mxu0 0.0
      %4831 = vmatpush2.msra.mxu0 %v4767
      %4832 = vmatprep.subr.mxu0 0.0
      %4833 = vmatpush2.msra.mxu0 %v4766
      %4834 = vmatprep.subr.mxu0 0.0
      %4835 = vmatpush2.msra.mxu0 %v4765
      %4836 = vmatprep.subr.mxu0 0.0
      %4837 = vmatpush2.msra.mxu0 %v4764
      %4838 = vmatprep.subr.mxu0 0.0
      %4839 = vmatpush2.msra.mxu0 %v4763
      %4840 = vmatprep.subr.mxu0 0.0
      %4841 = vmatpush2.msra.mxu0 %v4762
      %4842 = vmatprep.subr.mxu0 0.0
      %4843 = vmatpush2.msra.mxu0 %v4761
      %4844 = vmatprep.subr.mxu0 0.0
      %4845 = vmatpush2.msra.mxu0 %v4760
      %4846 = vmatprep.subr.mxu0 0.0
      %4847 = vmatpush2.msra.mxu0 %v4759
      %4848 = vmatprep.subr.mxu0 0.0
      %4849 = vmatpush2.msra.mxu0 %v4758
      %4850 = vmatprep.subr.mxu0 0.0
      %4851 = vmatpush2.msra.mxu0 %v4757
      %4852 = vmatprep.subr.mxu0 0.0
      %4853 = vmatpush2.msra.mxu0 %v4756
      %4854 = vmatprep.subr.mxu0 0.0
      %4855 = vmatpush2.msra.mxu0 %v4755
      %4856 = vmatprep.subr.mxu0 0.0
      %4857 = vmatpush2.msra.mxu0 %v4754
      %4858 = vmatprep.mubr.f32.mxu0 %v4733
      %4859 = vmatmul.mubr.f32.gmra.mxu0 %v4721
      %v4860 = vpop.f32.mrf.mxu0
      %v4861 = vadd.f32 %v4780, %v4860
      %v4862 = vpop.f32.mrf.mxu0
      %4863 = vmatprep.mubr.f32.mxu0 %v4734
      %4864 = vmatmul.mubr.f32.gmra.mxu0 %v4722
      %v4865 = vpop.f32.mrf.mxu0
      %v4866 = vadd.f32 %v4780, %v4865
      %v4867 = vpop.f32.mrf.mxu0
      %4868 = vmatprep.mubr.f32.mxu0 %v4735
      %4869 = vmatmul.mubr.f32.gmra.mxu0 %v4723
      %v4870 = vpop.f32.mrf.mxu0
      %v4871 = vadd.f32 %v4780, %v4870
      %v4872 = vpop.f32.mrf.mxu0
      %4873 = vmatprep.mubr.f32.mxu0 %v4736
      %4874 = vmatmul.mubr.f32.gmra.mxu0 %v4724
      %v4875 = vpop.f32.mrf.mxu0
      %v4876 = vadd.f32 %v4780, %v4875
      %v4877 = vpop.f32.mrf.mxu0
      %4878 = vdwg.mxu0
      %4879 = vmatprep.subr.mxu0 0.0
      %4880 = vmatpush1.msra.mxu0 0.0
      %4881 = vmatprep.subr.mxu0 0.0
      %4882 = vmatpush1.msra.mxu0 0.0
      %4883 = vmatprep.subr.mxu0 0.0
      %4884 = vmatpush1.msra.mxu0 0.0
      %4885 = vmatprep.subr.mxu0 0.0
      %4886 = vmatpush1.msra.mxu0 0.0
      %4887 = vmatprep.subr.mxu0 0.0
      %4888 = vmatpush1.msra.mxu0 0.0
      %4889 = vmatprep.subr.mxu0 0.0
      %4890 = vmatpush1.msra.mxu0 0.0
      %4891 = vmatprep.subr.mxu0 0.0
      %4892 = vmatpush1.msra.mxu0 0.0
      %4893 = vmatprep.subr.mxu0 0.0
      %4894 = vmatpush1.msra.mxu0 0.0
      %4895 = vmatprep.subr.mxu0 0.0
      %4896 = vmatpush1.msra.mxu0 0.0
      %4897 = vmatprep.subr.mxu0 0.0
      %4898 = vmatpush1.msra.mxu0 0.0
      %4899 = vmatprep.subr.mxu0 0.0
      %4900 = vmatpush1.msra.mxu0 0.0
      %4901 = vmatprep.subr.mxu0 0.0
      %4902 = vmatpush1.msra.mxu0 0.0
      %4903 = vmatprep.subr.mxu0 0.0
      %4904 = vmatpush1.msra.mxu0 %v4773
      %4905 = vmatprep.subr.mxu0 0.0
      %4906 = vmatpush1.msra.mxu0 %v4772
      %4907 = vmatprep.subr.mxu0 0.0
      %4908 = vmatpush1.msra.mxu0 %v4771
      %4909 = vmatprep.subr.mxu0 0.0
      %4910 = vmatpush1.msra.mxu0 %v4770
      %4911 = vmatprep.subr.mxu0 0.0
      %4912 = vmatpush2.msra.mxu0 0.0
      %4913 = vmatprep.subr.mxu0 0.0
      %4914 = vmatpush2.msra.mxu0 0.0
      %4915 = vmatprep.subr.mxu0 0.0
      %4916 = vmatpush2.msra.mxu0 0.0
      %4917 = vmatprep.subr.mxu0 0.0
      %4918 = vmatpush2.msra.mxu0 0.0
      %4919 = vmatprep.subr.mxu0 0.0
      %4920 = vmatpush2.msra.mxu0 0.0
      %4921 = vmatprep.subr.mxu0 0.0
      %4922 = vmatpush2.msra.mxu0 0.0
      %4923 = vmatprep.subr.mxu0 0.0
      %4924 = vmatpush2.msra.mxu0 0.0
      %4925 = vmatprep.subr.mxu0 0.0
      %4926 = vmatpush2.msra.mxu0 0.0
      %4927 = vmatprep.subr.mxu0 0.0
      %4928 = vmatpush2.msra.mxu0 0.0
      %4929 = vmatprep.subr.mxu0 0.0
      %4930 = vmatpush2.msra.mxu0 0.0
      %4931 = vmatprep.subr.mxu0 0.0
      %4932 = vmatpush2.msra.mxu0 0.0
      %4933 = vmatprep.subr.mxu0 0.0
      %4934 = vmatpush2.msra.mxu0 0.0
      %4935 = vmatprep.subr.mxu0 0.0
      %4936 = vmatpush2.msra.mxu0 0.0
      %4937 = vmatprep.subr.mxu0 0.0
      %4938 = vmatpush2.msra.mxu0 0.0
      %4939 = vmatprep.subr.mxu0 0.0
      %4940 = vmatpush2.msra.mxu0 0.0
      %4941 = vmatprep.subr.mxu0 0.0
      %4942 = vmatpush2.msra.mxu0 0.0
      %4943 = vmatprep.mubr.f32.mxu0 0.0
      %4944 = vmatmul.mubr.f32.gmra.mxu0 %v4783
      %v4945 = vpop.f32.mrf.mxu0
      %v4946 = vadd.f32 %v4861, %v4945
      %v4947 = vpop.f32.mrf.mxu0
      %4948 = vmatprep.mubr.f32.mxu0 0.0
      %4949 = vmatmul.mubr.f32.gmra.mxu0 %v4786
      %v4950 = vpop.f32.mrf.mxu0
      %v4951 = vadd.f32 %v4866, %v4950
      %v4952 = vpop.f32.mrf.mxu0
      %4953 = vmatprep.mubr.f32.mxu0 0.0
      %4954 = vmatmul.mubr.f32.gmra.mxu0 %v4789
      %v4955 = vpop.f32.mrf.mxu0
      %v4956 = vadd.f32 %v4871, %v4955
      %v4957 = vpop.f32.mrf.mxu0
      %4958 = vmatprep.mubr.f32.mxu0 0.0
      %4959 = vmatmul.mubr.f32.gmra.mxu0 %v4792
      %v4960 = vpop.f32.mrf.mxu0
      %v4961 = vadd.f32 %v4876, %v4960
      %v4962 = vpop.f32.mrf.mxu0
      %4963 = vdwg.mxu0
      %v4964 = vmax.f32 %v4946, 0.0
      %v4965 = vmax.f32 %v4951, 0.0
      %v4966 = vmax.f32 %v4956, 0.0
      %v4967 = vmax.f32 %v4961, 0.0
      %s4968 = scalar_lea.vmem %s11, 64
      %v4969 = vld [vmem:[%s4968] sm:$0xff]
      %v4970 = vld [vmem:[%s4968 + $0x8] sm:$0xff]
      %v4971 = vld [vmem:[%s4968 + $0x10] sm:$0xff]
      %v4972 = vld [vmem:[%s4968 + $0x18] sm:$0xff]
      %v4973 = vld [vmem:[%s4968 + $0x20] sm:$0xff]
      %v4974 = vld [vmem:[%s4968 + $0x28] sm:$0xff]
      %v4975 = vld [vmem:[%s4968 + $0x30] sm:$0xff]
      %v4976 = vld [vmem:[%s4968 + $0x38] sm:$0xff]
      %s4977 = scalar_lea.vmem %s12, 1
      %v4978 = vld [vmem:[%s4977] sm:$0x1]
      %v4980 = vlaneseq
      %v4981 = vshrl.u32 %v4980, 7
      %v4982 = vsub.s32 0, %v4981
      %v4983 = vrot.slane %v4978, %v4982
      %v4986 = vsel %vm2476, %v4964, 0
      %v4989 = vsel %vm2476, %v4965, 0
      %v4992 = vsel %vm2476, %v4966, 0
      %v4995 = vsel %vm2476, %v4967, 0
      %4997 = vmatprep.subr.mxu0 0.0
      %4998 = vmatpush1.msra.mxu0 0.0
      %4999 = vmatprep.subr.mxu0 0.0
      %5000 = vmatpush1.msra.mxu0 0.0
      %5001 = vmatprep.subr.mxu0 0.0
      %5002 = vmatpush1.msra.mxu0 0.0
      %5003 = vmatprep.subr.mxu0 0.0
      %5004 = vmatpush1.msra.mxu0 0.0
      %5005 = vmatprep.subr.mxu0 0.0
      %5006 = vmatpush1.msra.mxu0 0.0
      %5007 = vmatprep.subr.mxu0 0.0
      %5008 = vmatpush1.msra.mxu0 0.0
      %5009 = vmatprep.subr.mxu0 0.0
      %5010 = vmatpush1.msra.mxu0 0.0
      %5011 = vmatprep.subr.mxu0 0.0
      %5012 = vmatpush1.msra.mxu0 0.0
      %5013 = vmatprep.subr.mxu0 0.0
      %5014 = vmatpush1.msra.mxu0 %v4976
      %5015 = vmatprep.subr.mxu0 0.0
      %5016 = vmatpush1.msra.mxu0 %v4975
      %5017 = vmatprep.subr.mxu0 0.0
      %5018 = vmatpush1.msra.mxu0 %v4974
      %5019 = vmatprep.subr.mxu0 0.0
      %5020 = vmatpush1.msra.mxu0 %v4973
      %5021 = vmatprep.subr.mxu0 0.0
      %5022 = vmatpush1.msra.mxu0 %v4972
      %5023 = vmatprep.subr.mxu0 0.0
      %5024 = vmatpush1.msra.mxu0 %v4971
      %5025 = vmatprep.subr.mxu0 0.0
      %5026 = vmatpush1.msra.mxu0 %v4970
      %5027 = vmatprep.subr.mxu0 0.0
      %5028 = vmatpush1.msra.mxu0 %v4969
      %5029 = vmatprep.subr.mxu0 0.0
      %5030 = vmatpush2.msra.mxu0 0.0
      %5031 = vmatprep.subr.mxu0 0.0
      %5032 = vmatpush2.msra.mxu0 0.0
      %5033 = vmatprep.subr.mxu0 0.0
      %5034 = vmatpush2.msra.mxu0 0.0
      %5035 = vmatprep.subr.mxu0 0.0
      %5036 = vmatpush2.msra.mxu0 0.0
      %5037 = vmatprep.subr.mxu0 0.0
      %5038 = vmatpush2.msra.mxu0 0.0
      %5039 = vmatprep.subr.mxu0 0.0
      %5040 = vmatpush2.msra.mxu0 0.0
      %5041 = vmatprep.subr.mxu0 0.0
      %5042 = vmatpush2.msra.mxu0 0.0
      %5043 = vmatprep.subr.mxu0 0.0
      %5044 = vmatpush2.msra.mxu0 0.0
      %5045 = vmatprep.subr.mxu0 0.0
      %5046 = vmatpush2.msra.mxu0 0.0
      %5047 = vmatprep.subr.mxu0 0.0
      %5048 = vmatpush2.msra.mxu0 0.0
      %5049 = vmatprep.subr.mxu0 0.0
      %5050 = vmatpush2.msra.mxu0 0.0
      %5051 = vmatprep.subr.mxu0 0.0
      %5052 = vmatpush2.msra.mxu0 0.0
      %5053 = vmatprep.subr.mxu0 0.0
      %5054 = vmatpush2.msra.mxu0 0.0
      %5055 = vmatprep.subr.mxu0 0.0
      %5056 = vmatpush2.msra.mxu0 0.0
      %5057 = vmatprep.subr.mxu0 0.0
      %5058 = vmatpush2.msra.mxu0 0.0
      %5059 = vmatprep.subr.mxu0 0.0
      %5060 = vmatpush2.msra.mxu0 0.0
      %5061 = vmatprep.mubr.f32.mxu0 0.0
      %5062 = vmatmul.mubr.f32.gmra.mxu0 %v4986
      %v5063 = vpop.f32.mrf.mxu0
      %v5064 = vadd.f32 %v4983, %v5063
      %v5065 = vpop.f32.mrf.mxu0
      %5066 = vmatprep.mubr.f32.mxu0 0.0
      %5067 = vmatmul.mubr.f32.gmra.mxu0 %v4989
      %v5068 = vpop.f32.mrf.mxu0
      %v5069 = vadd.f32 %v4983, %v5068
      %v5070 = vpop.f32.mrf.mxu0
      %5071 = vmatprep.mubr.f32.mxu0 0.0
      %5072 = vmatmul.mubr.f32.gmra.mxu0 %v4992
      %v5073 = vpop.f32.mrf.mxu0
      %v5074 = vadd.f32 %v4983, %v5073
      %v5075 = vpop.f32.mrf.mxu0
      %5076 = vmatprep.mubr.f32.mxu0 0.0
      %5077 = vmatmul.mubr.f32.gmra.mxu0 %v4995
      %v5078 = vpop.f32.mrf.mxu0
      %v5079 = vadd.f32 %v4983, %v5078
      %v5080 = vpop.f32.mrf.mxu0
      %5081 = vdwg.mxu0
      %v5082 = vadd.f32 %v5064, %v4573
      %v5083 = vadd.f32 %v5069, %v4574
      %v5084 = vadd.f32 %v5074, %v4575
      %v5085 = vadd.f32 %v5079, %v4576
      %s5086 = scalar_lea.vmem %s13, 1
      %v5087 = vld [vmem:[%s5086] sm:$0x1]
      %s5088 = scalar_lea.vmem %s14, 1
      %v5089 = vld [vmem:[%s5088] sm:$0x1]
      %v5090 = vsel %vm654, %v5082, 0.0
      %5091 = vadd.xlane.f32.xlu0 %v5090
      %v5092 = vpop.xlane.xlu0 %5091
      %v5093 = vsel %vm654, %v5083, 0.0
      %5094 = vadd.xlane.f32.xlu0 %v5093
      %v5095 = vpop.xlane.xlu0 %5094
      %v5096 = vsel %vm654, %v5084, 0.0
      %5097 = vadd.xlane.f32.xlu0 %v5096
      %v5098 = vpop.xlane.xlu0 %5097
      %v5099 = vsel %vm654, %v5085, 0.0
      %5100 = vadd.xlane.f32.xlu0 %v5099
      %v5101 = vpop.xlane.xlu0 %5100
      %v5102 = vmul.f32 %v5092, %v2251
      %v5103 = vmul.f32 %v5095, %v2251
      %v5104 = vmul.f32 %v5098, %v2251
      %v5105 = vmul.f32 %v5101, %v2251
      %v5106 = vsub.f32 %v5082, %v5102
      %v5107 = vsub.f32 %v5083, %v5103
      %v5108 = vsub.f32 %v5084, %v5104
      %v5109 = vsub.f32 %v5085, %v5105
      %v5110 = vmul.f32 %v5106, %v5106
      %v5111 = vmul.f32 %v5107, %v5107
      %v5112 = vmul.f32 %v5108, %v5108
      %v5113 = vmul.f32 %v5109, %v5109
      %v5114 = vsel %vm654, %v5110, 0.0
      %5115 = vadd.xlane.f32.xlu0 %v5114
      %v5116 = vpop.xlane.xlu0 %5115
      %v5117 = vsel %vm654, %v5111, 0.0
      %5118 = vadd.xlane.f32.xlu0 %v5117
      %v5119 = vpop.xlane.xlu0 %5118
      %v5120 = vsel %vm654, %v5112, 0.0
      %5121 = vadd.xlane.f32.xlu0 %v5120
      %v5122 = vpop.xlane.xlu0 %5121
      %v5123 = vsel %vm654, %v5113, 0.0
      %5124 = vadd.xlane.f32.xlu0 %v5123
      %v5125 = vpop.xlane.xlu0 %5124
      %v5126 = vmul.f32 %v5116, %v2251
      %v5127 = vmul.f32 %v5119, %v2251
      %v5128 = vmul.f32 %v5122, %v2251
      %v5129 = vmul.f32 %v5125, %v2251
      %v5130 = vadd.f32 %v5126, 1e-05
      %v5131 = vadd.f32 %v5127, 1e-05
      %v5132 = vadd.f32 %v5128, 1e-05
      %v5133 = vadd.f32 %v5129, 1e-05
      %v5134 = vrsqrt.pop %v5130
      %v5135 = vrsqrt.pop %v5131
      %v5136 = vrsqrt.pop %v5132
      %v5137 = vrsqrt.pop %v5133
      %v5138 = vmul.f32 %v5106, %v5134
      %v5139 = vmul.f32 %v5107, %v5135
      %v5140 = vmul.f32 %v5108, %v5136
      %v5141 = vmul.f32 %v5109, %v5137
      %v5143 = vlaneseq
      %v5144 = vshrl.u32 %v5143, 7
      %v5145 = vsub.s32 0, %v5144
      %v5146 = vrot.slane %v5087, %v5145
      %v5148 = vmul.f32 %v5138, %v5146
      %v5149 = vmul.f32 %v5139, %v5146
      %v5150 = vmul.f32 %v5140, %v5146
      %v5151 = vmul.f32 %v5141, %v5146
      %v5153 = vlaneseq
      %v5154 = vshrl.u32 %v5153, 7
      %v5155 = vsub.s32 0, %v5154
      %v5156 = vrot.slane %v5089, %v5155
      %v5158 = vadd.f32 %v5148, %v5156
      %v5159 = vadd.f32 %v5149, %v5156
      %v5160 = vadd.f32 %v5150, %v5156
      %v5161 = vadd.f32 %v5151, %v5156
      %v5162 = vmul.f32 %v5158, %v2315
      %v5163 = vmul.f32 %v5159, %v2320
      %v5164 = vmul.f32 %v5160, %v2325
      %v5165 = vmul.f32 %v5161, %v2330
      %v5166 = vld [vmem:[%s15] sm:$0xff]
      %v5167 = vld [vmem:[%s15 + $0x8] sm:$0xff]
      %v5168 = vld [vmem:[%s15 + $0x10] sm:$0xff]
      %v5169 = vld [vmem:[%s15 + $0x18] sm:$0xff]
      %v5170 = vld [vmem:[#allocation3] sm:$0x1]
      %v5172 = vlaneseq
      %v5173 = vshrl.u32 %v5172, 7
      %v5174 = vsub.s32 0, %v5173
      %v5175 = vrot.slane %v5170, %v5174
      %v5178 = vsel %vm654, %v5162, 0
      %v5181 = vsel %vm654, %v5163, 0
      %v5184 = vsel %vm654, %v5164, 0
      %v5187 = vsel %vm654, %v5165, 0
      %5189 = vmatprep.subr.mxu0 0.0
      %5190 = vmatpush1.msra.mxu0 0.0
      %5191 = vmatprep.subr.mxu0 0.0
      %5192 = vmatpush1.msra.mxu0 0.0
      %5193 = vmatprep.subr.mxu0 0.0
      %5194 = vmatpush1.msra.mxu0 0.0
      %5195 = vmatprep.subr.mxu0 0.0
      %5196 = vmatpush1.msra.mxu0 0.0
      %5197 = vmatprep.subr.mxu0 0.0
      %5198 = vmatpush1.msra.mxu0 0.0
      %5199 = vmatprep.subr.mxu0 0.0
      %5200 = vmatpush1.msra.mxu0 0.0
      %5201 = vmatprep.subr.mxu0 0.0
      %5202 = vmatpush1.msra.mxu0 0.0
      %5203 = vmatprep.subr.mxu0 0.0
      %5204 = vmatpush1.msra.mxu0 0.0
      %5205 = vmatprep.subr.mxu0 0.0
      %5206 = vmatpush1.msra.mxu0 0.0
      %5207 = vmatprep.subr.mxu0 0.0
      %5208 = vmatpush1.msra.mxu0 0.0
      %5209 = vmatprep.subr.mxu0 0.0
      %5210 = vmatpush1.msra.mxu0 0.0
      %5211 = vmatprep.subr.mxu0 0.0
      %5212 = vmatpush1.msra.mxu0 0.0
      %5213 = vmatprep.subr.mxu0 0.0
      %5214 = vmatpush1.msra.mxu0 %v5169
      %5215 = vmatprep.subr.mxu0 0.0
      %5216 = vmatpush1.msra.mxu0 %v5168
      %5217 = vmatprep.subr.mxu0 0.0
      %5218 = vmatpush1.msra.mxu0 %v5167
      %5219 = vmatprep.subr.mxu0 0.0
      %5220 = vmatpush1.msra.mxu0 %v5166
      %5221 = vmatprep.subr.mxu0 0.0
      %5222 = vmatpush2.msra.mxu0 0.0
      %5223 = vmatprep.subr.mxu0 0.0
      %5224 = vmatpush2.msra.mxu0 0.0
      %5225 = vmatprep.subr.mxu0 0.0
      %5226 = vmatpush2.msra.mxu0 0.0
      %5227 = vmatprep.subr.mxu0 0.0
      %5228 = vmatpush2.msra.mxu0 0.0
      %5229 = vmatprep.subr.mxu0 0.0
      %5230 = vmatpush2.msra.mxu0 0.0
      %5231 = vmatprep.subr.mxu0 0.0
      %5232 = vmatpush2.msra.mxu0 0.0
      %5233 = vmatprep.subr.mxu0 0.0
      %5234 = vmatpush2.msra.mxu0 0.0
      %5235 = vmatprep.subr.mxu0 0.0
      %5236 = vmatpush2.msra.mxu0 0.0
      %5237 = vmatprep.subr.mxu0 0.0
      %5238 = vmatpush2.msra.mxu0 0.0
      %5239 = vmatprep.subr.mxu0 0.0
      %5240 = vmatpush2.msra.mxu0 0.0
      %5241 = vmatprep.subr.mxu0 0.0
      %5242 = vmatpush2.msra.mxu0 0.0
      %5243 = vmatprep.subr.mxu0 0.0
      %5244 = vmatpush2.msra.mxu0 0.0
      %5245 = vmatprep.subr.mxu0 0.0
      %5246 = vmatpush2.msra.mxu0 0.0
      %5247 = vmatprep.subr.mxu0 0.0
      %5248 = vmatpush2.msra.mxu0 0.0
      %5249 = vmatprep.subr.mxu0 0.0
      %5250 = vmatpush2.msra.mxu0 0.0
      %5251 = vmatprep.subr.mxu0 0.0
      %5252 = vmatpush2.msra.mxu0 0.0
      %5253 = vmatprep.mubr.f32.mxu0 0.0
      %5254 = vmatmul.mubr.f32.gmra.mxu0 %v5178
      %v5255 = vpop.f32.mrf.mxu0
      %v5256 = vadd.f32 %v5175, %v5255
      %v5257 = vpop.f32.mrf.mxu0
      %5258 = vmatprep.mubr.f32.mxu0 0.0
      %5259 = vmatmul.mubr.f32.gmra.mxu0 %v5181
      %v5260 = vpop.f32.mrf.mxu0
      %v5261 = vadd.f32 %v5175, %v5260
      %v5262 = vpop.f32.mrf.mxu0
      %5263 = vmatprep.mubr.f32.mxu0 0.0
      %5264 = vmatmul.mubr.f32.gmra.mxu0 %v5184
      %v5265 = vpop.f32.mrf.mxu0
      %v5266 = vadd.f32 %v5175, %v5265
      %v5267 = vpop.f32.mrf.mxu0
      %5268 = vmatprep.mubr.f32.mxu0 0.0
      %5269 = vmatmul.mubr.f32.gmra.mxu0 %v5187
      %v5270 = vpop.f32.mrf.mxu0
      %v5271 = vadd.f32 %v5175, %v5270
      %v5272 = vpop.f32.mrf.mxu0
      %5273 = vdwg.mxu0
      %v5274 = vmul.f32 %v5256, %v614
      %v5275 = vmul.f32 %v5261, %v615
      %v5276 = vmul.f32 %v5266, %v616
      %v5277 = vmul.f32 %v5271, %v617
      %vm5278 = vcmask 7168
      %5279 = vst.msk [vmem:[%s571] sm:$0xff] %vm5278, %v5274
      %5280 = vst.msk [vmem:[%s571 + $0x8] sm:$0xff] %vm5278, %v5275
      %5281 = vst.msk [vmem:[%s571 + $0x10] sm:$0xff] %vm5278, %v5276
      %5282 = vst.msk [vmem:[%s571 + $0x18] sm:$0xff] %vm5278, %v5277
      %s5283 = smul.u32 4, %s30
      %p5284 = scmp.lt.s32.totalorder %s5283, 7
      %s5285 = scalar_select %p5284, %s5283, 7
      %s5286 = smul.addr %s5285, 8
      %s5287 = scalar_lea.vmem %s17, %s5286
      // Predicated region
      $region89: #{tpu_custom_call.1} parent=87 // pred_check
        %p5288 = pneg %p415
      $region90: #{tpu_custom_call.1} parent=87 // pred_check_branch
        %5290 = sbr.rel (%p5288) target = $region92
      $region91: #{tpu_custom_call.1} parent=87 // pred_region
        %s5291 = smul.u32 4, %s30
      $region92: #{tpu_custom_call.1} parent=87 // pred_fallthru
        _
    $region88: #{tpu_custom_call.1} parent=5 // pred_fallthru
      _
    %p5292 = scmp.le.s32.totalorder 2, %s25
    // Predicated region
    $region93: #{tpu_custom_call.1} parent=5 // pred_check
      %p5293 = pneg %p5292
    $region94: #{tpu_custom_call.1} parent=5 // pred_check_branch
      %5295 = sbr.rel (%p5293) target = $region96
    $region95: #{tpu_custom_call.1} parent=5 // pred_region
      %s5296 = ssub.s32 %s25, 2
      // Predicated region
      $region97: #{tpu_custom_call.1} parent=95 // pred_check
        %p5297 = pneg %p421
      $region98: #{tpu_custom_call.1} parent=95 // pred_check_branch
        %5299 = sbr.rel (%p5297) target = $region100
      $region99: #{tpu_custom_call.1} parent=95 // pred_region
        %s5300 = smul.u32 4, %s31
        %p5301 = scmp.lt.s32.totalorder %s5300, 7
        %s5302 = scalar_select %p5301, %s5300, 7
        %s5303 = smul.addr %s5302, 8
        %s5304 = scalar_lea.vmem %s17, %s5303
      $region100: #{tpu_custom_call.1} parent=95 // pred_fallthru
        _
    $region96: #{tpu_custom_call.1} parent=5 // pred_fallthru
      _
  $region6: #{tpu_custom_call.1} parent=0 // loop_footer
    %s29 = sadd.s32 1, %s25
  $region7: #{tpu_custom_call.1} parent=0 // loop_footer_branch
    %24 = sbr.rel target = $region3
  $region8: #{tpu_custom_call.1} parent=0 // loop_exit
    _

</llo_original>
